<compile_context>
chip_gen: v5e
topology: v5e:2x2
jax: 0.10.0
libtpu: 0.0.40
codegen_flags: <defaults>
</compile_context>

<pallas_src>
import functools
import math

import jax
import jax.numpy as jnp
from jax import lax
from jax.experimental import pallas as pl
from jax.experimental.pallas import tpu as pltpu


# ---------------------------------------------------------------------------
# Tiled linear:  x[M,K] @ w[K,N] + b[N]
# ---------------------------------------------------------------------------

def _linear_kernel(x_ref, w_ref, b_ref, o_ref):
    o_ref[...] = (
        jnp.dot(x_ref[...], w_ref[...], preferred_element_type=jnp.float32)
        + b_ref[...]
    ).astype(o_ref.dtype)


def linear(x, w, b, *, tm=512, tn=512):
    """Tiled matmul + bias.  Grid over (M, N); K stays whole (it is small here)."""
    M, K = x.shape
    Kw, N = w.shape
    assert K == Kw
    tm = M if M <= tm else tm          # full-extent block if small, else 512 (8-div)
    tn = N if N <= tn else tn          # full-extent block if small, else 512 (128-div)
    grid = (pl.cdiv(M, tm), pl.cdiv(N, tn))
    return pl.pallas_call(
        _linear_kernel,
        out_shape=jax.ShapeDtypeStruct((M, N), jnp.float32),
        grid_spec=pltpu.PrefetchScalarGridSpec(
            num_scalar_prefetch=0,
            grid=grid,
            in_specs=[
                pl.BlockSpec((tm, K), lambda i, j: (i, 0)),
                pl.BlockSpec((K, tn), lambda i, j: (0, j)),
                pl.BlockSpec((1, tn), lambda i, j: (0, j)),
            ],
            out_specs=pl.BlockSpec((tm, tn), lambda i, j: (i, j)),
        ),
        compiler_params=pltpu.CompilerParams(
            dimension_semantics=("parallel", "parallel")
        ),
    )(x, w, b.reshape(1, N))


# ---------------------------------------------------------------------------
# Fused bidirectional LSTM recurrence, time-blocked
# ---------------------------------------------------------------------------

def _bilstm_block_kernel(xpf_ref, xpb_ref, whf_ref, whb_ref,
                         of_ref, ob_ref,
                         hf_sc, cf_sc, hb_sc, cb_sc, *, hidden, tb):
    # xpf_ref: (TB, B, 4H) fwd input contribution for time block i   (ascending t)
    # xpb_ref: (TB, B, 4H) bwd input contribution for time block NT-1-i
    # wh*_ref: (H, 4H) = W_hh^T for each direction (resident, constant index map)
    @pl.when(pl.program_id(0) == 0)
    def _():
        hf_sc[...] = jnp.zeros_like(hf_sc)
        cf_sc[...] = jnp.zeros_like(cf_sc)
        hb_sc[...] = jnp.zeros_like(hb_sc)
        cb_sc[...] = jnp.zeros_like(cb_sc)

    # Hoist weight loads out of the inner time loop.
    whf = whf_ref[...]
    whb = whb_ref[...]

    def cell(xp_t, h, c, whh):
        gates = xp_t + jnp.dot(h, whh, preferred_element_type=jnp.float32)
        i = jax.nn.sigmoid(gates[:, 0 * hidden:1 * hidden])
        f = jax.nn.sigmoid(gates[:, 1 * hidden:2 * hidden])
        g = jnp.tanh(gates[:, 2 * hidden:3 * hidden])
        o = jax.nn.sigmoid(gates[:, 3 * hidden:4 * hidden])
        c_new = f * c + i * g
        h_new = o * jnp.tanh(c_new)
        return h_new, c_new

    def body(s, carry):
        # Forward direction: time index = block_start + s (ascending).
        hf, cf = cell(xpf_ref[s], hf_sc[...], cf_sc[...], whf)
        hf_sc[...] = hf
        cf_sc[...] = cf
        of_ref[s] = hf

        # Backward direction: time index = bwd_block_start + (tb-1-s) (descending
        # overall), fully independent of the forward chain -> interleavable.
        sb = tb - 1 - s
        hb, cb = cell(xpb_ref[sb], hb_sc[...], cb_sc[...], whb)
        hb_sc[...] = hb
        cb_sc[...] = cb
        ob_ref[sb] = hb
        return carry

    lax.fori_loop(0, tb, body, 0, unroll=True)


def _largest_divisor(n, max_val):
    best = 1
    for cand in range(1, min(n, max_val) + 1):
        if n % cand == 0:
            best = cand
    return best


def bilstm_layer(xp_f, xp_b, whh_f_t, whh_b_t, *, max_time_block=32):
    """Both directions of one LSTM layer.
    xp_f/xp_b: [T, B, 4H] precomputed input contributions (incl. both biases).
    whh_*_t:   [H, 4H] = W_hh^T.
    Returns (h_fwd, h_bwd), each [T, B, H]."""
    T, B, G = xp_f.shape
    H = G // 4
    tb = _largest_divisor(T, max_time_block)
    nt = T // tb

    kernel = functools.partial(_bilstm_block_kernel, hidden=H, tb=tb)
    out_f, out_b = pl.pallas_call(
        kernel,
        out_shape=(
            jax.ShapeDtypeStruct((T, B, H), jnp.float32),
            jax.ShapeDtypeStruct((T, B, H), jnp.float32),
        ),
        grid_spec=pltpu.PrefetchScalarGridSpec(
            num_scalar_prefetch=0,
            grid=(nt,),
            in_specs=[
                pl.BlockSpec((tb, B, G), lambda i: (i, 0, 0)),            # xp fwd
                pl.BlockSpec((tb, B, G), lambda i: (nt - 1 - i, 0, 0)),   # xp bwd
                pl.BlockSpec((H, G), lambda i: (0, 0)),                   # W_hh^T fwd
                pl.BlockSpec((H, G), lambda i: (0, 0)),                   # W_hh^T bwd
            ],
            out_specs=(
                pl.BlockSpec((tb, B, H), lambda i: (i, 0, 0)),
                pl.BlockSpec((tb, B, H), lambda i: (nt - 1 - i, 0, 0)),
            ),
            scratch_shapes=[pltpu.VMEM((B, H), jnp.float32) for _ in range(4)],
        ),
        compiler_params=pltpu.CompilerParams(
            dimension_semantics=("arbitrary",)
        ),
    )(xp_f, xp_b, whh_f_t, whh_b_t)
    return out_f, out_b


# ---------------------------------------------------------------------------
# Model: parameter init + forward
# ---------------------------------------------------------------------------

def init_params(key, d_in, d_hid, d_out):
    """Deterministic PyTorch-style uniform(-k, k) init."""
    params = {}
    keys = iter(jax.random.split(key, 64))

    def u(shape, k):
        return jax.random.uniform(next(keys), shape, jnp.float32, -k, k)

    k_in = 1.0 / math.sqrt(d_in)
    params["proj_in_w"] = u((d_in, d_hid), k_in)            # stored as W^T
    params["proj_in_b"] = u((d_hid,), k_in)

    k_h = 1.0 / math.sqrt(d_hid)
    for layer in range(2):
        in_features = d_hid if layer == 0 else 2 * d_hid
        for direction in ("fwd", "bwd"):
            params[f"l{layer}_{direction}"] = {
                "wih_t": u((in_features, 4 * d_hid), k_h),   # W_ih^T
                "whh_t": u((d_hid, 4 * d_hid), k_h),         # W_hh^T
                "b": u((4 * d_hid,), k_h) + u((4 * d_hid,), k_h),  # b_ih + b_hh
            }

    k_out = 1.0 / math.sqrt(2 * d_hid)
    params["proj_out_w"] = u((2 * d_hid, d_out), k_out)      # stored as W^T
    params["proj_out_b"] = u((d_out,), k_out)
    return params


def lstm_model_forward(x, params, d_hid, d_out):
    B, T, d_in = x.shape

    # Pad batch to a multiple of 8 so every vreg sublane / MXU row is used.
    B_pad = ((B + 7) // 8) * 8
    if B_pad != B:
        x = jnp.pad(x, ((0, B_pad - B), (0, 0), (0, 0)))

    # Single small transpose on the narrow d_in tensor; everything downstream
    # stays in (T, B, F) layout so the recurrent kernel slices the leading axis.
    x_tbf = jnp.transpose(x, (1, 0, 2))                      # (T, B_pad, d_in)

    h = linear(x_tbf.reshape(T * B_pad, d_in),
               params["proj_in_w"], params["proj_in_b"])
    layer_in = h.reshape(T, B_pad, d_hid)

    for layer in range(2):
        p_f = params[f"l{layer}_fwd"]
        p_b = params[f"l{layer}_bwd"]
        feat = layer_in.shape[-1]
        flat_in = layer_in.reshape(T * B_pad, feat)

        # Fused input projection for both directions: one (feat, 8H) matmul.
        wih_cat = jnp.concatenate([p_f["wih_t"], p_b["wih_t"]], axis=1)
        b_cat = jnp.concatenate([p_f["b"], p_b["b"]], axis=0)
        xp = linear(flat_in, wih_cat, b_cat).reshape(T, B_pad, 8 * d_hid)
        xp_f = xp[..., : 4 * d_hid]
        xp_b = xp[..., 4 * d_hid:]

        out_f, out_b = bilstm_layer(xp_f, xp_b, p_f["whh_t"], p_b["whh_t"])
        layer_in = jnp.concatenate([out_f, out_b], axis=-1)   # (T, B_pad, 2H)

    y = linear(layer_in.reshape(T * B_pad, 2 * d_hid),
               params["proj_out_w"], params["proj_out_b"])
    y = jnp.transpose(y.reshape(T, B_pad, d_out), (1, 0, 2))  # (B_pad, T, d_out)
    return y[:B]


# ---------------------------------------------------------------------------
# Pure-JAX reference (for correctness check)
# ---------------------------------------------------------------------------

def _lstm_dir_ref(x_tbf, wih_t, whh_t, b, H, reverse):
    T, B, _ = x_tbf.shape
    xs = x_tbf[::-1] if reverse else x_tbf

    def step(carry, x_t):
        h, c = carry
        gates = x_t @ wih_t + h @ whh_t + b
        i = jax.nn.sigmoid(gates[:, 0 * H:1 * H])
        f = jax.nn.sigmoid(gates[:, 1 * H:2 * H])
        g = jnp.tanh(gates[:, 2 * H:3 * H])
        o = jax.nn.sigmoid(gates[:, 3 * H:4 * H])
        c = f * c + i * g
        h = o * jnp.tanh(c)
        return (h, c), h

    (_, _), hs = lax.scan(step, (jnp.zeros((B, H)), jnp.zeros((B, H))), xs)
    return hs[::-1] if reverse else hs


def lstm_model_ref(x, params, d_hid, d_out):
    B, T, d_in = x.shape
    h = x.reshape(B * T, d_in) @ params["proj_in_w"] + params["proj_in_b"]
    layer_in = jnp.transpose(h.reshape(B, T, d_hid), (1, 0, 2))
    for layer in range(2):
        outs = []
        for direction, rev in (("fwd", False), ("bwd", True)):
            p = params[f"l{layer}_{direction}"]
            outs.append(
                _lstm_dir_ref(layer_in, p["wih_t"], p["whh_t"], p["b"],
                              d_hid, rev)
            )
        layer_in = jnp.concatenate(outs, axis=-1)
    out = jnp.transpose(layer_in, (1, 0, 2)).reshape(B * T, 2 * d_hid)
    y = out @ params["proj_out_w"] + params["proj_out_b"]
    return y.reshape(B, T, d_out)


# ---------------------------------------------------------------------------

if __name__ == "__main__":
    d_in, d_hid, d_out = 16, 32, 8
    B, T = 2, 8

    key = jax.random.PRNGKey(0)
    k_param, k_x = jax.random.split(key)
    params = init_params(k_param, d_in, d_hid, d_out)
    x = jax.random.normal(k_x, (B, T, d_in), dtype=jnp.float32)

    fwd = jax.jit(functools.partial(lstm_model_forward, d_hid=d_hid, d_out=d_out))
    y = jax.block_until_ready(fwd(x, params))

    y_ref = jax.block_until_ready(lstm_model_ref(x, params, d_hid, d_out))
    assert y.shape == (B, T, d_out)
    assert bool(jnp.all(jnp.isfinite(y)))
    assert bool(jnp.allclose(y, y_ref, atol=1e-3, rtol=1e-3)), "mismatch vs reference"

    print("KERNEL_OK")
</pallas_src>

<mosaic_0001>
module attributes {stable_mosaic.version = 11 : i64} {
  func.func @_linear_kernel(%arg0: i32, %arg1: i32, %arg2: memref<64x16xf32, #tpu.memory_space<vmem>>, %arg3: memref<16x32xf32, #tpu.memory_space<vmem>>, %arg4: memref<1x32xf32, #tpu.memory_space<vmem>>, %arg5: memref<64x32xf32, #tpu.memory_space<vmem>>) attributes {dimension_semantics = [#tpu.dimension_semantics<parallel>, #tpu.dimension_semantics<parallel>], iteration_bounds = array<i64: 1, 1>, scalar_prefetch = 0 : i64, scratch_operands = 0 : i64, tpu.core_type = #tpu.core_type<tc>, window_params = [{transform_indices = @transform_0, window_bounds = array<i64: 64, 16>}, {transform_indices = @transform_1, window_bounds = array<i64: 16, 32>}, {transform_indices = @transform_2, window_bounds = array<i64: 1, 32>}, {transform_indices = @transform_3, window_bounds = array<i64: 64, 32>}]} {
    %c0 = arith.constant 0 : index
    %c0_0 = arith.constant 0 : index
    %0 = vector.load %arg2[%c0, %c0_0] : memref<64x16xf32, #tpu.memory_space<vmem>>, vector<64x16xf32>
    %c0_1 = arith.constant 0 : index
    %c0_2 = arith.constant 0 : index
    %1 = vector.load %arg3[%c0_1, %c0_2] : memref<16x32xf32, #tpu.memory_space<vmem>>, vector<16x32xf32>
    %cst = arith.constant dense<0.000000e+00> : vector<64x32xf32>
    %2 = tpu.matmul %0, %1, %cst {dimension_numbers = #tpu.dot_dimension_numbers<[1], [0], [0], [1], [0, 0, 1, 1], [], []>} : vector<64x16xf32>, vector<16x32xf32>, vector<64x32xf32> -> vector<64x32xf32>
    %c0_3 = arith.constant 0 : index
    %c0_4 = arith.constant 0 : index
    %3 = vector.load %arg4[%c0_3, %c0_4] : memref<1x32xf32, #tpu.memory_space<vmem>>, vector<1x32xf32>
    %4 = vector.broadcast %3 : vector<1x32xf32> to vector<64x32xf32>
    %5 = arith.addf %2, %4 : vector<64x32xf32>
    %c0_5 = arith.constant 0 : index
    %c0_6 = arith.constant 0 : index
    %6 = vector.load %arg5[%c0_5, %c0_6] : memref<64x32xf32, #tpu.memory_space<vmem>>, vector<64x32xf32>
    tpu.vector_store %arg5[%c0_5, %c0_6], %5 {strides = array<i32>} : memref<64x32xf32, #tpu.memory_space<vmem>>, vector<64x32xf32>,
    return
  }
  func.func @transform_0(%arg0: i32, %arg1: i32) -> (i32, i32) {
    %c0_i32 = arith.constant 0 : i32
    %c0_i32_0 = arith.constant 0 : i32
    return %arg0, %c0_i32 : i32, i32
  }
  func.func @transform_1(%arg0: i32, %arg1: i32) -> (i32, i32) {
    %c0_i32 = arith.constant 0 : i32
    %c0_i32_0 = arith.constant 0 : i32
    return %c0_i32, %arg1 : i32, i32
  }
  func.func @transform_2(%arg0: i32, %arg1: i32) -> (i32, i32) {
    %c0_i32 = arith.constant 0 : i32
    %c0_i32_0 = arith.constant 0 : i32
    return %c0_i32, %arg1 : i32, i32
  }
  func.func @transform_3(%arg0: i32, %arg1: i32) -> (i32, i32) {
    %c0_i32 = arith.constant 0 : i32
    return %arg0, %arg1 : i32, i32
  }
}

module attributes {stable_mosaic.version = 11 : i64} {
  func.func @_linear_kernel(%arg0: i32, %arg1: i32, %arg2: memref<64x32xf32, #tpu.memory_space<vmem>>, %arg3: memref<32x256xf32, #tpu.memory_space<vmem>>, %arg4: memref<1x256xf32, #tpu.memory_space<vmem>>, %arg5: memref<64x256xf32, #tpu.memory_space<vmem>>) attributes {dimension_semantics = [#tpu.dimension_semantics<parallel>, #tpu.dimension_semantics<parallel>], iteration_bounds = array<i64: 1, 1>, scalar_prefetch = 0 : i64, scratch_operands = 0 : i64, tpu.core_type = #tpu.core_type<tc>, window_params = [{transform_indices = @transform_0, window_bounds = array<i64: 64, 32>}, {transform_indices = @transform_1, window_bounds = array<i64: 32, 256>}, {transform_indices = @transform_2, window_bounds = array<i64: 1, 256>}, {transform_indices = @transform_3, window_bounds = array<i64: 64, 256>}]} {
    %c0 = arith.constant 0 : index
    %c0_0 = arith.constant 0 : index
    %0 = vector.load %arg2[%c0, %c0_0] : memref<64x32xf32, #tpu.memory_space<vmem>>, vector<64x32xf32>
    %c0_1 = arith.constant 0 : index
    %c0_2 = arith.constant 0 : index
    %1 = vector.load %arg3[%c0_1, %c0_2] : memref<32x256xf32, #tpu.memory_space<vmem>>, vector<32x256xf32>
    %cst = arith.constant dense<0.000000e+00> : vector<64x256xf32>
    %2 = tpu.matmul %0, %1, %cst {dimension_numbers = #tpu.dot_dimension_numbers<[1], [0], [0], [1], [0, 0, 1, 1], [], []>} : vector<64x32xf32>, vector<32x256xf32>, vector<64x256xf32> -> vector<64x256xf32>
    %c0_3 = arith.constant 0 : index
    %c0_4 = arith.constant 0 : index
    %3 = vector.load %arg4[%c0_3, %c0_4] : memref<1x256xf32, #tpu.memory_space<vmem>>, vector<1x256xf32>
    %4 = vector.broadcast %3 : vector<1x256xf32> to vector<64x256xf32>
    %5 = arith.addf %2, %4 : vector<64x256xf32>
    %c0_5 = arith.constant 0 : index
    %c0_6 = arith.constant 0 : index
    %6 = vector.load %arg5[%c0_5, %c0_6] : memref<64x256xf32, #tpu.memory_space<vmem>>, vector<64x256xf32>
    tpu.vector_store %arg5[%c0_5, %c0_6], %5 {strides = array<i32>} : memref<64x256xf32, #tpu.memory_space<vmem>>, vector<64x256xf32>,
    return
  }
  func.func @transform_0(%arg0: i32, %arg1: i32) -> (i32, i32) {
    %c0_i32 = arith.constant 0 : i32
    %c0_i32_0 = arith.constant 0 : i32
    return %arg0, %c0_i32 : i32, i32
  }
  func.func @transform_1(%arg0: i32, %arg1: i32) -> (i32, i32) {
    %c0_i32 = arith.constant 0 : i32
    %c0_i32_0 = arith.constant 0 : i32
    return %c0_i32, %arg1 : i32, i32
  }
  func.func @transform_2(%arg0: i32, %arg1: i32) -> (i32, i32) {
    %c0_i32 = arith.constant 0 : i32
    %c0_i32_0 = arith.constant 0 : i32
    return %c0_i32, %arg1 : i32, i32
  }
  func.func @transform_3(%arg0: i32, %arg1: i32) -> (i32, i32) {
    %c0_i32 = arith.constant 0 : i32
    return %arg0, %arg1 : i32, i32
  }
}

module attributes {stable_mosaic.version = 11 : i64} {
  func.func @_bilstm_block_kernel(%arg0: i32, %arg1: memref<8x8x128xf32, #tpu.memory_space<vmem>>, %arg2: memref<8x8x128xf32, #tpu.memory_space<vmem>>, %arg3: memref<32x128xf32, #tpu.memory_space<vmem>>, %arg4: memref<32x128xf32, #tpu.memory_space<vmem>>, %arg5: memref<8x8x32xf32, #tpu.memory_space<vmem>>, %arg6: memref<8x8x32xf32, #tpu.memory_space<vmem>>, %arg7: memref<8x32xf32, #tpu.memory_space<vmem>>, %arg8: memref<8x32xf32, #tpu.memory_space<vmem>>, %arg9: memref<8x32xf32, #tpu.memory_space<vmem>>, %arg10: memref<8x32xf32, #tpu.memory_space<vmem>>) attributes {dimension_semantics = [#tpu.dimension_semantics<arbitrary>], iteration_bounds = array<i64: 1>, scalar_prefetch = 0 : i64, scratch_operands = 4 : i64, tpu.core_type = #tpu.core_type<tc>, window_params = [{transform_indices = @transform_0, window_bounds = array<i64: 8, 8, 128>}, {transform_indices = @transform_1, window_bounds = array<i64: 8, 8, 128>}, {pipeline_mode = #tpu.pipeline_mode<synchronous>, transform_indices = @transform_2, window_bounds = array<i64: 32, 128>}, {pipeline_mode = #tpu.pipeline_mode<synchronous>, transform_indices = @transform_3, window_bounds = array<i64: 32, 128>}, {transform_indices = @transform_4, window_bounds = array<i64: 8, 8, 32>}, {transform_indices = @transform_5, window_bounds = array<i64: 8, 8, 32>}]} {
    %c0_i32 = arith.constant 0 : i32
    %0 = arith.cmpi eq, %arg0, %c0_i32 : i32
    %1 = arith.extui %0 : i1 to i32
    %c0_i32_0 = arith.constant 0 : i32
    %2 = arith.cmpi ne, %1, %c0_i32_0 : i32
    scf.if %2 {
      %cst_268 = arith.constant 0.000000e+00 : f32
      %621 = vector.broadcast %cst_268 : f32 to vector<8x32xf32>
      %c0_269 = arith.constant 0 : index
      %c0_270 = arith.constant 0 : index
      %622 = vector.load %arg7[%c0_269, %c0_270] : memref<8x32xf32, #tpu.memory_space<vmem>>, vector<8x32xf32>
      tpu.vector_store %arg7[%c0_269, %c0_270], %621 {strides = array<i32>} : memref<8x32xf32, #tpu.memory_space<vmem>>, vector<8x32xf32>,
      %cst_271 = arith.constant 0.000000e+00 : f32
      %623 = vector.broadcast %cst_271 : f32 to vector<8x32xf32>
      %c0_272 = arith.constant 0 : index
      %c0_273 = arith.constant 0 : index
      %624 = vector.load %arg8[%c0_272, %c0_273] : memref<8x32xf32, #tpu.memory_space<vmem>>, vector<8x32xf32>
      tpu.vector_store %arg8[%c0_272, %c0_273], %623 {strides = array<i32>} : memref<8x32xf32, #tpu.memory_space<vmem>>, vector<8x32xf32>,
      %cst_274 = arith.constant 0.000000e+00 : f32
      %625 = vector.broadcast %cst_274 : f32 to vector<8x32xf32>
      %c0_275 = arith.constant 0 : index
      %c0_276 = arith.constant 0 : index
      %626 = vector.load %arg9[%c0_275, %c0_276] : memref<8x32xf32, #tpu.memory_space<vmem>>, vector<8x32xf32>
      tpu.vector_store %arg9[%c0_275, %c0_276], %625 {strides = array<i32>} : memref<8x32xf32, #tpu.memory_space<vmem>>, vector<8x32xf32>,
      %cst_277 = arith.constant 0.000000e+00 : f32
      %627 = vector.broadcast %cst_277 : f32 to vector<8x32xf32>
      %c0_278 = arith.constant 0 : index
      %c0_279 = arith.constant 0 : index
      %628 = vector.load %arg10[%c0_278, %c0_279] : memref<8x32xf32, #tpu.memory_space<vmem>>, vector<8x32xf32>
      tpu.vector_store %arg10[%c0_278, %c0_279], %627 {strides = array<i32>} : memref<8x32xf32, #tpu.memory_space<vmem>>, vector<8x32xf32>,
    } else {
    }
    %c0 = arith.constant 0 : index
    %c0_1 = arith.constant 0 : index
    %3 = vector.load %arg3[%c0, %c0_1] : memref<32x128xf32, #tpu.memory_space<vmem>>, vector<32x128xf32>
    %c0_2 = arith.constant 0 : index
    %c0_3 = arith.constant 0 : index
    %4 = vector.load %arg4[%c0_2, %c0_3] : memref<32x128xf32, #tpu.memory_space<vmem>>, vector<32x128xf32>
    %c0_i32_4 = arith.constant 0 : i32
    %5 = arith.index_cast %c0_i32_4 : i32 to index
    %c0_5 = arith.constant 0 : index
    %c0_6 = arith.constant 0 : index
    %6 = vector.load %arg1[%5, %c0_5, %c0_6] : memref<8x8x128xf32, #tpu.memory_space<vmem>>, vector<1x8x128xf32>
    %7 = vector.shape_cast %6 : vector<1x8x128xf32> to vector<8x128xf32>
    %c0_7 = arith.constant 0 : index
    %c0_8 = arith.constant 0 : index
    %8 = vector.load %arg7[%c0_7, %c0_8] : memref<8x32xf32, #tpu.memory_space<vmem>>, vector<8x32xf32>
    %c0_9 = arith.constant 0 : index
    %c0_10 = arith.constant 0 : index
    %9 = vector.load %arg8[%c0_9, %c0_10] : memref<8x32xf32, #tpu.memory_space<vmem>>, vector<8x32xf32>
    %cst = arith.constant dense<0.000000e+00> : vector<8x128xf32>
    %10 = tpu.matmul %8, %3, %cst {dimension_numbers = #tpu.dot_dimension_numbers<[1], [0], [0], [1], [0, 0, 1, 1], [], []>} : vector<8x32xf32>, vector<32x128xf32>, vector<8x128xf32> -> vector<8x128xf32>
    %11 = arith.addf %7, %10 : vector<8x128xf32>
    %12 = vector.extract_strided_slice %11 {offsets = [0, 0], sizes = [8, 32], strides = [1, 1]} : vector<8x128xf32> to vector<8x32xf32>
    %13 = arith.negf %12 : vector<8x32xf32>
    %14 = math.exp %13 : vector<8x32xf32>
    %cst_11 = arith.constant 1.000000e+00 : f32
    %15 = vector.broadcast %cst_11 : f32 to vector<8x32xf32>
    %16 = arith.addf %15, %14 : vector<8x32xf32>
    %17 = arith.divf %15, %16 : vector<8x32xf32>
    %18 = vector.extract_strided_slice %11 {offsets = [0, 32], sizes = [8, 32], strides = [1, 1]} : vector<8x128xf32> to vector<8x32xf32>
    %19 = arith.negf %18 : vector<8x32xf32>
    %20 = math.exp %19 : vector<8x32xf32>
    %cst_12 = arith.constant 1.000000e+00 : f32
    %21 = vector.broadcast %cst_12 : f32 to vector<8x32xf32>
    %22 = arith.addf %21, %20 : vector<8x32xf32>
    %23 = arith.divf %21, %22 : vector<8x32xf32>
    %24 = vector.extract_strided_slice %11 {offsets = [0, 64], sizes = [8, 32], strides = [1, 1]} : vector<8x128xf32> to vector<8x32xf32>
    %25 = math.tanh %24 : vector<8x32xf32>
    %26 = vector.extract_strided_slice %11 {offsets = [0, 96], sizes = [8, 32], strides = [1, 1]} : vector<8x128xf32> to vector<8x32xf32>
    %27 = arith.negf %26 : vector<8x32xf32>
    %28 = math.exp %27 : vector<8x32xf32>
    %cst_13 = arith.constant 1.000000e+00 : f32
    %29 = vector.broadcast %cst_13 : f32 to vector<8x32xf32>
    %30 = arith.addf %29, %28 : vector<8x32xf32>
    %31 = arith.divf %29, %30 : vector<8x32xf32>
    %32 = arith.mulf %23, %9 : vector<8x32xf32>
    %33 = arith.mulf %17, %25 : vector<8x32xf32>
    %34 = arith.addf %32, %33 : vector<8x32xf32>
    %35 = math.tanh %34 : vector<8x32xf32>
    %36 = arith.mulf %31, %35 : vector<8x32xf32>
    %c0_14 = arith.constant 0 : index
    %c0_15 = arith.constant 0 : index
    %37 = vector.load %arg7[%c0_14, %c0_15] : memref<8x32xf32, #tpu.memory_space<vmem>>, vector<8x32xf32>
    tpu.vector_store %arg7[%c0_14, %c0_15], %36 {strides = array<i32>} : memref<8x32xf32, #tpu.memory_space<vmem>>, vector<8x32xf32>,
    %c0_16 = arith.constant 0 : index
    %c0_17 = arith.constant 0 : index
    %38 = vector.load %arg8[%c0_16, %c0_17] : memref<8x32xf32, #tpu.memory_space<vmem>>, vector<8x32xf32>
    tpu.vector_store %arg8[%c0_16, %c0_17], %34 {strides = array<i32>} : memref<8x32xf32, #tpu.memory_space<vmem>>, vector<8x32xf32>,
    %39 = arith.index_cast %c0_i32_4 : i32 to index
    %c0_18 = arith.constant 0 : index
    %c0_19 = arith.constant 0 : index
    %40 = vector.load %arg5[%39, %c0_18, %c0_19] : memref<8x8x32xf32, #tpu.memory_space<vmem>>, vector<1x8x32xf32>
    %41 = vector.shape_cast %40 : vector<1x8x32xf32> to vector<8x32xf32>
    %42 = vector.shape_cast %36 : vector<8x32xf32> to vector<1x8x32xf32>
    tpu.vector_store %arg5[%39, %c0_18, %c0_19], %42 {strides = array<i32>} : memref<8x8x32xf32, #tpu.memory_space<vmem>>, vector<1x8x32xf32>,
    %c7_i32 = arith.constant 7 : i32
    %43 = arith.subi %c7_i32, %c0_i32_4 : i32
    %44 = arith.index_cast %43 : i32 to index
    %c0_20 = arith.constant 0 : index
    %c0_21 = arith.constant 0 : index
    %45 = vector.load %arg2[%44, %c0_20, %c0_21] : memref<8x8x128xf32, #tpu.memory_space<vmem>>, vector<1x8x128xf32>
    %46 = vector.shape_cast %45 : vector<1x8x128xf32> to vector<8x128xf32>
    %c0_22 = arith.constant 0 : index
    %c0_23 = arith.constant 0 : index
    %47 = vector.load %arg9[%c0_22, %c0_23] : memref<8x32xf32, #tpu.memory_space<vmem>>, vector<8x32xf32>
    %c0_24 = arith.constant 0 : index
    %c0_25 = arith.constant 0 : index
    %48 = vector.load %arg10[%c0_24, %c0_25] : memref<8x32xf32, #tpu.memory_space<vmem>>, vector<8x32xf32>
    %cst_26 = arith.constant dense<0.000000e+00> : vector<8x128xf32>
    %49 = tpu.matmul %47, %4, %cst_26 {dimension_numbers = #tpu.dot_dimension_numbers<[1], [0], [0], [1], [0, 0, 1, 1], [], []>} : vector<8x32xf32>, vector<32x128xf32>, vector<8x128xf32> -> vector<8x128xf32>
    %50 = arith.addf %46, %49 : vector<8x128xf32>
    %51 = vector.extract_strided_slice %50 {offsets = [0, 0], sizes = [8, 32], strides = [1, 1]} : vector<8x128xf32> to vector<8x32xf32>
    %52 = arith.negf %51 : vector<8x32xf32>
    %53 = math.exp %52 : vector<8x32xf32>
    %cst_27 = arith.constant 1.000000e+00 : f32
    %54 = vector.broadcast %cst_27 : f32 to vector<8x32xf32>
    %55 = arith.addf %54, %53 : vector<8x32xf32>
    %56 = arith.divf %54, %55 : vector<8x32xf32>
    %57 = vector.extract_strided_slice %50 {offsets = [0, 32], sizes = [8, 32], strides = [1, 1]} : vector<8x128xf32> to vector<8x32xf32>
    %58 = arith.negf %57 : vector<8x32xf32>
    %59 = math.exp %58 : vector<8x32xf32>
    %cst_28 = arith.constant 1.000000e+00 : f32
    %60 = vector.broadcast %cst_28 : f32 to vector<8x32xf32>
    %61 = arith.addf %60, %59 : vector<8x32xf32>
    %62 = arith.divf %60, %61 : vector<8x32xf32>
    %63 = vector.extract_strided_slice %50 {offsets = [0, 64], sizes = [8, 32], strides = [1, 1]} : vector<8x128xf32> to vector<8x32xf32>
    %64 = math.tanh %63 : vector<8x32xf32>
    %65 = vector.extract_strided_slice %50 {offsets = [0, 96], sizes = [8, 32], strides = [1, 1]} : vector<8x128xf32> to vector<8x32xf32>
    %66 = arith.negf %65 : vector<8x32xf32>
    %67 = math.exp %66 : vector<8x32xf32>
    %cst_29 = arith.constant 1.000000e+00 : f32
    %68 = vector.broadcast %cst_29 : f32 to vector<8x32xf32>
    %69 = arith.addf %68, %67 : vector<8x32xf32>
    %70 = arith.divf %68, %69 : vector<8x32xf32>
    %71 = arith.mulf %62, %48 : vector<8x32xf32>
    %72 = arith.mulf %56, %64 : vector<8x32xf32>
    %73 = arith.addf %71, %72 : vector<8x32xf32>
    %74 = math.tanh %73 : vector<8x32xf32>
    %75 = arith.mulf %70, %74 : vector<8x32xf32>
    %c0_30 = arith.constant 0 : index
    %c0_31 = arith.constant 0 : index
    %76 = vector.load %arg9[%c0_30, %c0_31] : memref<8x32xf32, #tpu.memory_space<vmem>>, vector<8x32xf32>
    tpu.vector_store %arg9[%c0_30, %c0_31], %75 {strides = array<i32>} : memref<8x32xf32, #tpu.memory_space<vmem>>, vector<8x32xf32>,
    %c0_32 = arith.constant 0 : index
    %c0_33 = arith.constant 0 : index
    %77 = vector.load %arg10[%c0_32, %c0_33] : memref<8x32xf32, #tpu.memory_space<vmem>>, vector<8x32xf32>
    tpu.vector_store %arg10[%c0_32, %c0_33], %73 {strides = array<i32>} : memref<8x32xf32, #tpu.memory_space<vmem>>, vector<8x32xf32>,
    %78 = arith.index_cast %43 : i32 to index
    %c0_34 = arith.constant 0 : index
    %c0_35 = arith.constant 0 : index
    %79 = vector.load %arg6[%78, %c0_34, %c0_35] : memref<8x8x32xf32, #tpu.memory_space<vmem>>, vector<1x8x32xf32>
    %80 = vector.shape_cast %79 : vector<1x8x32xf32> to vector<8x32xf32>
    %81 = vector.shape_cast %75 : vector<8x32xf32> to vector<1x8x32xf32>
    tpu.vector_store %arg6[%78, %c0_34, %c0_35], %81 {strides = array<i32>} : memref<8x8x32xf32, #tpu.memory_space<vmem>>, vector<1x8x32xf32>,
    %c1_i32 = arith.constant 1 : i32
    %82 = arith.index_cast %c1_i32 : i32 to index
    %c0_36 = arith.constant 0 : index
    %c0_37 = arith.constant 0 : index
    %83 = vector.load %arg1[%82, %c0_36, %c0_37] : memref<8x8x128xf32, #tpu.memory_space<vmem>>, vector<1x8x128xf32>
    %84 = vector.shape_cast %83 : vector<1x8x128xf32> to vector<8x128xf32>
    %c0_38 = arith.constant 0 : index
    %c0_39 = arith.constant 0 : index
    %85 = vector.load %arg7[%c0_38, %c0_39] : memref<8x32xf32, #tpu.memory_space<vmem>>, vector<8x32xf32>
    %c0_40 = arith.constant 0 : index
    %c0_41 = arith.constant 0 : index
    %86 = vector.load %arg8[%c0_40, %c0_41] : memref<8x32xf32, #tpu.memory_space<vmem>>, vector<8x32xf32>
    %cst_42 = arith.constant dense<0.000000e+00> : vector<8x128xf32>
    %87 = tpu.matmul %85, %3, %cst_42 {dimension_numbers = #tpu.dot_dimension_numbers<[1], [0], [0], [1], [0, 0, 1, 1], [], []>} : vector<8x32xf32>, vector<32x128xf32>, vector<8x128xf32> -> vector<8x128xf32>
    %88 = arith.addf %84, %87 : vector<8x128xf32>
    %89 = vector.extract_strided_slice %88 {offsets = [0, 0], sizes = [8, 32], strides = [1, 1]} : vector<8x128xf32> to vector<8x32xf32>
    %90 = arith.negf %89 : vector<8x32xf32>
    %91 = math.exp %90 : vector<8x32xf32>
    %cst_43 = arith.constant 1.000000e+00 : f32
    %92 = vector.broadcast %cst_43 : f32 to vector<8x32xf32>
    %93 = arith.addf %92, %91 : vector<8x32xf32>
    %94 = arith.divf %92, %93 : vector<8x32xf32>
    %95 = vector.extract_strided_slice %88 {offsets = [0, 32], sizes = [8, 32], strides = [1, 1]} : vector<8x128xf32> to vector<8x32xf32>
    %96 = arith.negf %95 : vector<8x32xf32>
    %97 = math.exp %96 : vector<8x32xf32>
    %cst_44 = arith.constant 1.000000e+00 : f32
    %98 = vector.broadcast %cst_44 : f32 to vector<8x32xf32>
    %99 = arith.addf %98, %97 : vector<8x32xf32>
    %100 = arith.divf %98, %99 : vector<8x32xf32>
    %101 = vector.extract_strided_slice %88 {offsets = [0, 64], sizes = [8, 32], strides = [1, 1]} : vector<8x128xf32> to vector<8x32xf32>
    %102 = math.tanh %101 : vector<8x32xf32>
    %103 = vector.extract_strided_slice %88 {offsets = [0, 96], sizes = [8, 32], strides = [1, 1]} : vector<8x128xf32> to vector<8x32xf32>
    %104 = arith.negf %103 : vector<8x32xf32>
    %105 = math.exp %104 : vector<8x32xf32>
    %cst_45 = arith.constant 1.000000e+00 : f32
    %106 = vector.broadcast %cst_45 : f32 to vector<8x32xf32>
    %107 = arith.addf %106, %105 : vector<8x32xf32>
    %108 = arith.divf %106, %107 : vector<8x32xf32>
    %109 = arith.mulf %100, %86 : vector<8x32xf32>
    %110 = arith.mulf %94, %102 : vector<8x32xf32>
    %111 = arith.addf %109, %110 : vector<8x32xf32>
    %112 = math.tanh %111 : vector<8x32xf32>
    %113 = arith.mulf %108, %112 : vector<8x32xf32>
    %c0_46 = arith.constant 0 : index
    %c0_47 = arith.constant 0 : index
    %114 = vector.load %arg7[%c0_46, %c0_47] : memref<8x32xf32, #tpu.memory_space<vmem>>, vector<8x32xf32>
    tpu.vector_store %arg7[%c0_46, %c0_47], %113 {strides = array<i32>} : memref<8x32xf32, #tpu.memory_space<vmem>>, vector<8x32xf32>,
    %c0_48 = arith.constant 0 : index
    %c0_49 = arith.constant 0 : index
    %115 = vector.load %arg8[%c0_48, %c0_49] : memref<8x32xf32, #tpu.memory_space<vmem>>, vector<8x32xf32>
    tpu.vector_store %arg8[%c0_48, %c0_49], %111 {strides = array<i32>} : memref<8x32xf32, #tpu.memory_space<vmem>>, vector<8x32xf32>,
    %116 = arith.index_cast %c1_i32 : i32 to index
    %c0_50 = arith.constant 0 : index
    %c0_51 = arith.constant 0 : index
    %117 = vector.load %arg5[%116, %c0_50, %c0_51] : memref<8x8x32xf32, #tpu.memory_space<vmem>>, vector<1x8x32xf32>
    %118 = vector.shape_cast %117 : vector<1x8x32xf32> to vector<8x32xf32>
    %119 = vector.shape_cast %113 : vector<8x32xf32> to vector<1x8x32xf32>
    tpu.vector_store %arg5[%116, %c0_50, %c0_51], %119 {strides = array<i32>} : memref<8x8x32xf32, #tpu.memory_space<vmem>>, vector<1x8x32xf32>,
    %c7_i32_52 = arith.constant 7 : i32
    %120 = arith.subi %c7_i32_52, %c1_i32 : i32
    %121 = arith.index_cast %120 : i32 to index
    %c0_53 = arith.constant 0 : index
    %c0_54 = arith.constant 0 : index
    %122 = vector.load %arg2[%121, %c0_53, %c0_54] : memref<8x8x128xf32, #tpu.memory_space<vmem>>, vector<1x8x128xf32>
    %123 = vector.shape_cast %122 : vector<1x8x128xf32> to vector<8x128xf32>
    %c0_55 = arith.constant 0 : index
    %c0_56 = arith.constant 0 : index
    %124 = vector.load %arg9[%c0_55, %c0_56] : memref<8x32xf32, #tpu.memory_space<vmem>>, vector<8x32xf32>
    %c0_57 = arith.constant 0 : index
    %c0_58 = arith.constant 0 : index
    %125 = vector.load %arg10[%c0_57, %c0_58] : memref<8x32xf32, #tpu.memory_space<vmem>>, vector<8x32xf32>
    %cst_59 = arith.constant dense<0.000000e+00> : vector<8x128xf32>
    %126 = tpu.matmul %124, %4, %cst_59 {dimension_numbers = #tpu.dot_dimension_numbers<[1], [0], [0], [1], [0, 0, 1, 1], [], []>} : vector<8x32xf32>, vector<32x128xf32>, vector<8x128xf32> -> vector<8x128xf32>
    %127 = arith.addf %123, %126 : vector<8x128xf32>
    %128 = vector.extract_strided_slice %127 {offsets = [0, 0], sizes = [8, 32], strides = [1, 1]} : vector<8x128xf32> to vector<8x32xf32>
    %129 = arith.negf %128 : vector<8x32xf32>
    %130 = math.exp %129 : vector<8x32xf32>
    %cst_60 = arith.constant 1.000000e+00 : f32
    %131 = vector.broadcast %cst_60 : f32 to vector<8x32xf32>
    %132 = arith.addf %131, %130 : vector<8x32xf32>
    %133 = arith.divf %131, %132 : vector<8x32xf32>
    %134 = vector.extract_strided_slice %127 {offsets = [0, 32], sizes = [8, 32], strides = [1, 1]} : vector<8x128xf32> to vector<8x32xf32>
    %135 = arith.negf %134 : vector<8x32xf32>
    %136 = math.exp %135 : vector<8x32xf32>
    %cst_61 = arith.constant 1.000000e+00 : f32
    %137 = vector.broadcast %cst_61 : f32 to vector<8x32xf32>
    %138 = arith.addf %137, %136 : vector<8x32xf32>
    %139 = arith.divf %137, %138 : vector<8x32xf32>
    %140 = vector.extract_strided_slice %127 {offsets = [0, 64], sizes = [8, 32], strides = [1, 1]} : vector<8x128xf32> to vector<8x32xf32>
    %141 = math.tanh %140 : vector<8x32xf32>
    %142 = vector.extract_strided_slice %127 {offsets = [0, 96], sizes = [8, 32], strides = [1, 1]} : vector<8x128xf32> to vector<8x32xf32>
    %143 = arith.negf %142 : vector<8x32xf32>
    %144 = math.exp %143 : vector<8x32xf32>
    %cst_62 = arith.constant 1.000000e+00 : f32
    %145 = vector.broadcast %cst_62 : f32 to vector<8x32xf32>
    %146 = arith.addf %145, %144 : vector<8x32xf32>
    %147 = arith.divf %145, %146 : vector<8x32xf32>
    %148 = arith.mulf %139, %125 : vector<8x32xf32>
    %149 = arith.mulf %133, %141 : vector<8x32xf32>
    %150 = arith.addf %148, %149 : vector<8x32xf32>
    %151 = math.tanh %150 : vector<8x32xf32>
    %152 = arith.mulf %147, %151 : vector<8x32xf32>
    %c0_63 = arith.constant 0 : index
    %c0_64 = arith.constant 0 : index
    %153 = vector.load %arg9[%c0_63, %c0_64] : memref<8x32xf32, #tpu.memory_space<vmem>>, vector<8x32xf32>
    tpu.vector_store %arg9[%c0_63, %c0_64], %152 {strides = array<i32>} : memref<8x32xf32, #tpu.memory_space<vmem>>, vector<8x32xf32>,
    %c0_65 = arith.constant 0 : index
    %c0_66 = arith.constant 0 : index
    %154 = vector.load %arg10[%c0_65, %c0_66] : memref<8x32xf32, #tpu.memory_space<vmem>>, vector<8x32xf32>
    tpu.vector_store %arg10[%c0_65, %c0_66], %150 {strides = array<i32>} : memref<8x32xf32, #tpu.memory_space<vmem>>, vector<8x32xf32>,
    %155 = arith.index_cast %120 : i32 to index
    %c0_67 = arith.constant 0 : index
    %c0_68 = arith.constant 0 : index
    %156 = vector.load %arg6[%155, %c0_67, %c0_68] : memref<8x8x32xf32, #tpu.memory_space<vmem>>, vector<1x8x32xf32>
    %157 = vector.shape_cast %156 : vector<1x8x32xf32> to vector<8x32xf32>
    %158 = vector.shape_cast %152 : vector<8x32xf32> to vector<1x8x32xf32>
    tpu.vector_store %arg6[%155, %c0_67, %c0_68], %158 {strides = array<i32>} : memref<8x8x32xf32, #tpu.memory_space<vmem>>, vector<1x8x32xf32>,
    %c2_i32 = arith.constant 2 : i32
    %159 = arith.index_cast %c2_i32 : i32 to index
    %c0_69 = arith.constant 0 : index
    %c0_70 = arith.constant 0 : index
    %160 = vector.load %arg1[%159, %c0_69, %c0_70] : memref<8x8x128xf32, #tpu.memory_space<vmem>>, vector<1x8x128xf32>
    %161 = vector.shape_cast %160 : vector<1x8x128xf32> to vector<8x128xf32>
    %c0_71 = arith.constant 0 : index
    %c0_72 = arith.constant 0 : index
    %162 = vector.load %arg7[%c0_71, %c0_72] : memref<8x32xf32, #tpu.memory_space<vmem>>, vector<8x32xf32>
    %c0_73 = arith.constant 0 : index
    %c0_74 = arith.constant 0 : index
    %163 = vector.load %arg8[%c0_73, %c0_74] : memref<8x32xf32, #tpu.memory_space<vmem>>, vector<8x32xf32>
    %cst_75 = arith.constant dense<0.000000e+00> : vector<8x128xf32>
    %164 = tpu.matmul %162, %3, %cst_75 {dimension_numbers = #tpu.dot_dimension_numbers<[1], [0], [0], [1], [0, 0, 1, 1], [], []>} : vector<8x32xf32>, vector<32x128xf32>, vector<8x128xf32> -> vector<8x128xf32>
    %165 = arith.addf %161, %164 : vector<8x128xf32>
    %166 = vector.extract_strided_slice %165 {offsets = [0, 0], sizes = [8, 32], strides = [1, 1]} : vector<8x128xf32> to vector<8x32xf32>
    %167 = arith.negf %166 : vector<8x32xf32>
    %168 = math.exp %167 : vector<8x32xf32>
    %cst_76 = arith.constant 1.000000e+00 : f32
    %169 = vector.broadcast %cst_76 : f32 to vector<8x32xf32>
    %170 = arith.addf %169, %168 : vector<8x32xf32>
    %171 = arith.divf %169, %170 : vector<8x32xf32>
    %172 = vector.extract_strided_slice %165 {offsets = [0, 32], sizes = [8, 32], strides = [1, 1]} : vector<8x128xf32> to vector<8x32xf32>
    %173 = arith.negf %172 : vector<8x32xf32>
    %174 = math.exp %173 : vector<8x32xf32>
    %cst_77 = arith.constant 1.000000e+00 : f32
    %175 = vector.broadcast %cst_77 : f32 to vector<8x32xf32>
    %176 = arith.addf %175, %174 : vector<8x32xf32>
    %177 = arith.divf %175, %176 : vector<8x32xf32>
    %178 = vector.extract_strided_slice %165 {offsets = [0, 64], sizes = [8, 32], strides = [1, 1]} : vector<8x128xf32> to vector<8x32xf32>
    %179 = math.tanh %178 : vector<8x32xf32>
    %180 = vector.extract_strided_slice %165 {offsets = [0, 96], sizes = [8, 32], strides = [1, 1]} : vector<8x128xf32> to vector<8x32xf32>
    %181 = arith.negf %180 : vector<8x32xf32>
    %182 = math.exp %181 : vector<8x32xf32>
    %cst_78 = arith.constant 1.000000e+00 : f32
    %183 = vector.broadcast %cst_78 : f32 to vector<8x32xf32>
    %184 = arith.addf %183, %182 : vector<8x32xf32>
    %185 = arith.divf %183, %184 : vector<8x32xf32>
    %186 = arith.mulf %177, %163 : vector<8x32xf32>
    %187 = arith.mulf %171, %179 : vector<8x32xf32>
    %188 = arith.addf %186, %187 : vector<8x32xf32>
    %189 = math.tanh %188 : vector<8x32xf32>
    %190 = arith.mulf %185, %189 : vector<8x32xf32>
    %c0_79 = arith.constant 0 : index
    %c0_80 = arith.constant 0 : index
    %191 = vector.load %arg7[%c0_79, %c0_80] : memref<8x32xf32, #tpu.memory_space<vmem>>, vector<8x32xf32>
    tpu.vector_store %arg7[%c0_79, %c0_80], %190 {strides = array<i32>} : memref<8x32xf32, #tpu.memory_space<vmem>>, vector<8x32xf32>,
    %c0_81 = arith.constant 0 : index
    %c0_82 = arith.constant 0 : index
    %192 = vector.load %arg8[%c0_81, %c0_82] : memref<8x32xf32, #tpu.memory_space<vmem>>, vector<8x32xf32>
    tpu.vector_store %arg8[%c0_81, %c0_82], %188 {strides = array<i32>} : memref<8x32xf32, #tpu.memory_space<vmem>>, vector<8x32xf32>,
    %193 = arith.index_cast %c2_i32 : i32 to index
    %c0_83 = arith.constant 0 : index
    %c0_84 = arith.constant 0 : index
    %194 = vector.load %arg5[%193, %c0_83, %c0_84] : memref<8x8x32xf32, #tpu.memory_space<vmem>>, vector<1x8x32xf32>
    %195 = vector.shape_cast %194 : vector<1x8x32xf32> to vector<8x32xf32>
    %196 = vector.shape_cast %190 : vector<8x32xf32> to vector<1x8x32xf32>
    tpu.vector_store %arg5[%193, %c0_83, %c0_84], %196 {strides = array<i32>} : memref<8x8x32xf32, #tpu.memory_space<vmem>>, vector<1x8x32xf32>,
    %c7_i32_85 = arith.constant 7 : i32
    %197 = arith.subi %c7_i32_85, %c2_i32 : i32
    %198 = arith.index_cast %197 : i32 to index
    %c0_86 = arith.constant 0 : index
    %c0_87 = arith.constant 0 : index
    %199 = vector.load %arg2[%198, %c0_86, %c0_87] : memref<8x8x128xf32, #tpu.memory_space<vmem>>, vector<1x8x128xf32>
    %200 = vector.shape_cast %199 : vector<1x8x128xf32> to vector<8x128xf32>
    %c0_88 = arith.constant 0 : index
    %c0_89 = arith.constant 0 : index
    %201 = vector.load %arg9[%c0_88, %c0_89] : memref<8x32xf32, #tpu.memory_space<vmem>>, vector<8x32xf32>
    %c0_90 = arith.constant 0 : index
    %c0_91 = arith.constant 0 : index
    %202 = vector.load %arg10[%c0_90, %c0_91] : memref<8x32xf32, #tpu.memory_space<vmem>>, vector<8x32xf32>
    %cst_92 = arith.constant dense<0.000000e+00> : vector<8x128xf32>
    %203 = tpu.matmul %201, %4, %cst_92 {dimension_numbers = #tpu.dot_dimension_numbers<[1], [0], [0], [1], [0, 0, 1, 1], [], []>} : vector<8x32xf32>, vector<32x128xf32>, vector<8x128xf32> -> vector<8x128xf32>
    %204 = arith.addf %200, %203 : vector<8x128xf32>
    %205 = vector.extract_strided_slice %204 {offsets = [0, 0], sizes = [8, 32], strides = [1, 1]} : vector<8x128xf32> to vector<8x32xf32>
    %206 = arith.negf %205 : vector<8x32xf32>
    %207 = math.exp %206 : vector<8x32xf32>
    %cst_93 = arith.constant 1.000000e+00 : f32
    %208 = vector.broadcast %cst_93 : f32 to vector<8x32xf32>
    %209 = arith.addf %208, %207 : vector<8x32xf32>
    %210 = arith.divf %208, %209 : vector<8x32xf32>
    %211 = vector.extract_strided_slice %204 {offsets = [0, 32], sizes = [8, 32], strides = [1, 1]} : vector<8x128xf32> to vector<8x32xf32>
    %212 = arith.negf %211 : vector<8x32xf32>
    %213 = math.exp %212 : vector<8x32xf32>
    %cst_94 = arith.constant 1.000000e+00 : f32
    %214 = vector.broadcast %cst_94 : f32 to vector<8x32xf32>
    %215 = arith.addf %214, %213 : vector<8x32xf32>
    %216 = arith.divf %214, %215 : vector<8x32xf32>
    %217 = vector.extract_strided_slice %204 {offsets = [0, 64], sizes = [8, 32], strides = [1, 1]} : vector<8x128xf32> to vector<8x32xf32>
    %218 = math.tanh %217 : vector<8x32xf32>
    %219 = vector.extract_strided_slice %204 {offsets = [0, 96], sizes = [8, 32], strides = [1, 1]} : vector<8x128xf32> to vector<8x32xf32>
    %220 = arith.negf %219 : vector<8x32xf32>
    %221 = math.exp %220 : vector<8x32xf32>
    %cst_95 = arith.constant 1.000000e+00 : f32
    %222 = vector.broadcast %cst_95 : f32 to vector<8x32xf32>
    %223 = arith.addf %222, %221 : vector<8x32xf32>
    %224 = arith.divf %222, %223 : vector<8x32xf32>
    %225 = arith.mulf %216, %202 : vector<8x32xf32>
    %226 = arith.mulf %210, %218 : vector<8x32xf32>
    %227 = arith.addf %225, %226 : vector<8x32xf32>
    %228 = math.tanh %227 : vector<8x32xf32>
    %229 = arith.mulf %224, %228 : vector<8x32xf32>
    %c0_96 = arith.constant 0 : index
    %c0_97 = arith.constant 0 : index
    %230 = vector.load %arg9[%c0_96, %c0_97] : memref<8x32xf32, #tpu.memory_space<vmem>>, vector<8x32xf32>
    tpu.vector_store %arg9[%c0_96, %c0_97], %229 {strides = array<i32>} : memref<8x32xf32, #tpu.memory_space<vmem>>, vector<8x32xf32>,
    %c0_98 = arith.constant 0 : index
    %c0_99 = arith.constant 0 : index
    %231 = vector.load %arg10[%c0_98, %c0_99] : memref<8x32xf32, #tpu.memory_space<vmem>>, vector<8x32xf32>
    tpu.vector_store %arg10[%c0_98, %c0_99], %227 {strides = array<i32>} : memref<8x32xf32, #tpu.memory_space<vmem>>, vector<8x32xf32>,
    %232 = arith.index_cast %197 : i32 to index
    %c0_100 = arith.constant 0 : index
    %c0_101 = arith.constant 0 : index
    %233 = vector.load %arg6[%232, %c0_100, %c0_101] : memref<8x8x32xf32, #tpu.memory_space<vmem>>, vector<1x8x32xf32>
    %234 = vector.shape_cast %233 : vector<1x8x32xf32> to vector<8x32xf32>
    %235 = vector.shape_cast %229 : vector<8x32xf32> to vector<1x8x32xf32>
    tpu.vector_store %arg6[%232, %c0_100, %c0_101], %235 {strides = array<i32>} : memref<8x8x32xf32, #tpu.memory_space<vmem>>, vector<1x8x32xf32>,
    %c3_i32 = arith.constant 3 : i32
    %236 = arith.index_cast %c3_i32 : i32 to index
    %c0_102 = arith.constant 0 : index
    %c0_103 = arith.constant 0 : index
    %237 = vector.load %arg1[%236, %c0_102, %c0_103] : memref<8x8x128xf32, #tpu.memory_space<vmem>>, vector<1x8x128xf32>
    %238 = vector.shape_cast %237 : vector<1x8x128xf32> to vector<8x128xf32>
    %c0_104 = arith.constant 0 : index
    %c0_105 = arith.constant 0 : index
    %239 = vector.load %arg7[%c0_104, %c0_105] : memref<8x32xf32, #tpu.memory_space<vmem>>, vector<8x32xf32>
    %c0_106 = arith.constant 0 : index
    %c0_107 = arith.constant 0 : index
    %240 = vector.load %arg8[%c0_106, %c0_107] : memref<8x32xf32, #tpu.memory_space<vmem>>, vector<8x32xf32>
    %cst_108 = arith.constant dense<0.000000e+00> : vector<8x128xf32>
    %241 = tpu.matmul %239, %3, %cst_108 {dimension_numbers = #tpu.dot_dimension_numbers<[1], [0], [0], [1], [0, 0, 1, 1], [], []>} : vector<8x32xf32>, vector<32x128xf32>, vector<8x128xf32> -> vector<8x128xf32>
    %242 = arith.addf %238, %241 : vector<8x128xf32>
    %243 = vector.extract_strided_slice %242 {offsets = [0, 0], sizes = [8, 32], strides = [1, 1]} : vector<8x128xf32> to vector<8x32xf32>
    %244 = arith.negf %243 : vector<8x32xf32>
    %245 = math.exp %244 : vector<8x32xf32>
    %cst_109 = arith.constant 1.000000e+00 : f32
    %246 = vector.broadcast %cst_109 : f32 to vector<8x32xf32>
    %247 = arith.addf %246, %245 : vector<8x32xf32>
    %248 = arith.divf %246, %247 : vector<8x32xf32>
    %249 = vector.extract_strided_slice %242 {offsets = [0, 32], sizes = [8, 32], strides = [1, 1]} : vector<8x128xf32> to vector<8x32xf32>
    %250 = arith.negf %249 : vector<8x32xf32>
    %251 = math.exp %250 : vector<8x32xf32>
    %cst_110 = arith.constant 1.000000e+00 : f32
    %252 = vector.broadcast %cst_110 : f32 to vector<8x32xf32>
    %253 = arith.addf %252, %251 : vector<8x32xf32>
    %254 = arith.divf %252, %253 : vector<8x32xf32>
    %255 = vector.extract_strided_slice %242 {offsets = [0, 64], sizes = [8, 32], strides = [1, 1]} : vector<8x128xf32> to vector<8x32xf32>
    %256 = math.tanh %255 : vector<8x32xf32>
    %257 = vector.extract_strided_slice %242 {offsets = [0, 96], sizes = [8, 32], strides = [1, 1]} : vector<8x128xf32> to vector<8x32xf32>
    %258 = arith.negf %257 : vector<8x32xf32>
    %259 = math.exp %258 : vector<8x32xf32>
    %cst_111 = arith.constant 1.000000e+00 : f32
    %260 = vector.broadcast %cst_111 : f32 to vector<8x32xf32>
    %261 = arith.addf %260, %259 : vector<8x32xf32>
    %262 = arith.divf %260, %261 : vector<8x32xf32>
    %263 = arith.mulf %254, %240 : vector<8x32xf32>
    %264 = arith.mulf %248, %256 : vector<8x32xf32>
    %265 = arith.addf %263, %264 : vector<8x32xf32>
    %266 = math.tanh %265 : vector<8x32xf32>
    %267 = arith.mulf %262, %266 : vector<8x32xf32>
    %c0_112 = arith.constant 0 : index
    %c0_113 = arith.constant 0 : index
    %268 = vector.load %arg7[%c0_112, %c0_113] : memref<8x32xf32, #tpu.memory_space<vmem>>, vector<8x32xf32>
    tpu.vector_store %arg7[%c0_112, %c0_113], %267 {strides = array<i32>} : memref<8x32xf32, #tpu.memory_space<vmem>>, vector<8x32xf32>,
    %c0_114 = arith.constant 0 : index
    %c0_115 = arith.constant 0 : index
    %269 = vector.load %arg8[%c0_114, %c0_115] : memref<8x32xf32, #tpu.memory_space<vmem>>, vector<8x32xf32>
    tpu.vector_store %arg8[%c0_114, %c0_115], %265 {strides = array<i32>} : memref<8x32xf32, #tpu.memory_space<vmem>>, vector<8x32xf32>,
    %270 = arith.index_cast %c3_i32 : i32 to index
    %c0_116 = arith.constant 0 : index
    %c0_117 = arith.constant 0 : index
    %271 = vector.load %arg5[%270, %c0_116, %c0_117] : memref<8x8x32xf32, #tpu.memory_space<vmem>>, vector<1x8x32xf32>
    %272 = vector.shape_cast %271 : vector<1x8x32xf32> to vector<8x32xf32>
    %273 = vector.shape_cast %267 : vector<8x32xf32> to vector<1x8x32xf32>
    tpu.vector_store %arg5[%270, %c0_116, %c0_117], %273 {strides = array<i32>} : memref<8x8x32xf32, #tpu.memory_space<vmem>>, vector<1x8x32xf32>,
    %c7_i32_118 = arith.constant 7 : i32
    %274 = arith.subi %c7_i32_118, %c3_i32 : i32
    %275 = arith.index_cast %274 : i32 to index
    %c0_119 = arith.constant 0 : index
    %c0_120 = arith.constant 0 : index
    %276 = vector.load %arg2[%275, %c0_119, %c0_120] : memref<8x8x128xf32, #tpu.memory_space<vmem>>, vector<1x8x128xf32>
    %277 = vector.shape_cast %276 : vector<1x8x128xf32> to vector<8x128xf32>
    %c0_121 = arith.constant 0 : index
    %c0_122 = arith.constant 0 : index
    %278 = vector.load %arg9[%c0_121, %c0_122] : memref<8x32xf32, #tpu.memory_space<vmem>>, vector<8x32xf32>
    %c0_123 = arith.constant 0 : index
    %c0_124 = arith.constant 0 : index
    %279 = vector.load %arg10[%c0_123, %c0_124] : memref<8x32xf32, #tpu.memory_space<vmem>>, vector<8x32xf32>
    %cst_125 = arith.constant dense<0.000000e+00> : vector<8x128xf32>
    %280 = tpu.matmul %278, %4, %cst_125 {dimension_numbers = #tpu.dot_dimension_numbers<[1], [0], [0], [1], [0, 0, 1, 1], [], []>} : vector<8x32xf32>, vector<32x128xf32>, vector<8x128xf32> -> vector<8x128xf32>
    %281 = arith.addf %277, %280 : vector<8x128xf32>
    %282 = vector.extract_strided_slice %281 {offsets = [0, 0], sizes = [8, 32], strides = [1, 1]} : vector<8x128xf32> to vector<8x32xf32>
    %283 = arith.negf %282 : vector<8x32xf32>
    %284 = math.exp %283 : vector<8x32xf32>
    %cst_126 = arith.constant 1.000000e+00 : f32
    %285 = vector.broadcast %cst_126 : f32 to vector<8x32xf32>
    %286 = arith.addf %285, %284 : vector<8x32xf32>
    %287 = arith.divf %285, %286 : vector<8x32xf32>
    %288 = vector.extract_strided_slice %281 {offsets = [0, 32], sizes = [8, 32], strides = [1, 1]} : vector<8x128xf32> to vector<8x32xf32>
    %289 = arith.negf %288 : vector<8x32xf32>
    %290 = math.exp %289 : vector<8x32xf32>
    %cst_127 = arith.constant 1.000000e+00 : f32
    %291 = vector.broadcast %cst_127 : f32 to vector<8x32xf32>
    %292 = arith.addf %291, %290 : vector<8x32xf32>
    %293 = arith.divf %291, %292 : vector<8x32xf32>
    %294 = vector.extract_strided_slice %281 {offsets = [0, 64], sizes = [8, 32], strides = [1, 1]} : vector<8x128xf32> to vector<8x32xf32>
    %295 = math.tanh %294 : vector<8x32xf32>
    %296 = vector.extract_strided_slice %281 {offsets = [0, 96], sizes = [8, 32], strides = [1, 1]} : vector<8x128xf32> to vector<8x32xf32>
    %297 = arith.negf %296 : vector<8x32xf32>
    %298 = math.exp %297 : vector<8x32xf32>
    %cst_128 = arith.constant 1.000000e+00 : f32
    %299 = vector.broadcast %cst_128 : f32 to vector<8x32xf32>
    %300 = arith.addf %299, %298 : vector<8x32xf32>
    %301 = arith.divf %299, %300 : vector<8x32xf32>
    %302 = arith.mulf %293, %279 : vector<8x32xf32>
    %303 = arith.mulf %287, %295 : vector<8x32xf32>
    %304 = arith.addf %302, %303 : vector<8x32xf32>
    %305 = math.tanh %304 : vector<8x32xf32>
    %306 = arith.mulf %301, %305 : vector<8x32xf32>
    %c0_129 = arith.constant 0 : index
    %c0_130 = arith.constant 0 : index
    %307 = vector.load %arg9[%c0_129, %c0_130] : memref<8x32xf32, #tpu.memory_space<vmem>>, vector<8x32xf32>
    tpu.vector_store %arg9[%c0_129, %c0_130], %306 {strides = array<i32>} : memref<8x32xf32, #tpu.memory_space<vmem>>, vector<8x32xf32>,
    %c0_131 = arith.constant 0 : index
    %c0_132 = arith.constant 0 : index
    %308 = vector.load %arg10[%c0_131, %c0_132] : memref<8x32xf32, #tpu.memory_space<vmem>>, vector<8x32xf32>
    tpu.vector_store %arg10[%c0_131, %c0_132], %304 {strides = array<i32>} : memref<8x32xf32, #tpu.memory_space<vmem>>, vector<8x32xf32>,
    %309 = arith.index_cast %274 : i32 to index
    %c0_133 = arith.constant 0 : index
    %c0_134 = arith.constant 0 : index
    %310 = vector.load %arg6[%309, %c0_133, %c0_134] : memref<8x8x32xf32, #tpu.memory_space<vmem>>, vector<1x8x32xf32>
    %311 = vector.shape_cast %310 : vector<1x8x32xf32> to vector<8x32xf32>
    %312 = vector.shape_cast %306 : vector<8x32xf32> to vector<1x8x32xf32>
    tpu.vector_store %arg6[%309, %c0_133, %c0_134], %312 {strides = array<i32>} : memref<8x8x32xf32, #tpu.memory_space<vmem>>, vector<1x8x32xf32>,
    %c4_i32 = arith.constant 4 : i32
    %313 = arith.index_cast %c4_i32 : i32 to index
    %c0_135 = arith.constant 0 : index
    %c0_136 = arith.constant 0 : index
    %314 = vector.load %arg1[%313, %c0_135, %c0_136] : memref<8x8x128xf32, #tpu.memory_space<vmem>>, vector<1x8x128xf32>
    %315 = vector.shape_cast %314 : vector<1x8x128xf32> to vector<8x128xf32>
    %c0_137 = arith.constant 0 : index
    %c0_138 = arith.constant 0 : index
    %316 = vector.load %arg7[%c0_137, %c0_138] : memref<8x32xf32, #tpu.memory_space<vmem>>, vector<8x32xf32>
    %c0_139 = arith.constant 0 : index
    %c0_140 = arith.constant 0 : index
    %317 = vector.load %arg8[%c0_139, %c0_140] : memref<8x32xf32, #tpu.memory_space<vmem>>, vector<8x32xf32>
    %cst_141 = arith.constant dense<0.000000e+00> : vector<8x128xf32>
    %318 = tpu.matmul %316, %3, %cst_141 {dimension_numbers = #tpu.dot_dimension_numbers<[1], [0], [0], [1], [0, 0, 1, 1], [], []>} : vector<8x32xf32>, vector<32x128xf32>, vector<8x128xf32> -> vector<8x128xf32>
    %319 = arith.addf %315, %318 : vector<8x128xf32>
    %320 = vector.extract_strided_slice %319 {offsets = [0, 0], sizes = [8, 32], strides = [1, 1]} : vector<8x128xf32> to vector<8x32xf32>
    %321 = arith.negf %320 : vector<8x32xf32>
    %322 = math.exp %321 : vector<8x32xf32>
    %cst_142 = arith.constant 1.000000e+00 : f32
    %323 = vector.broadcast %cst_142 : f32 to vector<8x32xf32>
    %324 = arith.addf %323, %322 : vector<8x32xf32>
    %325 = arith.divf %323, %324 : vector<8x32xf32>
    %326 = vector.extract_strided_slice %319 {offsets = [0, 32], sizes = [8, 32], strides = [1, 1]} : vector<8x128xf32> to vector<8x32xf32>
    %327 = arith.negf %326 : vector<8x32xf32>
    %328 = math.exp %327 : vector<8x32xf32>
    %cst_143 = arith.constant 1.000000e+00 : f32
    %329 = vector.broadcast %cst_143 : f32 to vector<8x32xf32>
    %330 = arith.addf %329, %328 : vector<8x32xf32>
    %331 = arith.divf %329, %330 : vector<8x32xf32>
    %332 = vector.extract_strided_slice %319 {offsets = [0, 64], sizes = [8, 32], strides = [1, 1]} : vector<8x128xf32> to vector<8x32xf32>
    %333 = math.tanh %332 : vector<8x32xf32>
    %334 = vector.extract_strided_slice %319 {offsets = [0, 96], sizes = [8, 32], strides = [1, 1]} : vector<8x128xf32> to vector<8x32xf32>
    %335 = arith.negf %334 : vector<8x32xf32>
    %336 = math.exp %335 : vector<8x32xf32>
    %cst_144 = arith.constant 1.000000e+00 : f32
    %337 = vector.broadcast %cst_144 : f32 to vector<8x32xf32>
    %338 = arith.addf %337, %336 : vector<8x32xf32>
    %339 = arith.divf %337, %338 : vector<8x32xf32>
    %340 = arith.mulf %331, %317 : vector<8x32xf32>
    %341 = arith.mulf %325, %333 : vector<8x32xf32>
    %342 = arith.addf %340, %341 : vector<8x32xf32>
    %343 = math.tanh %342 : vector<8x32xf32>
    %344 = arith.mulf %339, %343 : vector<8x32xf32>
    %c0_145 = arith.constant 0 : index
    %c0_146 = arith.constant 0 : index
    %345 = vector.load %arg7[%c0_145, %c0_146] : memref<8x32xf32, #tpu.memory_space<vmem>>, vector<8x32xf32>
    tpu.vector_store %arg7[%c0_145, %c0_146], %344 {strides = array<i32>} : memref<8x32xf32, #tpu.memory_space<vmem>>, vector<8x32xf32>,
    %c0_147 = arith.constant 0 : index
    %c0_148 = arith.constant 0 : index
    %346 = vector.load %arg8[%c0_147, %c0_148] : memref<8x32xf32, #tpu.memory_space<vmem>>, vector<8x32xf32>
    tpu.vector_store %arg8[%c0_147, %c0_148], %342 {strides = array<i32>} : memref<8x32xf32, #tpu.memory_space<vmem>>, vector<8x32xf32>,
    %347 = arith.index_cast %c4_i32 : i32 to index
    %c0_149 = arith.constant 0 : index
    %c0_150 = arith.constant 0 : index
    %348 = vector.load %arg5[%347, %c0_149, %c0_150] : memref<8x8x32xf32, #tpu.memory_space<vmem>>, vector<1x8x32xf32>
    %349 = vector.shape_cast %348 : vector<1x8x32xf32> to vector<8x32xf32>
    %350 = vector.shape_cast %344 : vector<8x32xf32> to vector<1x8x32xf32>
    tpu.vector_store %arg5[%347, %c0_149, %c0_150], %350 {strides = array<i32>} : memref<8x8x32xf32, #tpu.memory_space<vmem>>, vector<1x8x32xf32>,
    %c7_i32_151 = arith.constant 7 : i32
    %351 = arith.subi %c7_i32_151, %c4_i32 : i32
    %352 = arith.index_cast %351 : i32 to index
    %c0_152 = arith.constant 0 : index
    %c0_153 = arith.constant 0 : index
    %353 = vector.load %arg2[%352, %c0_152, %c0_153] : memref<8x8x128xf32, #tpu.memory_space<vmem>>, vector<1x8x128xf32>
    %354 = vector.shape_cast %353 : vector<1x8x128xf32> to vector<8x128xf32>
    %c0_154 = arith.constant 0 : index
    %c0_155 = arith.constant 0 : index
    %355 = vector.load %arg9[%c0_154, %c0_155] : memref<8x32xf32, #tpu.memory_space<vmem>>, vector<8x32xf32>
    %c0_156 = arith.constant 0 : index
    %c0_157 = arith.constant 0 : index
    %356 = vector.load %arg10[%c0_156, %c0_157] : memref<8x32xf32, #tpu.memory_space<vmem>>, vector<8x32xf32>
    %cst_158 = arith.constant dense<0.000000e+00> : vector<8x128xf32>
    %357 = tpu.matmul %355, %4, %cst_158 {dimension_numbers = #tpu.dot_dimension_numbers<[1], [0], [0], [1], [0, 0, 1, 1], [], []>} : vector<8x32xf32>, vector<32x128xf32>, vector<8x128xf32> -> vector<8x128xf32>
    %358 = arith.addf %354, %357 : vector<8x128xf32>
    %359 = vector.extract_strided_slice %358 {offsets = [0, 0], sizes = [8, 32], strides = [1, 1]} : vector<8x128xf32> to vector<8x32xf32>
    %360 = arith.negf %359 : vector<8x32xf32>
    %361 = math.exp %360 : vector<8x32xf32>
    %cst_159 = arith.constant 1.000000e+00 : f32
    %362 = vector.broadcast %cst_159 : f32 to vector<8x32xf32>
    %363 = arith.addf %362, %361 : vector<8x32xf32>
    %364 = arith.divf %362, %363 : vector<8x32xf32>
    %365 = vector.extract_strided_slice %358 {offsets = [0, 32], sizes = [8, 32], strides = [1, 1]} : vector<8x128xf32> to vector<8x32xf32>
    %366 = arith.negf %365 : vector<8x32xf32>
    %367 = math.exp %366 : vector<8x32xf32>
    %cst_160 = arith.constant 1.000000e+00 : f32
    %368 = vector.broadcast %cst_160 : f32 to vector<8x32xf32>
    %369 = arith.addf %368, %367 : vector<8x32xf32>
    %370 = arith.divf %368, %369 : vector<8x32xf32>
    %371 = vector.extract_strided_slice %358 {offsets = [0, 64], sizes = [8, 32], strides = [1, 1]} : vector<8x128xf32> to vector<8x32xf32>
    %372 = math.tanh %371 : vector<8x32xf32>
    %373 = vector.extract_strided_slice %358 {offsets = [0, 96], sizes = [8, 32], strides = [1, 1]} : vector<8x128xf32> to vector<8x32xf32>
    %374 = arith.negf %373 : vector<8x32xf32>
    %375 = math.exp %374 : vector<8x32xf32>
    %cst_161 = arith.constant 1.000000e+00 : f32
    %376 = vector.broadcast %cst_161 : f32 to vector<8x32xf32>
    %377 = arith.addf %376, %375 : vector<8x32xf32>
    %378 = arith.divf %376, %377 : vector<8x32xf32>
    %379 = arith.mulf %370, %356 : vector<8x32xf32>
    %380 = arith.mulf %364, %372 : vector<8x32xf32>
    %381 = arith.addf %379, %380 : vector<8x32xf32>
    %382 = math.tanh %381 : vector<8x32xf32>
    %383 = arith.mulf %378, %382 : vector<8x32xf32>
    %c0_162 = arith.constant 0 : index
    %c0_163 = arith.constant 0 : index
    %384 = vector.load %arg9[%c0_162, %c0_163] : memref<8x32xf32, #tpu.memory_space<vmem>>, vector<8x32xf32>
    tpu.vector_store %arg9[%c0_162, %c0_163], %383 {strides = array<i32>} : memref<8x32xf32, #tpu.memory_space<vmem>>, vector<8x32xf32>,
    %c0_164 = arith.constant 0 : index
    %c0_165 = arith.constant 0 : index
    %385 = vector.load %arg10[%c0_164, %c0_165] : memref<8x32xf32, #tpu.memory_space<vmem>>, vector<8x32xf32>
    tpu.vector_store %arg10[%c0_164, %c0_165], %381 {strides = array<i32>} : memref<8x32xf32, #tpu.memory_space<vmem>>, vector<8x32xf32>,
    %386 = arith.index_cast %351 : i32 to index
    %c0_166 = arith.constant 0 : index
    %c0_167 = arith.constant 0 : index
    %387 = vector.load %arg6[%386, %c0_166, %c0_167] : memref<8x8x32xf32, #tpu.memory_space<vmem>>, vector<1x8x32xf32>
    %388 = vector.shape_cast %387 : vector<1x8x32xf32> to vector<8x32xf32>
    %389 = vector.shape_cast %383 : vector<8x32xf32> to vector<1x8x32xf32>
    tpu.vector_store %arg6[%386, %c0_166, %c0_167], %389 {strides = array<i32>} : memref<8x8x32xf32, #tpu.memory_space<vmem>>, vector<1x8x32xf32>,
    %c5_i32 = arith.constant 5 : i32
    %390 = arith.index_cast %c5_i32 : i32 to index
    %c0_168 = arith.constant 0 : index
    %c0_169 = arith.constant 0 : index
    %391 = vector.load %arg1[%390, %c0_168, %c0_169] : memref<8x8x128xf32, #tpu.memory_space<vmem>>, vector<1x8x128xf32>
    %392 = vector.shape_cast %391 : vector<1x8x128xf32> to vector<8x128xf32>
    %c0_170 = arith.constant 0 : index
    %c0_171 = arith.constant 0 : index
    %393 = vector.load %arg7[%c0_170, %c0_171] : memref<8x32xf32, #tpu.memory_space<vmem>>, vector<8x32xf32>
    %c0_172 = arith.constant 0 : index
    %c0_173 = arith.constant 0 : index
    %394 = vector.load %arg8[%c0_172, %c0_173] : memref<8x32xf32, #tpu.memory_space<vmem>>, vector<8x32xf32>
    %cst_174 = arith.constant dense<0.000000e+00> : vector<8x128xf32>
    %395 = tpu.matmul %393, %3, %cst_174 {dimension_numbers = #tpu.dot_dimension_numbers<[1], [0], [0], [1], [0, 0, 1, 1], [], []>} : vector<8x32xf32>, vector<32x128xf32>, vector<8x128xf32> -> vector<8x128xf32>
    %396 = arith.addf %392, %395 : vector<8x128xf32>
    %397 = vector.extract_strided_slice %396 {offsets = [0, 0], sizes = [8, 32], strides = [1, 1]} : vector<8x128xf32> to vector<8x32xf32>
    %398 = arith.negf %397 : vector<8x32xf32>
    %399 = math.exp %398 : vector<8x32xf32>
    %cst_175 = arith.constant 1.000000e+00 : f32
    %400 = vector.broadcast %cst_175 : f32 to vector<8x32xf32>
    %401 = arith.addf %400, %399 : vector<8x32xf32>
    %402 = arith.divf %400, %401 : vector<8x32xf32>
    %403 = vector.extract_strided_slice %396 {offsets = [0, 32], sizes = [8, 32], strides = [1, 1]} : vector<8x128xf32> to vector<8x32xf32>
    %404 = arith.negf %403 : vector<8x32xf32>
    %405 = math.exp %404 : vector<8x32xf32>
    %cst_176 = arith.constant 1.000000e+00 : f32
    %406 = vector.broadcast %cst_176 : f32 to vector<8x32xf32>
    %407 = arith.addf %406, %405 : vector<8x32xf32>
    %408 = arith.divf %406, %407 : vector<8x32xf32>
    %409 = vector.extract_strided_slice %396 {offsets = [0, 64], sizes = [8, 32], strides = [1, 1]} : vector<8x128xf32> to vector<8x32xf32>
    %410 = math.tanh %409 : vector<8x32xf32>
    %411 = vector.extract_strided_slice %396 {offsets = [0, 96], sizes = [8, 32], strides = [1, 1]} : vector<8x128xf32> to vector<8x32xf32>
    %412 = arith.negf %411 : vector<8x32xf32>
    %413 = math.exp %412 : vector<8x32xf32>
    %cst_177 = arith.constant 1.000000e+00 : f32
    %414 = vector.broadcast %cst_177 : f32 to vector<8x32xf32>
    %415 = arith.addf %414, %413 : vector<8x32xf32>
    %416 = arith.divf %414, %415 : vector<8x32xf32>
    %417 = arith.mulf %408, %394 : vector<8x32xf32>
    %418 = arith.mulf %402, %410 : vector<8x32xf32>
    %419 = arith.addf %417, %418 : vector<8x32xf32>
    %420 = math.tanh %419 : vector<8x32xf32>
    %421 = arith.mulf %416, %420 : vector<8x32xf32>
    %c0_178 = arith.constant 0 : index
    %c0_179 = arith.constant 0 : index
    %422 = vector.load %arg7[%c0_178, %c0_179] : memref<8x32xf32, #tpu.memory_space<vmem>>, vector<8x32xf32>
    tpu.vector_store %arg7[%c0_178, %c0_179], %421 {strides = array<i32>} : memref<8x32xf32, #tpu.memory_space<vmem>>, vector<8x32xf32>,
    %c0_180 = arith.constant 0 : index
    %c0_181 = arith.constant 0 : index
    %423 = vector.load %arg8[%c0_180, %c0_181] : memref<8x32xf32, #tpu.memory_space<vmem>>, vector<8x32xf32>
    tpu.vector_store %arg8[%c0_180, %c0_181], %419 {strides = array<i32>} : memref<8x32xf32, #tpu.memory_space<vmem>>, vector<8x32xf32>,
    %424 = arith.index_cast %c5_i32 : i32 to index
    %c0_182 = arith.constant 0 : index
    %c0_183 = arith.constant 0 : index
    %425 = vector.load %arg5[%424, %c0_182, %c0_183] : memref<8x8x32xf32, #tpu.memory_space<vmem>>, vector<1x8x32xf32>
    %426 = vector.shape_cast %425 : vector<1x8x32xf32> to vector<8x32xf32>
    %427 = vector.shape_cast %421 : vector<8x32xf32> to vector<1x8x32xf32>
    tpu.vector_store %arg5[%424, %c0_182, %c0_183], %427 {strides = array<i32>} : memref<8x8x32xf32, #tpu.memory_space<vmem>>, vector<1x8x32xf32>,
    %c7_i32_184 = arith.constant 7 : i32
    %428 = arith.subi %c7_i32_184, %c5_i32 : i32
    %429 = arith.index_cast %428 : i32 to index
    %c0_185 = arith.constant 0 : index
    %c0_186 = arith.constant 0 : index
    %430 = vector.load %arg2[%429, %c0_185, %c0_186] : memref<8x8x128xf32, #tpu.memory_space<vmem>>, vector<1x8x128xf32>
    %431 = vector.shape_cast %430 : vector<1x8x128xf32> to vector<8x128xf32>
    %c0_187 = arith.constant 0 : index
    %c0_188 = arith.constant 0 : index
    %432 = vector.load %arg9[%c0_187, %c0_188] : memref<8x32xf32, #tpu.memory_space<vmem>>, vector<8x32xf32>
    %c0_189 = arith.constant 0 : index
    %c0_190 = arith.constant 0 : index
    %433 = vector.load %arg10[%c0_189, %c0_190] : memref<8x32xf32, #tpu.memory_space<vmem>>, vector<8x32xf32>
    %cst_191 = arith.constant dense<0.000000e+00> : vector<8x128xf32>
    %434 = tpu.matmul %432, %4, %cst_191 {dimension_numbers = #tpu.dot_dimension_numbers<[1], [0], [0], [1], [0, 0, 1, 1], [], []>} : vector<8x32xf32>, vector<32x128xf32>, vector<8x128xf32> -> vector<8x128xf32>
    %435 = arith.addf %431, %434 : vector<8x128xf32>
    %436 = vector.extract_strided_slice %435 {offsets = [0, 0], sizes = [8, 32], strides = [1, 1]} : vector<8x128xf32> to vector<8x32xf32>
    %437 = arith.negf %436 : vector<8x32xf32>
    %438 = math.exp %437 : vector<8x32xf32>
    %cst_192 = arith.constant 1.000000e+00 : f32
    %439 = vector.broadcast %cst_192 : f32 to vector<8x32xf32>
    %440 = arith.addf %439, %438 : vector<8x32xf32>
    %441 = arith.divf %439, %440 : vector<8x32xf32>
    %442 = vector.extract_strided_slice %435 {offsets = [0, 32], sizes = [8, 32], strides = [1, 1]} : vector<8x128xf32> to vector<8x32xf32>
    %443 = arith.negf %442 : vector<8x32xf32>
    %444 = math.exp %443 : vector<8x32xf32>
    %cst_193 = arith.constant 1.000000e+00 : f32
    %445 = vector.broadcast %cst_193 : f32 to vector<8x32xf32>
    %446 = arith.addf %445, %444 : vector<8x32xf32>
    %447 = arith.divf %445, %446 : vector<8x32xf32>
    %448 = vector.extract_strided_slice %435 {offsets = [0, 64], sizes = [8, 32], strides = [1, 1]} : vector<8x128xf32> to vector<8x32xf32>
    %449 = math.tanh %448 : vector<8x32xf32>
    %450 = vector.extract_strided_slice %435 {offsets = [0, 96], sizes = [8, 32], strides = [1, 1]} : vector<8x128xf32> to vector<8x32xf32>
    %451 = arith.negf %450 : vector<8x32xf32>
    %452 = math.exp %451 : vector<8x32xf32>
    %cst_194 = arith.constant 1.000000e+00 : f32
    %453 = vector.broadcast %cst_194 : f32 to vector<8x32xf32>
    %454 = arith.addf %453, %452 : vector<8x32xf32>
    %455 = arith.divf %453, %454 : vector<8x32xf32>
    %456 = arith.mulf %447, %433 : vector<8x32xf32>
    %457 = arith.mulf %441, %449 : vector<8x32xf32>
    %458 = arith.addf %456, %457 : vector<8x32xf32>
    %459 = math.tanh %458 : vector<8x32xf32>
    %460 = arith.mulf %455, %459 : vector<8x32xf32>
    %c0_195 = arith.constant 0 : index
    %c0_196 = arith.constant 0 : index
    %461 = vector.load %arg9[%c0_195, %c0_196] : memref<8x32xf32, #tpu.memory_space<vmem>>, vector<8x32xf32>
    tpu.vector_store %arg9[%c0_195, %c0_196], %460 {strides = array<i32>} : memref<8x32xf32, #tpu.memory_space<vmem>>, vector<8x32xf32>,
    %c0_197 = arith.constant 0 : index
    %c0_198 = arith.constant 0 : index
    %462 = vector.load %arg10[%c0_197, %c0_198] : memref<8x32xf32, #tpu.memory_space<vmem>>, vector<8x32xf32>
    tpu.vector_store %arg10[%c0_197, %c0_198], %458 {strides = array<i32>} : memref<8x32xf32, #tpu.memory_space<vmem>>, vector<8x32xf32>,
    %463 = arith.index_cast %428 : i32 to index
    %c0_199 = arith.constant 0 : index
    %c0_200 = arith.constant 0 : index
    %464 = vector.load %arg6[%463, %c0_199, %c0_200] : memref<8x8x32xf32, #tpu.memory_space<vmem>>, vector<1x8x32xf32>
    %465 = vector.shape_cast %464 : vector<1x8x32xf32> to vector<8x32xf32>
    %466 = vector.shape_cast %460 : vector<8x32xf32> to vector<1x8x32xf32>
    tpu.vector_store %arg6[%463, %c0_199, %c0_200], %466 {strides = array<i32>} : memref<8x8x32xf32, #tpu.memory_space<vmem>>, vector<1x8x32xf32>,
    %c6_i32 = arith.constant 6 : i32
    %467 = arith.index_cast %c6_i32 : i32 to index
    %c0_201 = arith.constant 0 : index
    %c0_202 = arith.constant 0 : index
    %468 = vector.load %arg1[%467, %c0_201, %c0_202] : memref<8x8x128xf32, #tpu.memory_space<vmem>>, vector<1x8x128xf32>
    %469 = vector.shape_cast %468 : vector<1x8x128xf32> to vector<8x128xf32>
    %c0_203 = arith.constant 0 : index
    %c0_204 = arith.constant 0 : index
    %470 = vector.load %arg7[%c0_203, %c0_204] : memref<8x32xf32, #tpu.memory_space<vmem>>, vector<8x32xf32>
    %c0_205 = arith.constant 0 : index
    %c0_206 = arith.constant 0 : index
    %471 = vector.load %arg8[%c0_205, %c0_206] : memref<8x32xf32, #tpu.memory_space<vmem>>, vector<8x32xf32>
    %cst_207 = arith.constant dense<0.000000e+00> : vector<8x128xf32>
    %472 = tpu.matmul %470, %3, %cst_207 {dimension_numbers = #tpu.dot_dimension_numbers<[1], [0], [0], [1], [0, 0, 1, 1], [], []>} : vector<8x32xf32>, vector<32x128xf32>, vector<8x128xf32> -> vector<8x128xf32>
    %473 = arith.addf %469, %472 : vector<8x128xf32>
    %474 = vector.extract_strided_slice %473 {offsets = [0, 0], sizes = [8, 32], strides = [1, 1]} : vector<8x128xf32> to vector<8x32xf32>
    %475 = arith.negf %474 : vector<8x32xf32>
    %476 = math.exp %475 : vector<8x32xf32>
    %cst_208 = arith.constant 1.000000e+00 : f32
    %477 = vector.broadcast %cst_208 : f32 to vector<8x32xf32>
    %478 = arith.addf %477, %476 : vector<8x32xf32>
    %479 = arith.divf %477, %478 : vector<8x32xf32>
    %480 = vector.extract_strided_slice %473 {offsets = [0, 32], sizes = [8, 32], strides = [1, 1]} : vector<8x128xf32> to vector<8x32xf32>
    %481 = arith.negf %480 : vector<8x32xf32>
    %482 = math.exp %481 : vector<8x32xf32>
    %cst_209 = arith.constant 1.000000e+00 : f32
    %483 = vector.broadcast %cst_209 : f32 to vector<8x32xf32>
    %484 = arith.addf %483, %482 : vector<8x32xf32>
    %485 = arith.divf %483, %484 : vector<8x32xf32>
    %486 = vector.extract_strided_slice %473 {offsets = [0, 64], sizes = [8, 32], strides = [1, 1]} : vector<8x128xf32> to vector<8x32xf32>
    %487 = math.tanh %486 : vector<8x32xf32>
    %488 = vector.extract_strided_slice %473 {offsets = [0, 96], sizes = [8, 32], strides = [1, 1]} : vector<8x128xf32> to vector<8x32xf32>
    %489 = arith.negf %488 : vector<8x32xf32>
    %490 = math.exp %489 : vector<8x32xf32>
    %cst_210 = arith.constant 1.000000e+00 : f32
    %491 = vector.broadcast %cst_210 : f32 to vector<8x32xf32>
    %492 = arith.addf %491, %490 : vector<8x32xf32>
    %493 = arith.divf %491, %492 : vector<8x32xf32>
    %494 = arith.mulf %485, %471 : vector<8x32xf32>
    %495 = arith.mulf %479, %487 : vector<8x32xf32>
    %496 = arith.addf %494, %495 : vector<8x32xf32>
    %497 = math.tanh %496 : vector<8x32xf32>
    %498 = arith.mulf %493, %497 : vector<8x32xf32>
    %c0_211 = arith.constant 0 : index
    %c0_212 = arith.constant 0 : index
    %499 = vector.load %arg7[%c0_211, %c0_212] : memref<8x32xf32, #tpu.memory_space<vmem>>, vector<8x32xf32>
    tpu.vector_store %arg7[%c0_211, %c0_212], %498 {strides = array<i32>} : memref<8x32xf32, #tpu.memory_space<vmem>>, vector<8x32xf32>,
    %c0_213 = arith.constant 0 : index
    %c0_214 = arith.constant 0 : index
    %500 = vector.load %arg8[%c0_213, %c0_214] : memref<8x32xf32, #tpu.memory_space<vmem>>, vector<8x32xf32>
    tpu.vector_store %arg8[%c0_213, %c0_214], %496 {strides = array<i32>} : memref<8x32xf32, #tpu.memory_space<vmem>>, vector<8x32xf32>,
    %501 = arith.index_cast %c6_i32 : i32 to index
    %c0_215 = arith.constant 0 : index
    %c0_216 = arith.constant 0 : index
    %502 = vector.load %arg5[%501, %c0_215, %c0_216] : memref<8x8x32xf32, #tpu.memory_space<vmem>>, vector<1x8x32xf32>
    %503 = vector.shape_cast %502 : vector<1x8x32xf32> to vector<8x32xf32>
    %504 = vector.shape_cast %498 : vector<8x32xf32> to vector<1x8x32xf32>
    tpu.vector_store %arg5[%501, %c0_215, %c0_216], %504 {strides = array<i32>} : memref<8x8x32xf32, #tpu.memory_space<vmem>>, vector<1x8x32xf32>,
    %c7_i32_217 = arith.constant 7 : i32
    %505 = arith.subi %c7_i32_217, %c6_i32 : i32
    %506 = arith.index_cast %505 : i32 to index
    %c0_218 = arith.constant 0 : index
    %c0_219 = arith.constant 0 : index
    %507 = vector.load %arg2[%506, %c0_218, %c0_219] : memref<8x8x128xf32, #tpu.memory_space<vmem>>, vector<1x8x128xf32>
    %508 = vector.shape_cast %507 : vector<1x8x128xf32> to vector<8x128xf32>
    %c0_220 = arith.constant 0 : index
    %c0_221 = arith.constant 0 : index
    %509 = vector.load %arg9[%c0_220, %c0_221] : memref<8x32xf32, #tpu.memory_space<vmem>>, vector<8x32xf32>
    %c0_222 = arith.constant 0 : index
    %c0_223 = arith.constant 0 : index
    %510 = vector.load %arg10[%c0_222, %c0_223] : memref<8x32xf32, #tpu.memory_space<vmem>>, vector<8x32xf32>
    %cst_224 = arith.constant dense<0.000000e+00> : vector<8x128xf32>
    %511 = tpu.matmul %509, %4, %cst_224 {dimension_numbers = #tpu.dot_dimension_numbers<[1], [0], [0], [1], [0, 0, 1, 1], [], []>} : vector<8x32xf32>, vector<32x128xf32>, vector<8x128xf32> -> vector<8x128xf32>
    %512 = arith.addf %508, %511 : vector<8x128xf32>
    %513 = vector.extract_strided_slice %512 {offsets = [0, 0], sizes = [8, 32], strides = [1, 1]} : vector<8x128xf32> to vector<8x32xf32>
    %514 = arith.negf %513 : vector<8x32xf32>
    %515 = math.exp %514 : vector<8x32xf32>
    %cst_225 = arith.constant 1.000000e+00 : f32
    %516 = vector.broadcast %cst_225 : f32 to vector<8x32xf32>
    %517 = arith.addf %516, %515 : vector<8x32xf32>
    %518 = arith.divf %516, %517 : vector<8x32xf32>
    %519 = vector.extract_strided_slice %512 {offsets = [0, 32], sizes = [8, 32], strides = [1, 1]} : vector<8x128xf32> to vector<8x32xf32>
    %520 = arith.negf %519 : vector<8x32xf32>
    %521 = math.exp %520 : vector<8x32xf32>
    %cst_226 = arith.constant 1.000000e+00 : f32
    %522 = vector.broadcast %cst_226 : f32 to vector<8x32xf32>
    %523 = arith.addf %522, %521 : vector<8x32xf32>
    %524 = arith.divf %522, %523 : vector<8x32xf32>
    %525 = vector.extract_strided_slice %512 {offsets = [0, 64], sizes = [8, 32], strides = [1, 1]} : vector<8x128xf32> to vector<8x32xf32>
    %526 = math.tanh %525 : vector<8x32xf32>
    %527 = vector.extract_strided_slice %512 {offsets = [0, 96], sizes = [8, 32], strides = [1, 1]} : vector<8x128xf32> to vector<8x32xf32>
    %528 = arith.negf %527 : vector<8x32xf32>
    %529 = math.exp %528 : vector<8x32xf32>
    %cst_227 = arith.constant 1.000000e+00 : f32
    %530 = vector.broadcast %cst_227 : f32 to vector<8x32xf32>
    %531 = arith.addf %530, %529 : vector<8x32xf32>
    %532 = arith.divf %530, %531 : vector<8x32xf32>
    %533 = arith.mulf %524, %510 : vector<8x32xf32>
    %534 = arith.mulf %518, %526 : vector<8x32xf32>
    %535 = arith.addf %533, %534 : vector<8x32xf32>
    %536 = math.tanh %535 : vector<8x32xf32>
    %537 = arith.mulf %532, %536 : vector<8x32xf32>
    %c0_228 = arith.constant 0 : index
    %c0_229 = arith.constant 0 : index
    %538 = vector.load %arg9[%c0_228, %c0_229] : memref<8x32xf32, #tpu.memory_space<vmem>>, vector<8x32xf32>
    tpu.vector_store %arg9[%c0_228, %c0_229], %537 {strides = array<i32>} : memref<8x32xf32, #tpu.memory_space<vmem>>, vector<8x32xf32>,
    %c0_230 = arith.constant 0 : index
    %c0_231 = arith.constant 0 : index
    %539 = vector.load %arg10[%c0_230, %c0_231] : memref<8x32xf32, #tpu.memory_space<vmem>>, vector<8x32xf32>
    tpu.vector_store %arg10[%c0_230, %c0_231], %535 {strides = array<i32>} : memref<8x32xf32, #tpu.memory_space<vmem>>, vector<8x32xf32>,
    %540 = arith.index_cast %505 : i32 to index
    %c0_232 = arith.constant 0 : index
    %c0_233 = arith.constant 0 : index
    %541 = vector.load %arg6[%540, %c0_232, %c0_233] : memref<8x8x32xf32, #tpu.memory_space<vmem>>, vector<1x8x32xf32>
    %542 = vector.shape_cast %541 : vector<1x8x32xf32> to vector<8x32xf32>
    %543 = vector.shape_cast %537 : vector<8x32xf32> to vector<1x8x32xf32>
    tpu.vector_store %arg6[%540, %c0_232, %c0_233], %543 {strides = array<i32>} : memref<8x8x32xf32, #tpu.memory_space<vmem>>, vector<1x8x32xf32>,
    %c7_i32_234 = arith.constant 7 : i32
    %544 = arith.index_cast %c7_i32_234 : i32 to index
    %c0_235 = arith.constant 0 : index
    %c0_236 = arith.constant 0 : index
    %545 = vector.load %arg1[%544, %c0_235, %c0_236] : memref<8x8x128xf32, #tpu.memory_space<vmem>>, vector<1x8x128xf32>
    %546 = vector.shape_cast %545 : vector<1x8x128xf32> to vector<8x128xf32>
    %c0_237 = arith.constant 0 : index
    %c0_238 = arith.constant 0 : index
    %547 = vector.load %arg7[%c0_237, %c0_238] : memref<8x32xf32, #tpu.memory_space<vmem>>, vector<8x32xf32>
    %c0_239 = arith.constant 0 : index
    %c0_240 = arith.constant 0 : index
    %548 = vector.load %arg8[%c0_239, %c0_240] : memref<8x32xf32, #tpu.memory_space<vmem>>, vector<8x32xf32>
    %cst_241 = arith.constant dense<0.000000e+00> : vector<8x128xf32>
    %549 = tpu.matmul %547, %3, %cst_241 {dimension_numbers = #tpu.dot_dimension_numbers<[1], [0], [0], [1], [0, 0, 1, 1], [], []>} : vector<8x32xf32>, vector<32x128xf32>, vector<8x128xf32> -> vector<8x128xf32>
    %550 = arith.addf %546, %549 : vector<8x128xf32>
    %551 = vector.extract_strided_slice %550 {offsets = [0, 0], sizes = [8, 32], strides = [1, 1]} : vector<8x128xf32> to vector<8x32xf32>
    %552 = arith.negf %551 : vector<8x32xf32>
    %553 = math.exp %552 : vector<8x32xf32>
    %cst_242 = arith.constant 1.000000e+00 : f32
    %554 = vector.broadcast %cst_242 : f32 to vector<8x32xf32>
    %555 = arith.addf %554, %553 : vector<8x32xf32>
    %556 = arith.divf %554, %555 : vector<8x32xf32>
    %557 = vector.extract_strided_slice %550 {offsets = [0, 32], sizes = [8, 32], strides = [1, 1]} : vector<8x128xf32> to vector<8x32xf32>
    %558 = arith.negf %557 : vector<8x32xf32>
    %559 = math.exp %558 : vector<8x32xf32>
    %cst_243 = arith.constant 1.000000e+00 : f32
    %560 = vector.broadcast %cst_243 : f32 to vector<8x32xf32>
    %561 = arith.addf %560, %559 : vector<8x32xf32>
    %562 = arith.divf %560, %561 : vector<8x32xf32>
    %563 = vector.extract_strided_slice %550 {offsets = [0, 64], sizes = [8, 32], strides = [1, 1]} : vector<8x128xf32> to vector<8x32xf32>
    %564 = math.tanh %563 : vector<8x32xf32>
    %565 = vector.extract_strided_slice %550 {offsets = [0, 96], sizes = [8, 32], strides = [1, 1]} : vector<8x128xf32> to vector<8x32xf32>
    %566 = arith.negf %565 : vector<8x32xf32>
    %567 = math.exp %566 : vector<8x32xf32>
    %cst_244 = arith.constant 1.000000e+00 : f32
    %568 = vector.broadcast %cst_244 : f32 to vector<8x32xf32>
    %569 = arith.addf %568, %567 : vector<8x32xf32>
    %570 = arith.divf %568, %569 : vector<8x32xf32>
    %571 = arith.mulf %562, %548 : vector<8x32xf32>
    %572 = arith.mulf %556, %564 : vector<8x32xf32>
    %573 = arith.addf %571, %572 : vector<8x32xf32>
    %574 = math.tanh %573 : vector<8x32xf32>
    %575 = arith.mulf %570, %574 : vector<8x32xf32>
    %c0_245 = arith.constant 0 : index
    %c0_246 = arith.constant 0 : index
    %576 = vector.load %arg7[%c0_245, %c0_246] : memref<8x32xf32, #tpu.memory_space<vmem>>, vector<8x32xf32>
    tpu.vector_store %arg7[%c0_245, %c0_246], %575 {strides = array<i32>} : memref<8x32xf32, #tpu.memory_space<vmem>>, vector<8x32xf32>,
    %c0_247 = arith.constant 0 : index
    %c0_248 = arith.constant 0 : index
    %577 = vector.load %arg8[%c0_247, %c0_248] : memref<8x32xf32, #tpu.memory_space<vmem>>, vector<8x32xf32>
    tpu.vector_store %arg8[%c0_247, %c0_248], %573 {strides = array<i32>} : memref<8x32xf32, #tpu.memory_space<vmem>>, vector<8x32xf32>,
    %578 = arith.index_cast %c7_i32_234 : i32 to index
    %c0_249 = arith.constant 0 : index
    %c0_250 = arith.constant 0 : index
    %579 = vector.load %arg5[%578, %c0_249, %c0_250] : memref<8x8x32xf32, #tpu.memory_space<vmem>>, vector<1x8x32xf32>
    %580 = vector.shape_cast %579 : vector<1x8x32xf32> to vector<8x32xf32>
    %581 = vector.shape_cast %575 : vector<8x32xf32> to vector<1x8x32xf32>
    tpu.vector_store %arg5[%578, %c0_249, %c0_250], %581 {strides = array<i32>} : memref<8x8x32xf32, #tpu.memory_space<vmem>>, vector<1x8x32xf32>,
    %c7_i32_251 = arith.constant 7 : i32
    %582 = arith.subi %c7_i32_251, %c7_i32_234 : i32
    %583 = arith.index_cast %582 : i32 to index
    %c0_252 = arith.constant 0 : index
    %c0_253 = arith.constant 0 : index
    %584 = vector.load %arg2[%583, %c0_252, %c0_253] : memref<8x8x128xf32, #tpu.memory_space<vmem>>, vector<1x8x128xf32>
    %585 = vector.shape_cast %584 : vector<1x8x128xf32> to vector<8x128xf32>
    %c0_254 = arith.constant 0 : index
    %c0_255 = arith.constant 0 : index
    %586 = vector.load %arg9[%c0_254, %c0_255] : memref<8x32xf32, #tpu.memory_space<vmem>>, vector<8x32xf32>
    %c0_256 = arith.constant 0 : index
    %c0_257 = arith.constant 0 : index
    %587 = vector.load %arg10[%c0_256, %c0_257] : memref<8x32xf32, #tpu.memory_space<vmem>>, vector<8x32xf32>
    %cst_258 = arith.constant dense<0.000000e+00> : vector<8x128xf32>
    %588 = tpu.matmul %586, %4, %cst_258 {dimension_numbers = #tpu.dot_dimension_numbers<[1], [0], [0], [1], [0, 0, 1, 1], [], []>} : vector<8x32xf32>, vector<32x128xf32>, vector<8x128xf32> -> vector<8x128xf32>
    %589 = arith.addf %585, %588 : vector<8x128xf32>
    %590 = vector.extract_strided_slice %589 {offsets = [0, 0], sizes = [8, 32], strides = [1, 1]} : vector<8x128xf32> to vector<8x32xf32>
    %591 = arith.negf %590 : vector<8x32xf32>
    %592 = math.exp %591 : vector<8x32xf32>
    %cst_259 = arith.constant 1.000000e+00 : f32
    %593 = vector.broadcast %cst_259 : f32 to vector<8x32xf32>
    %594 = arith.addf %593, %592 : vector<8x32xf32>
    %595 = arith.divf %593, %594 : vector<8x32xf32>
    %596 = vector.extract_strided_slice %589 {offsets = [0, 32], sizes = [8, 32], strides = [1, 1]} : vector<8x128xf32> to vector<8x32xf32>
    %597 = arith.negf %596 : vector<8x32xf32>
    %598 = math.exp %597 : vector<8x32xf32>
    %cst_260 = arith.constant 1.000000e+00 : f32
    %599 = vector.broadcast %cst_260 : f32 to vector<8x32xf32>
    %600 = arith.addf %599, %598 : vector<8x32xf32>
    %601 = arith.divf %599, %600 : vector<8x32xf32>
    %602 = vector.extract_strided_slice %589 {offsets = [0, 64], sizes = [8, 32], strides = [1, 1]} : vector<8x128xf32> to vector<8x32xf32>
    %603 = math.tanh %602 : vector<8x32xf32>
    %604 = vector.extract_strided_slice %589 {offsets = [0, 96], sizes = [8, 32], strides = [1, 1]} : vector<8x128xf32> to vector<8x32xf32>
    %605 = arith.negf %604 : vector<8x32xf32>
    %606 = math.exp %605 : vector<8x32xf32>
    %cst_261 = arith.constant 1.000000e+00 : f32
    %607 = vector.broadcast %cst_261 : f32 to vector<8x32xf32>
    %608 = arith.addf %607, %606 : vector<8x32xf32>
    %609 = arith.divf %607, %608 : vector<8x32xf32>
    %610 = arith.mulf %601, %587 : vector<8x32xf32>
    %611 = arith.mulf %595, %603 : vector<8x32xf32>
    %612 = arith.addf %610, %611 : vector<8x32xf32>
    %613 = math.tanh %612 : vector<8x32xf32>
    %614 = arith.mulf %609, %613 : vector<8x32xf32>
    %c0_262 = arith.constant 0 : index
    %c0_263 = arith.constant 0 : index
    %615 = vector.load %arg9[%c0_262, %c0_263] : memref<8x32xf32, #tpu.memory_space<vmem>>, vector<8x32xf32>
    tpu.vector_store %arg9[%c0_262, %c0_263], %614 {strides = array<i32>} : memref<8x32xf32, #tpu.memory_space<vmem>>, vector<8x32xf32>,
    %c0_264 = arith.constant 0 : index
    %c0_265 = arith.constant 0 : index
    %616 = vector.load %arg10[%c0_264, %c0_265] : memref<8x32xf32, #tpu.memory_space<vmem>>, vector<8x32xf32>
    tpu.vector_store %arg10[%c0_264, %c0_265], %612 {strides = array<i32>} : memref<8x32xf32, #tpu.memory_space<vmem>>, vector<8x32xf32>,
    %617 = arith.index_cast %582 : i32 to index
    %c0_266 = arith.constant 0 : index
    %c0_267 = arith.constant 0 : index
    %618 = vector.load %arg6[%617, %c0_266, %c0_267] : memref<8x8x32xf32, #tpu.memory_space<vmem>>, vector<1x8x32xf32>
    %619 = vector.shape_cast %618 : vector<1x8x32xf32> to vector<8x32xf32>
    %620 = vector.shape_cast %614 : vector<8x32xf32> to vector<1x8x32xf32>
    tpu.vector_store %arg6[%617, %c0_266, %c0_267], %620 {strides = array<i32>} : memref<8x8x32xf32, #tpu.memory_space<vmem>>, vector<1x8x32xf32>,
    %c8_i32 = arith.constant 8 : i32
    return
  }
  func.func @transform_0(%arg0: i32) -> (i32, i32, i32) {
    %c0_i32 = arith.constant 0 : i32
    %c0_i32_0 = arith.constant 0 : i32
    %c0_i32_1 = arith.constant 0 : i32
    return %arg0, %c0_i32, %c0_i32_0 : i32, i32, i32
  }
  func.func @transform_1(%arg0: i32) -> (i32, i32, i32) {
    %c0_i32 = arith.constant 0 : i32
    %0 = arith.subi %c0_i32, %arg0 : i32
    %c0_i32_0 = arith.constant 0 : i32
    %c0_i32_1 = arith.constant 0 : i32
    %c0_i32_2 = arith.constant 0 : i32
    return %0, %c0_i32_0, %c0_i32_1 : i32, i32, i32
  }
  func.func @transform_2(%arg0: i32) -> (i32, i32) {
    %c0_i32 = arith.constant 0 : i32
    %c0_i32_0 = arith.constant 0 : i32
    %c0_i32_1 = arith.constant 0 : i32
    return %c0_i32, %c0_i32_0 : i32, i32
  }
  func.func @transform_3(%arg0: i32) -> (i32, i32) {
    %c0_i32 = arith.constant 0 : i32
    %c0_i32_0 = arith.constant 0 : i32
    %c0_i32_1 = arith.constant 0 : i32
    return %c0_i32, %c0_i32_0 : i32, i32
  }
  func.func @transform_4(%arg0: i32) -> (i32, i32, i32) {
    %c0_i32 = arith.constant 0 : i32
    %c0_i32_0 = arith.constant 0 : i32
    %c0_i32_1 = arith.constant 0 : i32
    return %arg0, %c0_i32, %c0_i32_0 : i32, i32, i32
  }
  func.func @transform_5(%arg0: i32) -> (i32, i32, i32) {
    %c0_i32 = arith.constant 0 : i32
    %0 = arith.subi %c0_i32, %arg0 : i32
    %c0_i32_0 = arith.constant 0 : i32
    %c0_i32_1 = arith.constant 0 : i32
    %c0_i32_2 = arith.constant 0 : i32
    return %0, %c0_i32_0, %c0_i32_1 : i32, i32, i32
  }
}

module attributes {stable_mosaic.version = 11 : i64} {
  func.func @_linear_kernel(%arg0: i32, %arg1: i32, %arg2: memref<64x64xf32, #tpu.memory_space<vmem>>, %arg3: memref<64x256xf32, #tpu.memory_space<vmem>>, %arg4: memref<1x256xf32, #tpu.memory_space<vmem>>, %arg5: memref<64x256xf32, #tpu.memory_space<vmem>>) attributes {dimension_semantics = [#tpu.dimension_semantics<parallel>, #tpu.dimension_semantics<parallel>], iteration_bounds = array<i64: 1, 1>, scalar_prefetch = 0 : i64, scratch_operands = 0 : i64, tpu.core_type = #tpu.core_type<tc>, window_params = [{transform_indices = @transform_0, window_bounds = array<i64: 64, 64>}, {transform_indices = @transform_1, window_bounds = array<i64: 64, 256>}, {transform_indices = @transform_2, window_bounds = array<i64: 1, 256>}, {transform_indices = @transform_3, window_bounds = array<i64: 64, 256>}]} {
    %c0 = arith.constant 0 : index
    %c0_0 = arith.constant 0 : index
    %0 = vector.load %arg2[%c0, %c0_0] : memref<64x64xf32, #tpu.memory_space<vmem>>, vector<64x64xf32>
    %c0_1 = arith.constant 0 : index
    %c0_2 = arith.constant 0 : index
    %1 = vector.load %arg3[%c0_1, %c0_2] : memref<64x256xf32, #tpu.memory_space<vmem>>, vector<64x256xf32>
    %cst = arith.constant dense<0.000000e+00> : vector<64x256xf32>
    %2 = tpu.matmul %0, %1, %cst {dimension_numbers = #tpu.dot_dimension_numbers<[1], [0], [0], [1], [0, 0, 1, 1], [], []>} : vector<64x64xf32>, vector<64x256xf32>, vector<64x256xf32> -> vector<64x256xf32>
    %c0_3 = arith.constant 0 : index
    %c0_4 = arith.constant 0 : index
    %3 = vector.load %arg4[%c0_3, %c0_4] : memref<1x256xf32, #tpu.memory_space<vmem>>, vector<1x256xf32>
    %4 = vector.broadcast %3 : vector<1x256xf32> to vector<64x256xf32>
    %5 = arith.addf %2, %4 : vector<64x256xf32>
    %c0_5 = arith.constant 0 : index
    %c0_6 = arith.constant 0 : index
    %6 = vector.load %arg5[%c0_5, %c0_6] : memref<64x256xf32, #tpu.memory_space<vmem>>, vector<64x256xf32>
    tpu.vector_store %arg5[%c0_5, %c0_6], %5 {strides = array<i32>} : memref<64x256xf32, #tpu.memory_space<vmem>>, vector<64x256xf32>,
    return
  }
  func.func @transform_0(%arg0: i32, %arg1: i32) -> (i32, i32) {
    %c0_i32 = arith.constant 0 : i32
    %c0_i32_0 = arith.constant 0 : i32
    return %arg0, %c0_i32 : i32, i32
  }
  func.func @transform_1(%arg0: i32, %arg1: i32) -> (i32, i32) {
    %c0_i32 = arith.constant 0 : i32
    %c0_i32_0 = arith.constant 0 : i32
    return %c0_i32, %arg1 : i32, i32
  }
  func.func @transform_2(%arg0: i32, %arg1: i32) -> (i32, i32) {
    %c0_i32 = arith.constant 0 : i32
    %c0_i32_0 = arith.constant 0 : i32
    return %c0_i32, %arg1 : i32, i32
  }
  func.func @transform_3(%arg0: i32, %arg1: i32) -> (i32, i32) {
    %c0_i32 = arith.constant 0 : i32
    return %arg0, %arg1 : i32, i32
  }
}

module attributes {stable_mosaic.version = 11 : i64} {
  func.func @_linear_kernel(%arg0: i32, %arg1: i32, %arg2: memref<64x64xf32, #tpu.memory_space<vmem>>, %arg3: memref<64x8xf32, #tpu.memory_space<vmem>>, %arg4: memref<1x8xf32, #tpu.memory_space<vmem>>, %arg5: memref<64x8xf32, #tpu.memory_space<vmem>>) attributes {dimension_semantics = [#tpu.dimension_semantics<parallel>, #tpu.dimension_semantics<parallel>], iteration_bounds = array<i64: 1, 1>, scalar_prefetch = 0 : i64, scratch_operands = 0 : i64, tpu.core_type = #tpu.core_type<tc>, window_params = [{transform_indices = @transform_0, window_bounds = array<i64: 64, 64>}, {transform_indices = @transform_1, window_bounds = array<i64: 64, 8>}, {transform_indices = @transform_2, window_bounds = array<i64: 1, 8>}, {transform_indices = @transform_3, window_bounds = array<i64: 64, 8>}]} {
    %c0 = arith.constant 0 : index
    %c0_0 = arith.constant 0 : index
    %0 = vector.load %arg2[%c0, %c0_0] : memref<64x64xf32, #tpu.memory_space<vmem>>, vector<64x64xf32>
    %c0_1 = arith.constant 0 : index
    %c0_2 = arith.constant 0 : index
    %1 = vector.load %arg3[%c0_1, %c0_2] : memref<64x8xf32, #tpu.memory_space<vmem>>, vector<64x8xf32>
    %cst = arith.constant dense<0.000000e+00> : vector<64x8xf32>
    %2 = tpu.matmul %0, %1, %cst {dimension_numbers = #tpu.dot_dimension_numbers<[1], [0], [0], [1], [0, 0, 1, 1], [], []>} : vector<64x64xf32>, vector<64x8xf32>, vector<64x8xf32> -> vector<64x8xf32>
    %c0_3 = arith.constant 0 : index
    %c0_4 = arith.constant 0 : index
    %3 = vector.load %arg4[%c0_3, %c0_4] : memref<1x8xf32, #tpu.memory_space<vmem>>, vector<1x8xf32>
    %4 = vector.broadcast %3 : vector<1x8xf32> to vector<64x8xf32>
    %5 = arith.addf %2, %4 : vector<64x8xf32>
    %c0_5 = arith.constant 0 : index
    %c0_6 = arith.constant 0 : index
    %6 = vector.load %arg5[%c0_5, %c0_6] : memref<64x8xf32, #tpu.memory_space<vmem>>, vector<64x8xf32>
    tpu.vector_store %arg5[%c0_5, %c0_6], %5 {strides = array<i32>} : memref<64x8xf32, #tpu.memory_space<vmem>>, vector<64x8xf32>,
    return
  }
  func.func @transform_0(%arg0: i32, %arg1: i32) -> (i32, i32) {
    %c0_i32 = arith.constant 0 : i32
    %c0_i32_0 = arith.constant 0 : i32
    return %arg0, %c0_i32 : i32, i32
  }
  func.func @transform_1(%arg0: i32, %arg1: i32) -> (i32, i32) {
    %c0_i32 = arith.constant 0 : i32
    %c0_i32_0 = arith.constant 0 : i32
    return %c0_i32, %arg1 : i32, i32
  }
  func.func @transform_2(%arg0: i32, %arg1: i32) -> (i32, i32) {
    %c0_i32 = arith.constant 0 : i32
    %c0_i32_0 = arith.constant 0 : i32
    return %c0_i32, %arg1 : i32, i32
  }
  func.func @transform_3(%arg0: i32, %arg1: i32) -> (i32, i32) {
    %c0_i32 = arith.constant 0 : i32
    return %arg0, %arg1 : i32, i32
  }
}

</mosaic_0001>

<llo_original>
// kernel: lstm_model_forward.6
$region0: #{lstm_model_forward.6}
  #allocation0 [shape = 'u32[]', space=smem, size = 0x4, offset = 0x4, fixed_abs, tag = 'smem constant byte address 0x4 - core index']
  #allocation1 [shape = 'u32[72,128]{1,0:T(1,128)}', space=vmem, size = 0x9000, scoped, tag = 'internal scratch']
  %s0 = inlined_call_operand.vmem [shape: f32[64,16], index: 0, kind: input, shape index: {}]
  %s1 = inlined_call_operand.vmem [shape: f32[16,32], index: 1, kind: input, shape index: {}]
  %s2 = inlined_call_operand.vmem [shape: f32[1,32], index: 2, kind: input, shape index: {}]
  %s3 = inlined_call_operand.vmem [shape: f32[64,32], index: 3, kind: output, shape index: {}]
  %s4 = sld [smem:[#allocation0]]
  $region22: #{lstm_model_forward.6} parent=0
    _
  %s6 = ssub.s32 1, %s4
  %s7 = scalar_select 0, %s6, %s4
  // Predicated region
  $region2: #{lstm_model_forward.6} parent=0 // pred_check
    _
  $region3: #{lstm_model_forward.6} parent=0 // pred_check_branch
    %9 = sbr.rel (0) target = $region5
  $region4: #{lstm_model_forward.6} parent=0 // pred_region
    _
  $region5: #{lstm_model_forward.6} parent=0 // pred_fallthru
    _
  // Predicated region
  $region6: #{lstm_model_forward.6} parent=0 // pred_check
    _
  $region7: #{lstm_model_forward.6} parent=0 // pred_check_branch
    %11 = sbr.rel (0) target = $region9
  $region8: #{lstm_model_forward.6} parent=0 // pred_region
    _
  $region9: #{lstm_model_forward.6} parent=0 // pred_fallthru
    _
  // Predicated region
  $region10: #{lstm_model_forward.6} parent=0 // pred_check
    _
  $region11: #{lstm_model_forward.6} parent=0 // pred_check_branch
    %13 = sbr.rel (0) target = $region13
  $region12: #{lstm_model_forward.6} parent=0 // pred_region
    _
  $region13: #{lstm_model_forward.6} parent=0 // pred_fallthru
    _
  %v14 = vld [vmem:[%s0] sm:$0xff]
  %v15 = vld [vmem:[%s0 + $0x8] sm:$0xff]
  %v16 = vld [vmem:[%s0 + $0x10] sm:$0xff]
  %v17 = vld [vmem:[%s0 + $0x18] sm:$0xff]
  %v18 = vld [vmem:[%s0 + $0x20] sm:$0xff]
  %v19 = vld [vmem:[%s0 + $0x28] sm:$0xff]
  %v20 = vld [vmem:[%s0 + $0x30] sm:$0xff]
  %v21 = vld [vmem:[%s0 + $0x38] sm:$0xff]
  %v22 = vld [vmem:[%s1] sm:$0xff]
  %v23 = vld [vmem:[%s1 + $0x8] sm:$0xff]
  %v24 = vld [vmem:[%s2] sm:$0x1]
  %v26 = vperm.slane %v24, 0
  %vm28 = vcmask 130048
  %v30 = vsel %vm28, %v14, 0
  %v33 = vsel %vm28, %v15, 0
  %v36 = vsel %vm28, %v16, 0
  %v39 = vsel %vm28, %v17, 0
  %v42 = vsel %vm28, %v18, 0
  %v45 = vsel %vm28, %v19, 0
  %v48 = vsel %vm28, %v20, 0
  %v51 = vsel %vm28, %v21, 0
  %53 = vmatpush.msra.mxu0 0.0
  %54 = vmatpush.msra.mxu0 0.0
  %55 = vmatpush.msra.mxu0 0.0
  %56 = vmatpush.msra.mxu0 0.0
  %57 = vmatpush.msra.mxu0 0.0
  %58 = vmatpush.msra.mxu0 0.0
  %59 = vmatpush.msra.mxu0 0.0
  %60 = vmatpush.msra.mxu0 0.0
  %61 = vmatpush.msra.mxu0 0.0
  %62 = vmatpush.msra.mxu0 0.0
  %63 = vmatpush.msra.mxu0 0.0
  %64 = vmatpush.msra.mxu0 0.0
  %65 = vmatpush.msra.mxu0 0.0
  %66 = vmatpush.msra.mxu0 0.0
  %67 = vmatpush.msra.mxu0 %v23
  %68 = vmatpush.msra.mxu0 %v22
  %69 = vmatmul.f32.gmra.mxu0 %v30
  %v70 = vpop.f32.mrf.mxu0
  %v71 = vadd.f32 %v26, %v70
  %72 = vmatmul.f32.gmra.mxu0 %v33
  %v73 = vpop.f32.mrf.mxu0
  %v74 = vadd.f32 %v26, %v73
  %75 = vmatmul.f32.gmra.mxu0 %v36
  %v76 = vpop.f32.mrf.mxu0
  %v77 = vadd.f32 %v26, %v76
  %78 = vmatmul.f32.gmra.mxu0 %v39
  %v79 = vpop.f32.mrf.mxu0
  %v80 = vadd.f32 %v26, %v79
  %81 = vmatmul.f32.gmra.mxu0 %v42
  %v82 = vpop.f32.mrf.mxu0
  %v83 = vadd.f32 %v26, %v82
  %84 = vmatmul.f32.gmra.mxu0 %v45
  %v85 = vpop.f32.mrf.mxu0
  %v86 = vadd.f32 %v26, %v85
  %87 = vmatmul.f32.gmra.mxu0 %v48
  %v88 = vpop.f32.mrf.mxu0
  %v89 = vadd.f32 %v26, %v88
  %90 = vmatmul.f32.gmra.mxu0 %v51
  %v91 = vpop.f32.mrf.mxu0
  %v92 = vadd.f32 %v26, %v91
  %93 = vdwg.mxu0
  %vm94 = vcmask 261120
  %95 = vst.msk [vmem:[%s3] sm:$0xff] %vm94, %v71
  %96 = vst.msk [vmem:[%s3 + $0x8] sm:$0xff] %vm94, %v74
  %97 = vst.msk [vmem:[%s3 + $0x10] sm:$0xff] %vm94, %v77
  %98 = vst.msk [vmem:[%s3 + $0x18] sm:$0xff] %vm94, %v80
  %99 = vst.msk [vmem:[%s3 + $0x20] sm:$0xff] %vm94, %v83
  %100 = vst.msk [vmem:[%s3 + $0x28] sm:$0xff] %vm94, %v86
  %101 = vst.msk [vmem:[%s3 + $0x30] sm:$0xff] %vm94, %v89
  %102 = vst.msk [vmem:[%s3 + $0x38] sm:$0xff] %vm94, %v92
  // Predicated region
  $region14: #{lstm_model_forward.6} parent=0 // pred_check
    _
  $region15: #{lstm_model_forward.6} parent=0 // pred_check_branch
    %104 = sbr.rel (0) target = $region17
  $region16: #{lstm_model_forward.6} parent=0 // pred_region
    _
  $region17: #{lstm_model_forward.6} parent=0 // pred_fallthru
    _
  // Predicated region
  $region18: #{lstm_model_forward.6} parent=0 // pred_check
    _
  $region19: #{lstm_model_forward.6} parent=0 // pred_check_branch
    %106 = sbr.rel (0) target = $region21
  $region20: #{lstm_model_forward.6} parent=0 // pred_region
    _
  $region21: #{lstm_model_forward.6} parent=0 // pred_fallthru
    _

// kernel: lstm_model_forward.7
$region0: #{lstm_model_forward.7}
  #allocation0 [shape = 'u32[]', space=smem, size = 0x4, offset = 0x4, fixed_abs, tag = 'smem constant byte address 0x4 - core index']
  #allocation1 [shape = 'u32[72,128]{1,0:T(1,128)}', space=vmem, size = 0x9000, scoped, tag = 'internal scratch']
  %s0 = inlined_call_operand.vmem [shape: f32[64,32], index: 0, kind: input, shape index: {}]
  %s1 = inlined_call_operand.vmem [shape: f32[32,256], index: 1, kind: input, shape index: {}]
  %s2 = inlined_call_operand.vmem [shape: f32[1,256], index: 2, kind: input, shape index: {}]
  %s3 = inlined_call_operand.vmem [shape: f32[64,256], index: 3, kind: output, shape index: {}]
  %s4 = sld [smem:[#allocation0]]
  $region22: #{lstm_model_forward.7} parent=0
    _
  %s6 = ssub.s32 1, %s4
  %s7 = scalar_select 0, %s6, %s4
  // Predicated region
  $region2: #{lstm_model_forward.7} parent=0 // pred_check
    _
  $region3: #{lstm_model_forward.7} parent=0 // pred_check_branch
    %9 = sbr.rel (0) target = $region5
  $region4: #{lstm_model_forward.7} parent=0 // pred_region
    _
  $region5: #{lstm_model_forward.7} parent=0 // pred_fallthru
    _
  // Predicated region
  $region6: #{lstm_model_forward.7} parent=0 // pred_check
    _
  $region7: #{lstm_model_forward.7} parent=0 // pred_check_branch
    %11 = sbr.rel (0) target = $region9
  $region8: #{lstm_model_forward.7} parent=0 // pred_region
    _
  $region9: #{lstm_model_forward.7} parent=0 // pred_fallthru
    _
  // Predicated region
  $region10: #{lstm_model_forward.7} parent=0 // pred_check
    _
  $region11: #{lstm_model_forward.7} parent=0 // pred_check_branch
    %13 = sbr.rel (0) target = $region13
  $region12: #{lstm_model_forward.7} parent=0 // pred_region
    _
  $region13: #{lstm_model_forward.7} parent=0 // pred_fallthru
    _
  %v14 = vld [vmem:[%s0] sm:$0xff]
  %v15 = vld [vmem:[%s0 + $0x8] sm:$0xff]
  %v16 = vld [vmem:[%s0 + $0x10] sm:$0xff]
  %v17 = vld [vmem:[%s0 + $0x18] sm:$0xff]
  %v18 = vld [vmem:[%s0 + $0x20] sm:$0xff]
  %v19 = vld [vmem:[%s0 + $0x28] sm:$0xff]
  %v20 = vld [vmem:[%s0 + $0x30] sm:$0xff]
  %v21 = vld [vmem:[%s0 + $0x38] sm:$0xff]
  %v22 = vld [vmem:[%s1] sm:$0xff]
  %v23 = vld [vmem:[%s1 + $0x8] sm:$0xff]
  %v24 = vld [vmem:[%s1 + $0x10] sm:$0xff]
  %v25 = vld [vmem:[%s1 + $0x18] sm:$0xff]
  %v26 = vld [vmem:[%s1 + $0x20] sm:$0xff]
  %v27 = vld [vmem:[%s1 + $0x28] sm:$0xff]
  %v28 = vld [vmem:[%s1 + $0x30] sm:$0xff]
  %v29 = vld [vmem:[%s1 + $0x38] sm:$0xff]
  %v30 = vld [vmem:[%s2] sm:$0x3]
  %v32 = vperm.slane %v30, 0
  %v33 = vperm.slane %v30, 1
  %vm36 = vcmask 261120
  %v38 = vsel %vm36, %v14, 0
  %v41 = vsel %vm36, %v15, 0
  %v44 = vsel %vm36, %v16, 0
  %v47 = vsel %vm36, %v17, 0
  %v50 = vsel %vm36, %v18, 0
  %v53 = vsel %vm36, %v19, 0
  %v56 = vsel %vm36, %v20, 0
  %v59 = vsel %vm36, %v21, 0
  %61 = vmatpush.msra.mxu0 0.0
  %62 = vmatpush.msra.mxu0 0.0
  %63 = vmatpush.msra.mxu0 0.0
  %64 = vmatpush.msra.mxu0 0.0
  %65 = vmatpush.msra.mxu0 0.0
  %66 = vmatpush.msra.mxu0 0.0
  %67 = vmatpush.msra.mxu0 0.0
  %68 = vmatpush.msra.mxu0 0.0
  %69 = vmatpush.msra.mxu0 0.0
  %70 = vmatpush.msra.mxu0 0.0
  %71 = vmatpush.msra.mxu0 0.0
  %72 = vmatpush.msra.mxu0 0.0
  %73 = vmatpush.msra.mxu0 %v28
  %74 = vmatpush.msra.mxu0 %v26
  %75 = vmatpush.msra.mxu0 %v24
  %76 = vmatpush.msra.mxu0 %v22
  %77 = vmatmul.f32.gmra.mxu0 %v38
  %v78 = vpop.f32.mrf.mxu0
  %v79 = vadd.f32 %v32, %v78
  %80 = vmatmul.f32.gmra.mxu0 %v41
  %v81 = vpop.f32.mrf.mxu0
  %v82 = vadd.f32 %v32, %v81
  %83 = vmatmul.f32.gmra.mxu0 %v44
  %v84 = vpop.f32.mrf.mxu0
  %v85 = vadd.f32 %v32, %v84
  %86 = vmatmul.f32.gmra.mxu0 %v47
  %v87 = vpop.f32.mrf.mxu0
  %v88 = vadd.f32 %v32, %v87
  %89 = vmatmul.f32.gmra.mxu0 %v50
  %v90 = vpop.f32.mrf.mxu0
  %v91 = vadd.f32 %v32, %v90
  %92 = vmatmul.f32.gmra.mxu0 %v53
  %v93 = vpop.f32.mrf.mxu0
  %v94 = vadd.f32 %v32, %v93
  %95 = vmatmul.f32.gmra.mxu0 %v56
  %v96 = vpop.f32.mrf.mxu0
  %v97 = vadd.f32 %v32, %v96
  %98 = vmatmul.f32.gmra.mxu0 %v59
  %v99 = vpop.f32.mrf.mxu0
  %v100 = vadd.f32 %v32, %v99
  %101 = vdwg.mxu0
  %102 = vmatpush.msra.mxu0 0.0
  %103 = vmatpush.msra.mxu0 0.0
  %104 = vmatpush.msra.mxu0 0.0
  %105 = vmatpush.msra.mxu0 0.0
  %106 = vmatpush.msra.mxu0 0.0
  %107 = vmatpush.msra.mxu0 0.0
  %108 = vmatpush.msra.mxu0 0.0
  %109 = vmatpush.msra.mxu0 0.0
  %110 = vmatpush.msra.mxu0 0.0
  %111 = vmatpush.msra.mxu0 0.0
  %112 = vmatpush.msra.mxu0 0.0
  %113 = vmatpush.msra.mxu0 0.0
  %114 = vmatpush.msra.mxu0 %v29
  %115 = vmatpush.msra.mxu0 %v27
  %116 = vmatpush.msra.mxu0 %v25
  %117 = vmatpush.msra.mxu0 %v23
  %118 = vmatmul.f32.gmra.mxu0 %v38
  %v119 = vpop.f32.mrf.mxu0
  %v120 = vadd.f32 %v33, %v119
  %121 = vmatmul.f32.gmra.mxu0 %v41
  %v122 = vpop.f32.mrf.mxu0
  %v123 = vadd.f32 %v33, %v122
  %124 = vmatmul.f32.gmra.mxu0 %v44
  %v125 = vpop.f32.mrf.mxu0
  %v126 = vadd.f32 %v33, %v125
  %127 = vmatmul.f32.gmra.mxu0 %v47
  %v128 = vpop.f32.mrf.mxu0
  %v129 = vadd.f32 %v33, %v128
  %130 = vmatmul.f32.gmra.mxu0 %v50
  %v131 = vpop.f32.mrf.mxu0
  %v132 = vadd.f32 %v33, %v131
  %133 = vmatmul.f32.gmra.mxu0 %v53
  %v134 = vpop.f32.mrf.mxu0
  %v135 = vadd.f32 %v33, %v134
  %136 = vmatmul.f32.gmra.mxu0 %v56
  %v137 = vpop.f32.mrf.mxu0
  %v138 = vadd.f32 %v33, %v137
  %139 = vmatmul.f32.gmra.mxu0 %v59
  %v140 = vpop.f32.mrf.mxu0
  %v141 = vadd.f32 %v33, %v140
  %142 = vdwg.mxu0
  %143 = vst [vmem:[%s3] sm:$0xff] %v79
  %144 = vst [vmem:[%s3 + $0x8] sm:$0xff] %v120
  %145 = vst [vmem:[%s3 + $0x10] sm:$0xff] %v82
  %146 = vst [vmem:[%s3 + $0x18] sm:$0xff] %v123
  %147 = vst [vmem:[%s3 + $0x20] sm:$0xff] %v85
  %148 = vst [vmem:[%s3 + $0x28] sm:$0xff] %v126
  %149 = vst [vmem:[%s3 + $0x30] sm:$0xff] %v88
  %150 = vst [vmem:[%s3 + $0x38] sm:$0xff] %v129
  %151 = vst [vmem:[%s3 + $0x40] sm:$0xff] %v91
  %152 = vst [vmem:[%s3 + $0x48] sm:$0xff] %v132
  %153 = vst [vmem:[%s3 + $0x50] sm:$0xff] %v94
  %154 = vst [vmem:[%s3 + $0x58] sm:$0xff] %v135
  %155 = vst [vmem:[%s3 + $0x60] sm:$0xff] %v97
  %156 = vst [vmem:[%s3 + $0x68] sm:$0xff] %v138
  %157 = vst [vmem:[%s3 + $0x70] sm:$0xff] %v100
  %158 = vst [vmem:[%s3 + $0x78] sm:$0xff] %v141
  // Predicated region
  $region14: #{lstm_model_forward.7} parent=0 // pred_check
    _
  $region15: #{lstm_model_forward.7} parent=0 // pred_check_branch
    %160 = sbr.rel (0) target = $region17
  $region16: #{lstm_model_forward.7} parent=0 // pred_region
    _
  $region17: #{lstm_model_forward.7} parent=0 // pred_fallthru
    _
  // Predicated region
  $region18: #{lstm_model_forward.7} parent=0 // pred_check
    _
  $region19: #{lstm_model_forward.7} parent=0 // pred_check_branch
    %162 = sbr.rel (0) target = $region21
  $region20: #{lstm_model_forward.7} parent=0 // pred_region
    _
  $region21: #{lstm_model_forward.7} parent=0 // pred_fallthru
    _

// kernel: lstm_model_forward.9
$region0: #{lstm_model_forward.9}
  #allocation0 [shape = 'u32[]', space=smem, size = 0x4, offset = 0x4, fixed_abs, tag = 'smem constant byte address 0x4 - core index']
  #allocation1 [shape = 'u32[72,128]{1,0:T(1,128)}', space=vmem, size = 0x9000, scoped, tag = 'internal scratch']
  %s0 = inlined_call_operand.vmem [shape: f32[64,64], index: 0, kind: input, shape index: {}]
  %s1 = inlined_call_operand.vmem [shape: f32[64,256], index: 1, kind: input, shape index: {}]
  %s2 = inlined_call_operand.vmem [shape: f32[1,256], index: 2, kind: input, shape index: {}]
  %s3 = inlined_call_operand.vmem [shape: f32[64,256], index: 3, kind: output, shape index: {}]
  %s4 = sld [smem:[#allocation0]]
  $region22: #{lstm_model_forward.9} parent=0
    _
  %s6 = ssub.s32 1, %s4
  %s7 = scalar_select 0, %s6, %s4
  // Predicated region
  $region2: #{lstm_model_forward.9} parent=0 // pred_check
    _
  $region3: #{lstm_model_forward.9} parent=0 // pred_check_branch
    %9 = sbr.rel (0) target = $region5
  $region4: #{lstm_model_forward.9} parent=0 // pred_region
    _
  $region5: #{lstm_model_forward.9} parent=0 // pred_fallthru
    _
  // Predicated region
  $region6: #{lstm_model_forward.9} parent=0 // pred_check
    _
  $region7: #{lstm_model_forward.9} parent=0 // pred_check_branch
    %11 = sbr.rel (0) target = $region9
  $region8: #{lstm_model_forward.9} parent=0 // pred_region
    _
  $region9: #{lstm_model_forward.9} parent=0 // pred_fallthru
    _
  // Predicated region
  $region10: #{lstm_model_forward.9} parent=0 // pred_check
    _
  $region11: #{lstm_model_forward.9} parent=0 // pred_check_branch
    %13 = sbr.rel (0) target = $region13
  $region12: #{lstm_model_forward.9} parent=0 // pred_region
    _
  $region13: #{lstm_model_forward.9} parent=0 // pred_fallthru
    _
  %v14 = vld [vmem:[%s0] sm:$0xff]
  %v15 = vld [vmem:[%s0 + $0x8] sm:$0xff]
  %v16 = vld [vmem:[%s0 + $0x10] sm:$0xff]
  %v17 = vld [vmem:[%s0 + $0x18] sm:$0xff]
  %v18 = vld [vmem:[%s0 + $0x20] sm:$0xff]
  %v19 = vld [vmem:[%s0 + $0x28] sm:$0xff]
  %v20 = vld [vmem:[%s0 + $0x30] sm:$0xff]
  %v21 = vld [vmem:[%s0 + $0x38] sm:$0xff]
  %v22 = vld [vmem:[%s1] sm:$0xff]
  %v23 = vld [vmem:[%s1 + $0x8] sm:$0xff]
  %v24 = vld [vmem:[%s1 + $0x10] sm:$0xff]
  %v25 = vld [vmem:[%s1 + $0x18] sm:$0xff]
  %v26 = vld [vmem:[%s1 + $0x20] sm:$0xff]
  %v27 = vld [vmem:[%s1 + $0x28] sm:$0xff]
  %v28 = vld [vmem:[%s1 + $0x30] sm:$0xff]
  %v29 = vld [vmem:[%s1 + $0x38] sm:$0xff]
  %v30 = vld [vmem:[%s1 + $0x40] sm:$0xff]
  %v31 = vld [vmem:[%s1 + $0x48] sm:$0xff]
  %v32 = vld [vmem:[%s1 + $0x50] sm:$0xff]
  %v33 = vld [vmem:[%s1 + $0x58] sm:$0xff]
  %v34 = vld [vmem:[%s1 + $0x60] sm:$0xff]
  %v35 = vld [vmem:[%s1 + $0x68] sm:$0xff]
  %v36 = vld [vmem:[%s1 + $0x70] sm:$0xff]
  %v37 = vld [vmem:[%s1 + $0x78] sm:$0xff]
  %v38 = vld [vmem:[%s2] sm:$0x3]
  %v40 = vperm.slane %v38, 0
  %v41 = vperm.slane %v38, 1
  %vm44 = vcmask 523264
  %v46 = vsel %vm44, %v14, 0
  %v49 = vsel %vm44, %v15, 0
  %v52 = vsel %vm44, %v16, 0
  %v55 = vsel %vm44, %v17, 0
  %v58 = vsel %vm44, %v18, 0
  %v61 = vsel %vm44, %v19, 0
  %v64 = vsel %vm44, %v20, 0
  %v67 = vsel %vm44, %v21, 0
  %69 = vmatpush.msra.mxu0 0.0
  %70 = vmatpush.msra.mxu0 0.0
  %71 = vmatpush.msra.mxu0 0.0
  %72 = vmatpush.msra.mxu0 0.0
  %73 = vmatpush.msra.mxu0 0.0
  %74 = vmatpush.msra.mxu0 0.0
  %75 = vmatpush.msra.mxu0 0.0
  %76 = vmatpush.msra.mxu0 0.0
  %77 = vmatpush.msra.mxu0 %v36
  %78 = vmatpush.msra.mxu0 %v34
  %79 = vmatpush.msra.mxu0 %v32
  %80 = vmatpush.msra.mxu0 %v30
  %81 = vmatpush.msra.mxu0 %v28
  %82 = vmatpush.msra.mxu0 %v26
  %83 = vmatpush.msra.mxu0 %v24
  %84 = vmatpush.msra.mxu0 %v22
  %85 = vmatmul.f32.gmra.mxu0 %v46
  %v86 = vpop.f32.mrf.mxu0
  %v87 = vadd.f32 %v40, %v86
  %88 = vmatmul.f32.gmra.mxu0 %v49
  %v89 = vpop.f32.mrf.mxu0
  %v90 = vadd.f32 %v40, %v89
  %91 = vmatmul.f32.gmra.mxu0 %v52
  %v92 = vpop.f32.mrf.mxu0
  %v93 = vadd.f32 %v40, %v92
  %94 = vmatmul.f32.gmra.mxu0 %v55
  %v95 = vpop.f32.mrf.mxu0
  %v96 = vadd.f32 %v40, %v95
  %97 = vmatmul.f32.gmra.mxu0 %v58
  %v98 = vpop.f32.mrf.mxu0
  %v99 = vadd.f32 %v40, %v98
  %100 = vmatmul.f32.gmra.mxu0 %v61
  %v101 = vpop.f32.mrf.mxu0
  %v102 = vadd.f32 %v40, %v101
  %103 = vmatmul.f32.gmra.mxu0 %v64
  %v104 = vpop.f32.mrf.mxu0
  %v105 = vadd.f32 %v40, %v104
  %106 = vmatmul.f32.gmra.mxu0 %v67
  %v107 = vpop.f32.mrf.mxu0
  %v108 = vadd.f32 %v40, %v107
  %109 = vdwg.mxu0
  %110 = vmatpush.msra.mxu0 0.0
  %111 = vmatpush.msra.mxu0 0.0
  %112 = vmatpush.msra.mxu0 0.0
  %113 = vmatpush.msra.mxu0 0.0
  %114 = vmatpush.msra.mxu0 0.0
  %115 = vmatpush.msra.mxu0 0.0
  %116 = vmatpush.msra.mxu0 0.0
  %117 = vmatpush.msra.mxu0 0.0
  %118 = vmatpush.msra.mxu0 %v37
  %119 = vmatpush.msra.mxu0 %v35
  %120 = vmatpush.msra.mxu0 %v33
  %121 = vmatpush.msra.mxu0 %v31
  %122 = vmatpush.msra.mxu0 %v29
  %123 = vmatpush.msra.mxu0 %v27
  %124 = vmatpush.msra.mxu0 %v25
  %125 = vmatpush.msra.mxu0 %v23
  %126 = vmatmul.f32.gmra.mxu0 %v46
  %v127 = vpop.f32.mrf.mxu0
  %v128 = vadd.f32 %v41, %v127
  %129 = vmatmul.f32.gmra.mxu0 %v49
  %v130 = vpop.f32.mrf.mxu0
  %v131 = vadd.f32 %v41, %v130
  %132 = vmatmul.f32.gmra.mxu0 %v52
  %v133 = vpop.f32.mrf.mxu0
  %v134 = vadd.f32 %v41, %v133
  %135 = vmatmul.f32.gmra.mxu0 %v55
  %v136 = vpop.f32.mrf.mxu0
  %v137 = vadd.f32 %v41, %v136
  %138 = vmatmul.f32.gmra.mxu0 %v58
  %v139 = vpop.f32.mrf.mxu0
  %v140 = vadd.f32 %v41, %v139
  %141 = vmatmul.f32.gmra.mxu0 %v61
  %v142 = vpop.f32.mrf.mxu0
  %v143 = vadd.f32 %v41, %v142
  %144 = vmatmul.f32.gmra.mxu0 %v64
  %v145 = vpop.f32.mrf.mxu0
  %v146 = vadd.f32 %v41, %v145
  %147 = vmatmul.f32.gmra.mxu0 %v67
  %v148 = vpop.f32.mrf.mxu0
  %v149 = vadd.f32 %v41, %v148
  %150 = vdwg.mxu0
  %151 = vst [vmem:[%s3] sm:$0xff] %v87
  %152 = vst [vmem:[%s3 + $0x8] sm:$0xff] %v128
  %153 = vst [vmem:[%s3 + $0x10] sm:$0xff] %v90
  %154 = vst [vmem:[%s3 + $0x18] sm:$0xff] %v131
  %155 = vst [vmem:[%s3 + $0x20] sm:$0xff] %v93
  %156 = vst [vmem:[%s3 + $0x28] sm:$0xff] %v134
  %157 = vst [vmem:[%s3 + $0x30] sm:$0xff] %v96
  %158 = vst [vmem:[%s3 + $0x38] sm:$0xff] %v137
  %159 = vst [vmem:[%s3 + $0x40] sm:$0xff] %v99
  %160 = vst [vmem:[%s3 + $0x48] sm:$0xff] %v140
  %161 = vst [vmem:[%s3 + $0x50] sm:$0xff] %v102
  %162 = vst [vmem:[%s3 + $0x58] sm:$0xff] %v143
  %163 = vst [vmem:[%s3 + $0x60] sm:$0xff] %v105
  %164 = vst [vmem:[%s3 + $0x68] sm:$0xff] %v146
  %165 = vst [vmem:[%s3 + $0x70] sm:$0xff] %v108
  %166 = vst [vmem:[%s3 + $0x78] sm:$0xff] %v149
  // Predicated region
  $region14: #{lstm_model_forward.9} parent=0 // pred_check
    _
  $region15: #{lstm_model_forward.9} parent=0 // pred_check_branch
    %168 = sbr.rel (0) target = $region17
  $region16: #{lstm_model_forward.9} parent=0 // pred_region
    _
  $region17: #{lstm_model_forward.9} parent=0 // pred_fallthru
    _
  // Predicated region
  $region18: #{lstm_model_forward.9} parent=0 // pred_check
    _
  $region19: #{lstm_model_forward.9} parent=0 // pred_check_branch
    %170 = sbr.rel (0) target = $region21
  $region20: #{lstm_model_forward.9} parent=0 // pred_region
    _
  $region21: #{lstm_model_forward.9} parent=0 // pred_fallthru
    _

// kernel: lstm_model_forward.11
$region0: #{lstm_model_forward.11}
  #allocation0 [shape = 'u32[]', space=smem, size = 0x4, offset = 0x4, fixed_abs, tag = 'smem constant byte address 0x4 - core index']
  #allocation1 [shape = 'u32[72,128]{1,0:T(1,128)}', space=vmem, size = 0x9000, scoped, tag = 'internal scratch']
  %s0 = inlined_call_operand.vmem [shape: f32[64,64], index: 0, kind: input, shape index: {}]
  %s1 = inlined_call_operand.vmem [shape: f32[64,8], index: 1, kind: input, shape index: {}]
  %s2 = inlined_call_operand.vmem [shape: f32[1,8], index: 2, kind: input, shape index: {}]
  %s3 = inlined_call_operand.vmem [shape: f32[64,8], index: 3, kind: output, shape index: {}]
  %s4 = sld [smem:[#allocation0]]
  $region22: #{lstm_model_forward.11} parent=0
    _
  %s6 = ssub.s32 1, %s4
  %s7 = scalar_select 0, %s6, %s4
  // Predicated region
  $region2: #{lstm_model_forward.11} parent=0 // pred_check
    _
  $region3: #{lstm_model_forward.11} parent=0 // pred_check_branch
    %9 = sbr.rel (0) target = $region5
  $region4: #{lstm_model_forward.11} parent=0 // pred_region
    _
  $region5: #{lstm_model_forward.11} parent=0 // pred_fallthru
    _
  // Predicated region
  $region6: #{lstm_model_forward.11} parent=0 // pred_check
    _
  $region7: #{lstm_model_forward.11} parent=0 // pred_check_branch
    %11 = sbr.rel (0) target = $region9
  $region8: #{lstm_model_forward.11} parent=0 // pred_region
    _
  $region9: #{lstm_model_forward.11} parent=0 // pred_fallthru
    _
  // Predicated region
  $region10: #{lstm_model_forward.11} parent=0 // pred_check
    _
  $region11: #{lstm_model_forward.11} parent=0 // pred_check_branch
    %13 = sbr.rel (0) target = $region13
  $region12: #{lstm_model_forward.11} parent=0 // pred_region
    _
  $region13: #{lstm_model_forward.11} parent=0 // pred_fallthru
    _
  %v14 = vld [vmem:[%s0] sm:$0xff]
  %v15 = vld [vmem:[%s0 + $0x8] sm:$0xff]
  %v16 = vld [vmem:[%s0 + $0x10] sm:$0xff]
  %v17 = vld [vmem:[%s0 + $0x18] sm:$0xff]
  %v18 = vld [vmem:[%s0 + $0x20] sm:$0xff]
  %v19 = vld [vmem:[%s0 + $0x28] sm:$0xff]
  %v20 = vld [vmem:[%s0 + $0x30] sm:$0xff]
  %v21 = vld [vmem:[%s0 + $0x38] sm:$0xff]
  %v22 = vld [vmem:[%s1] sm:$0xff]
  %v23 = vld [vmem:[%s1 + $0x8] sm:$0xff]
  %v24 = vld [vmem:[%s1 + $0x10] sm:$0xff]
  %v25 = vld [vmem:[%s1 + $0x18] sm:$0xff]
  %v26 = vld [vmem:[%s1 + $0x20] sm:$0xff]
  %v27 = vld [vmem:[%s1 + $0x28] sm:$0xff]
  %v28 = vld [vmem:[%s1 + $0x30] sm:$0xff]
  %v29 = vld [vmem:[%s1 + $0x38] sm:$0xff]
  %v30 = vld [vmem:[%s2] sm:$0x1]
  %v32 = vperm.slane %v30, 0
  %vm34 = vcmask 523264
  %v36 = vsel %vm34, %v14, 0
  %v39 = vsel %vm34, %v15, 0
  %v42 = vsel %vm34, %v16, 0
  %v45 = vsel %vm34, %v17, 0
  %v48 = vsel %vm34, %v18, 0
  %v51 = vsel %vm34, %v19, 0
  %v54 = vsel %vm34, %v20, 0
  %v57 = vsel %vm34, %v21, 0
  %59 = vmatpush.msra.mxu0 0.0
  %60 = vmatpush.msra.mxu0 0.0
  %61 = vmatpush.msra.mxu0 0.0
  %62 = vmatpush.msra.mxu0 0.0
  %63 = vmatpush.msra.mxu0 0.0
  %64 = vmatpush.msra.mxu0 0.0
  %65 = vmatpush.msra.mxu0 0.0
  %66 = vmatpush.msra.mxu0 0.0
  %67 = vmatpush.msra.mxu0 %v29
  %68 = vmatpush.msra.mxu0 %v28
  %69 = vmatpush.msra.mxu0 %v27
  %70 = vmatpush.msra.mxu0 %v26
  %71 = vmatpush.msra.mxu0 %v25
  %72 = vmatpush.msra.mxu0 %v24
  %73 = vmatpush.msra.mxu0 %v23
  %74 = vmatpush.msra.mxu0 %v22
  %75 = vmatmul.f32.gmra.mxu0 %v36
  %v76 = vpop.f32.mrf.mxu0
  %v77 = vadd.f32 %v32, %v76
  %78 = vmatmul.f32.gmra.mxu0 %v39
  %v79 = vpop.f32.mrf.mxu0
  %v80 = vadd.f32 %v32, %v79
  %81 = vmatmul.f32.gmra.mxu0 %v42
  %v82 = vpop.f32.mrf.mxu0
  %v83 = vadd.f32 %v32, %v82
  %84 = vmatmul.f32.gmra.mxu0 %v45
  %v85 = vpop.f32.mrf.mxu0
  %v86 = vadd.f32 %v32, %v85
  %87 = vmatmul.f32.gmra.mxu0 %v48
  %v88 = vpop.f32.mrf.mxu0
  %v89 = vadd.f32 %v32, %v88
  %90 = vmatmul.f32.gmra.mxu0 %v51
  %v91 = vpop.f32.mrf.mxu0
  %v92 = vadd.f32 %v32, %v91
  %93 = vmatmul.f32.gmra.mxu0 %v54
  %v94 = vpop.f32.mrf.mxu0
  %v95 = vadd.f32 %v32, %v94
  %96 = vmatmul.f32.gmra.mxu0 %v57
  %v97 = vpop.f32.mrf.mxu0
  %v98 = vadd.f32 %v32, %v97
  %99 = vdwg.mxu0
  %vm100 = vcmask 64512
  %101 = vst.msk [vmem:[%s3] sm:$0xff] %vm100, %v77
  %102 = vst.msk [vmem:[%s3 + $0x8] sm:$0xff] %vm100, %v80
  %103 = vst.msk [vmem:[%s3 + $0x10] sm:$0xff] %vm100, %v83
  %104 = vst.msk [vmem:[%s3 + $0x18] sm:$0xff] %vm100, %v86
  %105 = vst.msk [vmem:[%s3 + $0x20] sm:$0xff] %vm100, %v89
  %106 = vst.msk [vmem:[%s3 + $0x28] sm:$0xff] %vm100, %v92
  %107 = vst.msk [vmem:[%s3 + $0x30] sm:$0xff] %vm100, %v95
  %108 = vst.msk [vmem:[%s3 + $0x38] sm:$0xff] %vm100, %v98
  // Predicated region
  $region14: #{lstm_model_forward.11} parent=0 // pred_check
    _
  $region15: #{lstm_model_forward.11} parent=0 // pred_check_branch
    %110 = sbr.rel (0) target = $region17
  $region16: #{lstm_model_forward.11} parent=0 // pred_region
    _
  $region17: #{lstm_model_forward.11} parent=0 // pred_fallthru
    _
  // Predicated region
  $region18: #{lstm_model_forward.11} parent=0 // pred_check
    _
  $region19: #{lstm_model_forward.11} parent=0 // pred_check_branch
    %112 = sbr.rel (0) target = $region21
  $region20: #{lstm_model_forward.11} parent=0 // pred_region
    _
  $region21: #{lstm_model_forward.11} parent=0 // pred_fallthru
    _

// kernel: lstm_model_forward.8
$region0: #{lstm_model_forward.8}
  #allocation0 [shape = 'u32[]', space=smem, size = 0x4, offset = 0x4, fixed_abs, tag = 'smem constant byte address 0x4 - core index']
  #allocation1 [shape = 'u32[72,128]{1,0:T(1,128)}', space=vmem, size = 0x9000, scoped, tag = 'internal scratch']
  #allocation2 [shape = 'f32[8,32]{1,0:T(8,128)}', space=vmem, size = 0x1000, scoped, tag = 'scratch operand']
  #allocation3 [shape = 'f32[8,32]{1,0:T(8,128)}', space=vmem, size = 0x1000, scoped, tag = 'scratch operand']
  #allocation4 [shape = 'f32[8,32]{1,0:T(8,128)}', space=vmem, size = 0x1000, scoped, tag = 'scratch operand']
  #allocation5 [shape = 'f32[8,32]{1,0:T(8,128)}', space=vmem, size = 0x1000, scoped, tag = 'scratch operand']
  %s0 = inlined_call_operand.vmem [shape: f32[8,8,128], index: 0, kind: input, shape index: {}]
  %s1 = inlined_call_operand.vmem [shape: f32[8,8,128], index: 1, kind: input, shape index: {}]
  %s2 = inlined_call_operand.vmem [shape: f32[32,128], index: 2, kind: input, shape index: {}]
  %s3 = inlined_call_operand.vmem [shape: f32[32,128], index: 3, kind: input, shape index: {}]
  %s4 = inlined_call_operand.vmem [shape: f32[8,8,32], index: 4, kind: output, shape index: {0}]
  %s5 = inlined_call_operand.vmem [shape: f32[8,8,32], index: 5, kind: output, shape index: {1}]
  %6 = xla_tuple %s4, %s5
  %s7 = sld [smem:[#allocation0]]
  $region38: #{lstm_model_forward.8} parent=0
    _
  %s9 = ssub.s32 1, %s7
  %s10 = scalar_select 0, %s9, %s7
  // Predicated region
  $region2: #{lstm_model_forward.8} parent=0 // pred_check
    _
  $region3: #{lstm_model_forward.8} parent=0 // pred_check_branch
    %12 = sbr.rel (0) target = $region5
  $region4: #{lstm_model_forward.8} parent=0 // pred_region
    _
  $region5: #{lstm_model_forward.8} parent=0 // pred_fallthru
    _
  // Predicated region
  $region6: #{lstm_model_forward.8} parent=0 // pred_check
    _
  $region7: #{lstm_model_forward.8} parent=0 // pred_check_branch
    %14 = sbr.rel (0) target = $region9
  $region8: #{lstm_model_forward.8} parent=0 // pred_region
    %s15 = ssub.s32 0, 0
    %s16 = smul.u32 8, %s15
    %p17 = scmp.lt.s32.totalorder %s16, 7
    %s18 = scalar_select %p17, %s16, 7
    %s19 = smul.addr %s18, 8
    %s20 = scalar_lea.vmem %s1, %s19
    %s21 = ssub.s32 0, 0
    %s22 = smul.u32 8, %s21
  $region9: #{lstm_model_forward.8} parent=0 // pred_fallthru
    _
  // Predicated region
  $region10: #{lstm_model_forward.8} parent=0 // pred_check
    _
  $region11: #{lstm_model_forward.8} parent=0 // pred_check_branch
    %24 = sbr.rel (0) target = $region13
  $region12: #{lstm_model_forward.8} parent=0 // pred_region
    _
  $region13: #{lstm_model_forward.8} parent=0 // pred_fallthru
    _
  // Predicated region
  $region14: #{lstm_model_forward.8} parent=0 // pred_check
    _
  $region15: #{lstm_model_forward.8} parent=0 // pred_check_branch
    %26 = sbr.rel (0) target = $region17
  $region16: #{lstm_model_forward.8} parent=0 // pred_region
    _
  $region17: #{lstm_model_forward.8} parent=0 // pred_fallthru
    _
  %s27 = ssub.s32 0, 0
  %s28 = smul.u32 8, %s27
  %p29 = scmp.lt.s32.totalorder %s28, 7
  %s30 = scalar_select %p29, %s28, 7
  %s31 = smul.addr %s30, 8
  %s32 = scalar_lea.vmem %s1, %s31
  %s33 = ssub.s32 0, 0
  %s34 = smul.u32 8, %s33
  %p35 = scmp.lt.s32.totalorder %s34, 7
  %s36 = scalar_select %p35, %s34, 7
  %s37 = smul.addr %s36, 8
  %s38 = scalar_lea.vmem %s5, %s37
  %s39 = ssub.s32 0, 0
  %s40 = smul.u32 8, %s39
  %p41 = scmp.lt.s32.totalorder %s40, 7
  %s42 = scalar_select %p41, %s40, 7
  %s43 = smul.addr %s42, 8
  %s44 = scalar_lea.vmem %s1, %s43
  %s45 = ssub.s32 0, 0
  %s46 = smul.u32 8, %s45
  %s47 = ssub.s32 0, 0
  %s48 = smul.u32 8, %s47
  %p49 = scmp.lt.s32.totalorder %s48, 7
  %s50 = scalar_select %p49, %s48, 7
  %s51 = smul.addr %s50, 8
  %s52 = scalar_lea.vmem %s5, %s51
  %s53 = ssub.s32 0, 0
  %s54 = smul.u32 8, %s53
  %p55 = scmp.eq.s32.totalorder 0, 0
  // Predicated region
  $region18: #{lstm_model_forward.8} parent=0 // pred_check
    %p56 = pneg %p55
  $region19: #{lstm_model_forward.8} parent=0 // pred_check_branch
    %58 = sbr.rel (%p56) target = $region21
  $region20: #{lstm_model_forward.8} parent=0 // pred_region
    %vm59 = vcmask 261120
    %60 = vst.msk [vmem:[#allocation2] sm:$0xff] %vm59, 0.0
    %61 = vst.msk [vmem:[#allocation3] sm:$0xff] %vm59, 0.0
    %62 = vst.msk [vmem:[#allocation4] sm:$0xff] %vm59, 0.0
    %63 = vst.msk [vmem:[#allocation5] sm:$0xff] %vm59, 0.0
  $region21: #{lstm_model_forward.8} parent=0 // pred_fallthru
    _
  %v64 = vld [vmem:[%s2] sm:$0xff]
  %v65 = vld [vmem:[%s2 + $0x8] sm:$0xff]
  %v66 = vld [vmem:[%s2 + $0x10] sm:$0xff]
  %v67 = vld [vmem:[%s2 + $0x18] sm:$0xff]
  %v68 = vld [vmem:[%s3] sm:$0xff]
  %v69 = vld [vmem:[%s3 + $0x8] sm:$0xff]
  %v70 = vld [vmem:[%s3 + $0x10] sm:$0xff]
  %v71 = vld [vmem:[%s3 + $0x18] sm:$0xff]
  %v72 = vld [vmem:[%s0] sm:$0xff]
  %v73 = vld [vmem:[#allocation2] sm:$0xff]
  %v74 = vld [vmem:[#allocation3] sm:$0xff]
  %vm75 = vcmask 261120
  %v77 = vsel %vm75, %v73, 0
  %79 = vmatpush.msra.mxu0 0.0
  %80 = vmatpush.msra.mxu0 0.0
  %81 = vmatpush.msra.mxu0 0.0
  %82 = vmatpush.msra.mxu0 0.0
  %83 = vmatpush.msra.mxu0 0.0
  %84 = vmatpush.msra.mxu0 0.0
  %85 = vmatpush.msra.mxu0 0.0
  %86 = vmatpush.msra.mxu0 0.0
  %87 = vmatpush.msra.mxu0 0.0
  %88 = vmatpush.msra.mxu0 0.0
  %89 = vmatpush.msra.mxu0 0.0
  %90 = vmatpush.msra.mxu0 0.0
  %91 = vmatpush.msra.mxu0 %v67
  %92 = vmatpush.msra.mxu0 %v66
  %93 = vmatpush.msra.mxu0 %v65
  %94 = vmatpush.msra.mxu0 %v64
  %95 = vmatmul.f32.gmra.mxu0 %v77
  %v96 = vpop.f32.mrf.mxu0
  %v97 = vadd.f32 0.0, %v96
  %98 = vdwg.mxu0
  %v99 = vadd.f32 %v72, %v97
  %v100 = vxor.u32 %v99, 2147483648
  %v101 = vmul.f32 %v100, 1.442695
  %v102 = vpow.pop %v101
  %v103 = vadd.f32 %v102, 1.0
  %v104 = vrcp.pop %v103
  %v105 = vmul.f32 %v103, %v104
  %v106 = vsub.f32 1.0, %v105
  %v107 = vmul.f32 %v104, %v106
  %v108 = vadd.f32 %v104, %v107
  %vm109 = vweird.f32 %v103
  %vm110 = vweird.f32 %v104
  %vm111 = vmor %vm109, %vm110
  %v112 = vsel %vm111, %v104, %v108
  %v113 = vand.u32 2147483647, %v103
  %vm114 = vcmp.eq.f32.partialorder %v113, 8.507059e+37
  %v115 = vand.u32 %v103, 2147483648
  %v116 = vor.u32 1.1754944e-38, %v115
  %v117 = vsel %vm114, %v116, %v112
  %v118 = vmul.f32 1.0, %v117
  %v119 = vtanh.pop %v99
  %121 = vrot.lane.b32.xlu0 %v74, 32
  %v122 = vpop.permute.xlu0 %121
  %v124 = vmul.f32 %v118, %v122
  %126 = vrot.lane.b32.xlu0 %v119, 64
  %v127 = vpop.permute.xlu0 %126
  %v129 = vmul.f32 %v118, %v127
  %131 = vrot.lane.b32.xlu0 %v129, 32
  %v132 = vpop.permute.xlu0 %131
  %v134 = vadd.f32 %v124, %v132
  %v135 = vtanh.pop %v134
  %137 = vrot.lane.b32.xlu0 %v135, 64
  %v138 = vpop.permute.xlu0 %137
  %v140 = vmul.f32 %v118, %v138
  %142 = vrot.lane.b32.xlu0 %v140, 32
  %v143 = vpop.permute.xlu0 %142
  %145 = vst.msk [vmem:[#allocation2] sm:$0xff] %vm75, %v143
  %147 = vrot.lane.b32.xlu0 %v134, 96
  %v148 = vpop.permute.xlu0 %147
  %150 = vst.msk [vmem:[#allocation3] sm:$0xff] %vm75, %v148
  %151 = vst.msk [vmem:[%s4] sm:$0xff] %vm75, %v143
  %s152 = scalar_lea.vmem %s44, 56
  %v153 = vld [vmem:[%s152] sm:$0xff]
  %v154 = vld [vmem:[#allocation4] sm:$0xff]
  %v155 = vld [vmem:[#allocation5] sm:$0xff]
  %v157 = vsel %vm75, %v154, 0
  %159 = vmatpush.msra.mxu0 0.0
  %160 = vmatpush.msra.mxu0 0.0
  %161 = vmatpush.msra.mxu0 0.0
  %162 = vmatpush.msra.mxu0 0.0
  %163 = vmatpush.msra.mxu0 0.0
  %164 = vmatpush.msra.mxu0 0.0
  %165 = vmatpush.msra.mxu0 0.0
  %166 = vmatpush.msra.mxu0 0.0
  %167 = vmatpush.msra.mxu0 0.0
  %168 = vmatpush.msra.mxu0 0.0
  %169 = vmatpush.msra.mxu0 0.0
  %170 = vmatpush.msra.mxu0 0.0
  %171 = vmatpush.msra.mxu0 %v71
  %172 = vmatpush.msra.mxu0 %v70
  %173 = vmatpush.msra.mxu0 %v69
  %174 = vmatpush.msra.mxu0 %v68
  %175 = vmatmul.f32.gmra.mxu0 %v157
  %v176 = vpop.f32.mrf.mxu0
  %v177 = vadd.f32 0.0, %v176
  %178 = vdwg.mxu0
  %v179 = vadd.f32 %v153, %v177
  %v180 = vxor.u32 %v179, 2147483648
  %v181 = vmul.f32 %v180, 1.442695
  %v182 = vpow.pop %v181
  %v183 = vadd.f32 %v182, 1.0
  %v184 = vrcp.pop %v183
  %v185 = vmul.f32 %v183, %v184
  %v186 = vsub.f32 1.0, %v185
  %v187 = vmul.f32 %v184, %v186
  %v188 = vadd.f32 %v184, %v187
  %vm189 = vweird.f32 %v183
  %vm190 = vweird.f32 %v184
  %vm191 = vmor %vm189, %vm190
  %v192 = vsel %vm191, %v184, %v188
  %v193 = vand.u32 2147483647, %v183
  %vm194 = vcmp.eq.f32.partialorder %v193, 8.507059e+37
  %v195 = vand.u32 %v183, 2147483648
  %v196 = vor.u32 1.1754944e-38, %v195
  %v197 = vsel %vm194, %v196, %v192
  %v198 = vmul.f32 1.0, %v197
  %v199 = vtanh.pop %v179
  %201 = vrot.lane.b32.xlu0 %v155, 32
  %v202 = vpop.permute.xlu0 %201
  %v204 = vmul.f32 %v198, %v202
  %206 = vrot.lane.b32.xlu0 %v199, 64
  %v207 = vpop.permute.xlu0 %206
  %v209 = vmul.f32 %v198, %v207
  %211 = vrot.lane.b32.xlu0 %v209, 32
  %v212 = vpop.permute.xlu0 %211
  %v214 = vadd.f32 %v204, %v212
  %v215 = vtanh.pop %v214
  %217 = vrot.lane.b32.xlu0 %v215, 64
  %v218 = vpop.permute.xlu0 %217
  %v220 = vmul.f32 %v198, %v218
  %222 = vrot.lane.b32.xlu0 %v220, 32
  %v223 = vpop.permute.xlu0 %222
  %225 = vst.msk [vmem:[#allocation4] sm:$0xff] %vm75, %v223
  %227 = vrot.lane.b32.xlu0 %v214, 96
  %v228 = vpop.permute.xlu0 %227
  %230 = vst.msk [vmem:[#allocation5] sm:$0xff] %vm75, %v228
  %s231 = scalar_lea.vmem %s52, 56
  %232 = vst.msk [vmem:[%s231] sm:$0xff] %vm75, %v223
  %s233 = scalar_lea.vmem %s0, 8
  %v234 = vld [vmem:[%s233] sm:$0xff]
  %v235 = vld [vmem:[#allocation2] sm:$0xff]
  %v236 = vld [vmem:[#allocation3] sm:$0xff]
  %v238 = vsel %vm75, %v235, 0
  %240 = vmatpush.msra.mxu0 0.0
  %241 = vmatpush.msra.mxu0 0.0
  %242 = vmatpush.msra.mxu0 0.0
  %243 = vmatpush.msra.mxu0 0.0
  %244 = vmatpush.msra.mxu0 0.0
  %245 = vmatpush.msra.mxu0 0.0
  %246 = vmatpush.msra.mxu0 0.0
  %247 = vmatpush.msra.mxu0 0.0
  %248 = vmatpush.msra.mxu0 0.0
  %249 = vmatpush.msra.mxu0 0.0
  %250 = vmatpush.msra.mxu0 0.0
  %251 = vmatpush.msra.mxu0 0.0
  %252 = vmatpush.msra.mxu0 %v67
  %253 = vmatpush.msra.mxu0 %v66
  %254 = vmatpush.msra.mxu0 %v65
  %255 = vmatpush.msra.mxu0 %v64
  %256 = vmatmul.f32.gmra.mxu0 %v238
  %v257 = vpop.f32.mrf.mxu0
  %v258 = vadd.f32 0.0, %v257
  %259 = vdwg.mxu0
  %v260 = vadd.f32 %v234, %v258
  %v261 = vxor.u32 %v260, 2147483648
  %v262 = vmul.f32 %v261, 1.442695
  %v263 = vpow.pop %v262
  %v264 = vadd.f32 %v263, 1.0
  %v265 = vrcp.pop %v264
  %v266 = vmul.f32 %v264, %v265
  %v267 = vsub.f32 1.0, %v266
  %v268 = vmul.f32 %v265, %v267
  %v269 = vadd.f32 %v265, %v268
  %vm270 = vweird.f32 %v264
  %vm271 = vweird.f32 %v265
  %vm272 = vmor %vm270, %vm271
  %v273 = vsel %vm272, %v265, %v269
  %v274 = vand.u32 2147483647, %v264
  %vm275 = vcmp.eq.f32.partialorder %v274, 8.507059e+37
  %v276 = vand.u32 %v264, 2147483648
  %v277 = vor.u32 1.1754944e-38, %v276
  %v278 = vsel %vm275, %v277, %v273
  %v279 = vmul.f32 1.0, %v278
  %v280 = vtanh.pop %v260
  %282 = vrot.lane.b32.xlu0 %v236, 32
  %v283 = vpop.permute.xlu0 %282
  %v285 = vmul.f32 %v279, %v283
  %287 = vrot.lane.b32.xlu0 %v280, 64
  %v288 = vpop.permute.xlu0 %287
  %v290 = vmul.f32 %v279, %v288
  %292 = vrot.lane.b32.xlu0 %v290, 32
  %v293 = vpop.permute.xlu0 %292
  %v295 = vadd.f32 %v285, %v293
  %v296 = vtanh.pop %v295
  %298 = vrot.lane.b32.xlu0 %v296, 64
  %v299 = vpop.permute.xlu0 %298
  %v301 = vmul.f32 %v279, %v299
  %303 = vrot.lane.b32.xlu0 %v301, 32
  %v304 = vpop.permute.xlu0 %303
  %306 = vst.msk [vmem:[#allocation2] sm:$0xff] %vm75, %v304
  %308 = vrot.lane.b32.xlu0 %v295, 96
  %v309 = vpop.permute.xlu0 %308
  %311 = vst.msk [vmem:[#allocation3] sm:$0xff] %vm75, %v309
  %s312 = scalar_lea.vmem %s4, 8
  %313 = vst.msk [vmem:[%s312] sm:$0xff] %vm75, %v304
  %s314 = scalar_lea.vmem %s44, 48
  %v315 = vld [vmem:[%s314] sm:$0xff]
  %v316 = vld [vmem:[#allocation4] sm:$0xff]
  %v317 = vld [vmem:[#allocation5] sm:$0xff]
  %v319 = vsel %vm75, %v316, 0
  %321 = vmatpush.msra.mxu0 0.0
  %322 = vmatpush.msra.mxu0 0.0
  %323 = vmatpush.msra.mxu0 0.0
  %324 = vmatpush.msra.mxu0 0.0
  %325 = vmatpush.msra.mxu0 0.0
  %326 = vmatpush.msra.mxu0 0.0
  %327 = vmatpush.msra.mxu0 0.0
  %328 = vmatpush.msra.mxu0 0.0
  %329 = vmatpush.msra.mxu0 0.0
  %330 = vmatpush.msra.mxu0 0.0
  %331 = vmatpush.msra.mxu0 0.0
  %332 = vmatpush.msra.mxu0 0.0
  %333 = vmatpush.msra.mxu0 %v71
  %334 = vmatpush.msra.mxu0 %v70
  %335 = vmatpush.msra.mxu0 %v69
  %336 = vmatpush.msra.mxu0 %v68
  %337 = vmatmul.f32.gmra.mxu0 %v319
  %v338 = vpop.f32.mrf.mxu0
  %v339 = vadd.f32 0.0, %v338
  %340 = vdwg.mxu0
  %v341 = vadd.f32 %v315, %v339
  %v342 = vxor.u32 %v341, 2147483648
  %v343 = vmul.f32 %v342, 1.442695
  %v344 = vpow.pop %v343
  %v345 = vadd.f32 %v344, 1.0
  %v346 = vrcp.pop %v345
  %v347 = vmul.f32 %v345, %v346
  %v348 = vsub.f32 1.0, %v347
  %v349 = vmul.f32 %v346, %v348
  %v350 = vadd.f32 %v346, %v349
  %vm351 = vweird.f32 %v345
  %vm352 = vweird.f32 %v346
  %vm353 = vmor %vm351, %vm352
  %v354 = vsel %vm353, %v346, %v350
  %v355 = vand.u32 2147483647, %v345
  %vm356 = vcmp.eq.f32.partialorder %v355, 8.507059e+37
  %v357 = vand.u32 %v345, 2147483648
  %v358 = vor.u32 1.1754944e-38, %v357
  %v359 = vsel %vm356, %v358, %v354
  %v360 = vmul.f32 1.0, %v359
  %v361 = vtanh.pop %v341
  %363 = vrot.lane.b32.xlu0 %v317, 32
  %v364 = vpop.permute.xlu0 %363
  %v366 = vmul.f32 %v360, %v364
  %368 = vrot.lane.b32.xlu0 %v361, 64
  %v369 = vpop.permute.xlu0 %368
  %v371 = vmul.f32 %v360, %v369
  %373 = vrot.lane.b32.xlu0 %v371, 32
  %v374 = vpop.permute.xlu0 %373
  %v376 = vadd.f32 %v366, %v374
  %v377 = vtanh.pop %v376
  %379 = vrot.lane.b32.xlu0 %v377, 64
  %v380 = vpop.permute.xlu0 %379
  %v382 = vmul.f32 %v360, %v380
  %384 = vrot.lane.b32.xlu0 %v382, 32
  %v385 = vpop.permute.xlu0 %384
  %387 = vst.msk [vmem:[#allocation4] sm:$0xff] %vm75, %v385
  %389 = vrot.lane.b32.xlu0 %v376, 96
  %v390 = vpop.permute.xlu0 %389
  %392 = vst.msk [vmem:[#allocation5] sm:$0xff] %vm75, %v390
  %s393 = scalar_lea.vmem %s52, 48
  %394 = vst.msk [vmem:[%s393] sm:$0xff] %vm75, %v385
  %s395 = scalar_lea.vmem %s0, 16
  %v396 = vld [vmem:[%s395] sm:$0xff]
  %v397 = vld [vmem:[#allocation2] sm:$0xff]
  %v398 = vld [vmem:[#allocation3] sm:$0xff]
  %v400 = vsel %vm75, %v397, 0
  %402 = vmatpush.msra.mxu0 0.0
  %403 = vmatpush.msra.mxu0 0.0
  %404 = vmatpush.msra.mxu0 0.0
  %405 = vmatpush.msra.mxu0 0.0
  %406 = vmatpush.msra.mxu0 0.0
  %407 = vmatpush.msra.mxu0 0.0
  %408 = vmatpush.msra.mxu0 0.0
  %409 = vmatpush.msra.mxu0 0.0
  %410 = vmatpush.msra.mxu0 0.0
  %411 = vmatpush.msra.mxu0 0.0
  %412 = vmatpush.msra.mxu0 0.0
  %413 = vmatpush.msra.mxu0 0.0
  %414 = vmatpush.msra.mxu0 %v67
  %415 = vmatpush.msra.mxu0 %v66
  %416 = vmatpush.msra.mxu0 %v65
  %417 = vmatpush.msra.mxu0 %v64
  %418 = vmatmul.f32.gmra.mxu0 %v400
  %v419 = vpop.f32.mrf.mxu0
  %v420 = vadd.f32 0.0, %v419
  %421 = vdwg.mxu0
  %v422 = vadd.f32 %v396, %v420
  %v423 = vxor.u32 %v422, 2147483648
  %v424 = vmul.f32 %v423, 1.442695
  %v425 = vpow.pop %v424
  %v426 = vadd.f32 %v425, 1.0
  %v427 = vrcp.pop %v426
  %v428 = vmul.f32 %v426, %v427
  %v429 = vsub.f32 1.0, %v428
  %v430 = vmul.f32 %v427, %v429
  %v431 = vadd.f32 %v427, %v430
  %vm432 = vweird.f32 %v426
  %vm433 = vweird.f32 %v427
  %vm434 = vmor %vm432, %vm433
  %v435 = vsel %vm434, %v427, %v431
  %v436 = vand.u32 2147483647, %v426
  %vm437 = vcmp.eq.f32.partialorder %v436, 8.507059e+37
  %v438 = vand.u32 %v426, 2147483648
  %v439 = vor.u32 1.1754944e-38, %v438
  %v440 = vsel %vm437, %v439, %v435
  %v441 = vmul.f32 1.0, %v440
  %v442 = vtanh.pop %v422
  %444 = vrot.lane.b32.xlu0 %v398, 32
  %v445 = vpop.permute.xlu0 %444
  %v447 = vmul.f32 %v441, %v445
  %449 = vrot.lane.b32.xlu0 %v442, 64
  %v450 = vpop.permute.xlu0 %449
  %v452 = vmul.f32 %v441, %v450
  %454 = vrot.lane.b32.xlu0 %v452, 32
  %v455 = vpop.permute.xlu0 %454
  %v457 = vadd.f32 %v447, %v455
  %v458 = vtanh.pop %v457
  %460 = vrot.lane.b32.xlu0 %v458, 64
  %v461 = vpop.permute.xlu0 %460
  %v463 = vmul.f32 %v441, %v461
  %465 = vrot.lane.b32.xlu0 %v463, 32
  %v466 = vpop.permute.xlu0 %465
  %468 = vst.msk [vmem:[#allocation2] sm:$0xff] %vm75, %v466
  %470 = vrot.lane.b32.xlu0 %v457, 96
  %v471 = vpop.permute.xlu0 %470
  %473 = vst.msk [vmem:[#allocation3] sm:$0xff] %vm75, %v471
  %s474 = scalar_lea.vmem %s4, 16
  %475 = vst.msk [vmem:[%s474] sm:$0xff] %vm75, %v466
  %s476 = scalar_lea.vmem %s44, 40
  %v477 = vld [vmem:[%s476] sm:$0xff]
  %v478 = vld [vmem:[#allocation4] sm:$0xff]
  %v479 = vld [vmem:[#allocation5] sm:$0xff]
  %v481 = vsel %vm75, %v478, 0
  %483 = vmatpush.msra.mxu0 0.0
  %484 = vmatpush.msra.mxu0 0.0
  %485 = vmatpush.msra.mxu0 0.0
  %486 = vmatpush.msra.mxu0 0.0
  %487 = vmatpush.msra.mxu0 0.0
  %488 = vmatpush.msra.mxu0 0.0
  %489 = vmatpush.msra.mxu0 0.0
  %490 = vmatpush.msra.mxu0 0.0
  %491 = vmatpush.msra.mxu0 0.0
  %492 = vmatpush.msra.mxu0 0.0
  %493 = vmatpush.msra.mxu0 0.0
  %494 = vmatpush.msra.mxu0 0.0
  %495 = vmatpush.msra.mxu0 %v71
  %496 = vmatpush.msra.mxu0 %v70
  %497 = vmatpush.msra.mxu0 %v69
  %498 = vmatpush.msra.mxu0 %v68
  %499 = vmatmul.f32.gmra.mxu0 %v481
  %v500 = vpop.f32.mrf.mxu0
  %v501 = vadd.f32 0.0, %v500
  %502 = vdwg.mxu0
  %v503 = vadd.f32 %v477, %v501
  %v504 = vxor.u32 %v503, 2147483648
  %v505 = vmul.f32 %v504, 1.442695
  %v506 = vpow.pop %v505
  %v507 = vadd.f32 %v506, 1.0
  %v508 = vrcp.pop %v507
  %v509 = vmul.f32 %v507, %v508
  %v510 = vsub.f32 1.0, %v509
  %v511 = vmul.f32 %v508, %v510
  %v512 = vadd.f32 %v508, %v511
  %vm513 = vweird.f32 %v507
  %vm514 = vweird.f32 %v508
  %vm515 = vmor %vm513, %vm514
  %v516 = vsel %vm515, %v508, %v512
  %v517 = vand.u32 2147483647, %v507
  %vm518 = vcmp.eq.f32.partialorder %v517, 8.507059e+37
  %v519 = vand.u32 %v507, 2147483648
  %v520 = vor.u32 1.1754944e-38, %v519
  %v521 = vsel %vm518, %v520, %v516
  %v522 = vmul.f32 1.0, %v521
  %v523 = vtanh.pop %v503
  %525 = vrot.lane.b32.xlu0 %v479, 32
  %v526 = vpop.permute.xlu0 %525
  %v528 = vmul.f32 %v522, %v526
  %530 = vrot.lane.b32.xlu0 %v523, 64
  %v531 = vpop.permute.xlu0 %530
  %v533 = vmul.f32 %v522, %v531
  %535 = vrot.lane.b32.xlu0 %v533, 32
  %v536 = vpop.permute.xlu0 %535
  %v538 = vadd.f32 %v528, %v536
  %v539 = vtanh.pop %v538
  %541 = vrot.lane.b32.xlu0 %v539, 64
  %v542 = vpop.permute.xlu0 %541
  %v544 = vmul.f32 %v522, %v542
  %546 = vrot.lane.b32.xlu0 %v544, 32
  %v547 = vpop.permute.xlu0 %546
  %549 = vst.msk [vmem:[#allocation4] sm:$0xff] %vm75, %v547
  %551 = vrot.lane.b32.xlu0 %v538, 96
  %v552 = vpop.permute.xlu0 %551
  %554 = vst.msk [vmem:[#allocation5] sm:$0xff] %vm75, %v552
  %s555 = scalar_lea.vmem %s52, 40
  %556 = vst.msk [vmem:[%s555] sm:$0xff] %vm75, %v547
  %s557 = scalar_lea.vmem %s0, 24
  %v558 = vld [vmem:[%s557] sm:$0xff]
  %v559 = vld [vmem:[#allocation2] sm:$0xff]
  %v560 = vld [vmem:[#allocation3] sm:$0xff]
  %v562 = vsel %vm75, %v559, 0
  %564 = vmatpush.msra.mxu0 0.0
  %565 = vmatpush.msra.mxu0 0.0
  %566 = vmatpush.msra.mxu0 0.0
  %567 = vmatpush.msra.mxu0 0.0
  %568 = vmatpush.msra.mxu0 0.0
  %569 = vmatpush.msra.mxu0 0.0
  %570 = vmatpush.msra.mxu0 0.0
  %571 = vmatpush.msra.mxu0 0.0
  %572 = vmatpush.msra.mxu0 0.0
  %573 = vmatpush.msra.mxu0 0.0
  %574 = vmatpush.msra.mxu0 0.0
  %575 = vmatpush.msra.mxu0 0.0
  %576 = vmatpush.msra.mxu0 %v67
  %577 = vmatpush.msra.mxu0 %v66
  %578 = vmatpush.msra.mxu0 %v65
  %579 = vmatpush.msra.mxu0 %v64
  %580 = vmatmul.f32.gmra.mxu0 %v562
  %v581 = vpop.f32.mrf.mxu0
  %v582 = vadd.f32 0.0, %v581
  %583 = vdwg.mxu0
  %v584 = vadd.f32 %v558, %v582
  %v585 = vxor.u32 %v584, 2147483648
  %v586 = vmul.f32 %v585, 1.442695
  %v587 = vpow.pop %v586
  %v588 = vadd.f32 %v587, 1.0
  %v589 = vrcp.pop %v588
  %v590 = vmul.f32 %v588, %v589
  %v591 = vsub.f32 1.0, %v590
  %v592 = vmul.f32 %v589, %v591
  %v593 = vadd.f32 %v589, %v592
  %vm594 = vweird.f32 %v588
  %vm595 = vweird.f32 %v589
  %vm596 = vmor %vm594, %vm595
  %v597 = vsel %vm596, %v589, %v593
  %v598 = vand.u32 2147483647, %v588
  %vm599 = vcmp.eq.f32.partialorder %v598, 8.507059e+37
  %v600 = vand.u32 %v588, 2147483648
  %v601 = vor.u32 1.1754944e-38, %v600
  %v602 = vsel %vm599, %v601, %v597
  %v603 = vmul.f32 1.0, %v602
  %v604 = vtanh.pop %v584
  %606 = vrot.lane.b32.xlu0 %v560, 32
  %v607 = vpop.permute.xlu0 %606
  %v609 = vmul.f32 %v603, %v607
  %611 = vrot.lane.b32.xlu0 %v604, 64
  %v612 = vpop.permute.xlu0 %611
  %v614 = vmul.f32 %v603, %v612
  %616 = vrot.lane.b32.xlu0 %v614, 32
  %v617 = vpop.permute.xlu0 %616
  %v619 = vadd.f32 %v609, %v617
  %v620 = vtanh.pop %v619
  %622 = vrot.lane.b32.xlu0 %v620, 64
  %v623 = vpop.permute.xlu0 %622
  %v625 = vmul.f32 %v603, %v623
  %627 = vrot.lane.b32.xlu0 %v625, 32
  %v628 = vpop.permute.xlu0 %627
  %630 = vst.msk [vmem:[#allocation2] sm:$0xff] %vm75, %v628
  %632 = vrot.lane.b32.xlu0 %v619, 96
  %v633 = vpop.permute.xlu0 %632
  %635 = vst.msk [vmem:[#allocation3] sm:$0xff] %vm75, %v633
  %s636 = scalar_lea.vmem %s4, 24
  %637 = vst.msk [vmem:[%s636] sm:$0xff] %vm75, %v628
  %s638 = scalar_lea.vmem %s44, 32
  %v639 = vld [vmem:[%s638] sm:$0xff]
  %v640 = vld [vmem:[#allocation4] sm:$0xff]
  %v641 = vld [vmem:[#allocation5] sm:$0xff]
  %v643 = vsel %vm75, %v640, 0
  %645 = vmatpush.msra.mxu0 0.0
  %646 = vmatpush.msra.mxu0 0.0
  %647 = vmatpush.msra.mxu0 0.0
  %648 = vmatpush.msra.mxu0 0.0
  %649 = vmatpush.msra.mxu0 0.0
  %650 = vmatpush.msra.mxu0 0.0
  %651 = vmatpush.msra.mxu0 0.0
  %652 = vmatpush.msra.mxu0 0.0
  %653 = vmatpush.msra.mxu0 0.0
  %654 = vmatpush.msra.mxu0 0.0
  %655 = vmatpush.msra.mxu0 0.0
  %656 = vmatpush.msra.mxu0 0.0
  %657 = vmatpush.msra.mxu0 %v71
  %658 = vmatpush.msra.mxu0 %v70
  %659 = vmatpush.msra.mxu0 %v69
  %660 = vmatpush.msra.mxu0 %v68
  %661 = vmatmul.f32.gmra.mxu0 %v643
  %v662 = vpop.f32.mrf.mxu0
  %v663 = vadd.f32 0.0, %v662
  %664 = vdwg.mxu0
  %v665 = vadd.f32 %v639, %v663
  %v666 = vxor.u32 %v665, 2147483648
  %v667 = vmul.f32 %v666, 1.442695
  %v668 = vpow.pop %v667
  %v669 = vadd.f32 %v668, 1.0
  %v670 = vrcp.pop %v669
  %v671 = vmul.f32 %v669, %v670
  %v672 = vsub.f32 1.0, %v671
  %v673 = vmul.f32 %v670, %v672
  %v674 = vadd.f32 %v670, %v673
  %vm675 = vweird.f32 %v669
  %vm676 = vweird.f32 %v670
  %vm677 = vmor %vm675, %vm676
  %v678 = vsel %vm677, %v670, %v674
  %v679 = vand.u32 2147483647, %v669
  %vm680 = vcmp.eq.f32.partialorder %v679, 8.507059e+37
  %v681 = vand.u32 %v669, 2147483648
  %v682 = vor.u32 1.1754944e-38, %v681
  %v683 = vsel %vm680, %v682, %v678
  %v684 = vmul.f32 1.0, %v683
  %v685 = vtanh.pop %v665
  %687 = vrot.lane.b32.xlu0 %v641, 32
  %v688 = vpop.permute.xlu0 %687
  %v690 = vmul.f32 %v684, %v688
  %692 = vrot.lane.b32.xlu0 %v685, 64
  %v693 = vpop.permute.xlu0 %692
  %v695 = vmul.f32 %v684, %v693
  %697 = vrot.lane.b32.xlu0 %v695, 32
  %v698 = vpop.permute.xlu0 %697
  %v700 = vadd.f32 %v690, %v698
  %v701 = vtanh.pop %v700
  %703 = vrot.lane.b32.xlu0 %v701, 64
  %v704 = vpop.permute.xlu0 %703
  %v706 = vmul.f32 %v684, %v704
  %708 = vrot.lane.b32.xlu0 %v706, 32
  %v709 = vpop.permute.xlu0 %708
  %711 = vst.msk [vmem:[#allocation4] sm:$0xff] %vm75, %v709
  %713 = vrot.lane.b32.xlu0 %v700, 96
  %v714 = vpop.permute.xlu0 %713
  %716 = vst.msk [vmem:[#allocation5] sm:$0xff] %vm75, %v714
  %s717 = scalar_lea.vmem %s52, 32
  %718 = vst.msk [vmem:[%s717] sm:$0xff] %vm75, %v709
  %s719 = scalar_lea.vmem %s0, 32
  %v720 = vld [vmem:[%s719] sm:$0xff]
  %v721 = vld [vmem:[#allocation2] sm:$0xff]
  %v722 = vld [vmem:[#allocation3] sm:$0xff]
  %v724 = vsel %vm75, %v721, 0
  %726 = vmatpush.msra.mxu0 0.0
  %727 = vmatpush.msra.mxu0 0.0
  %728 = vmatpush.msra.mxu0 0.0
  %729 = vmatpush.msra.mxu0 0.0
  %730 = vmatpush.msra.mxu0 0.0
  %731 = vmatpush.msra.mxu0 0.0
  %732 = vmatpush.msra.mxu0 0.0
  %733 = vmatpush.msra.mxu0 0.0
  %734 = vmatpush.msra.mxu0 0.0
  %735 = vmatpush.msra.mxu0 0.0
  %736 = vmatpush.msra.mxu0 0.0
  %737 = vmatpush.msra.mxu0 0.0
  %738 = vmatpush.msra.mxu0 %v67
  %739 = vmatpush.msra.mxu0 %v66
  %740 = vmatpush.msra.mxu0 %v65
  %741 = vmatpush.msra.mxu0 %v64
  %742 = vmatmul.f32.gmra.mxu0 %v724
  %v743 = vpop.f32.mrf.mxu0
  %v744 = vadd.f32 0.0, %v743
  %745 = vdwg.mxu0
  %v746 = vadd.f32 %v720, %v744
  %v747 = vxor.u32 %v746, 2147483648
  %v748 = vmul.f32 %v747, 1.442695
  %v749 = vpow.pop %v748
  %v750 = vadd.f32 %v749, 1.0
  %v751 = vrcp.pop %v750
  %v752 = vmul.f32 %v750, %v751
  %v753 = vsub.f32 1.0, %v752
  %v754 = vmul.f32 %v751, %v753
  %v755 = vadd.f32 %v751, %v754
  %vm756 = vweird.f32 %v750
  %vm757 = vweird.f32 %v751
  %vm758 = vmor %vm756, %vm757
  %v759 = vsel %vm758, %v751, %v755
  %v760 = vand.u32 2147483647, %v750
  %vm761 = vcmp.eq.f32.partialorder %v760, 8.507059e+37
  %v762 = vand.u32 %v750, 2147483648
  %v763 = vor.u32 1.1754944e-38, %v762
  %v764 = vsel %vm761, %v763, %v759
  %v765 = vmul.f32 1.0, %v764
  %v766 = vtanh.pop %v746
  %768 = vrot.lane.b32.xlu0 %v722, 32
  %v769 = vpop.permute.xlu0 %768
  %v771 = vmul.f32 %v765, %v769
  %773 = vrot.lane.b32.xlu0 %v766, 64
  %v774 = vpop.permute.xlu0 %773
  %v776 = vmul.f32 %v765, %v774
  %778 = vrot.lane.b32.xlu0 %v776, 32
  %v779 = vpop.permute.xlu0 %778
  %v781 = vadd.f32 %v771, %v779
  %v782 = vtanh.pop %v781
  %784 = vrot.lane.b32.xlu0 %v782, 64
  %v785 = vpop.permute.xlu0 %784
  %v787 = vmul.f32 %v765, %v785
  %789 = vrot.lane.b32.xlu0 %v787, 32
  %v790 = vpop.permute.xlu0 %789
  %792 = vst.msk [vmem:[#allocation2] sm:$0xff] %vm75, %v790
  %794 = vrot.lane.b32.xlu0 %v781, 96
  %v795 = vpop.permute.xlu0 %794
  %797 = vst.msk [vmem:[#allocation3] sm:$0xff] %vm75, %v795
  %s798 = scalar_lea.vmem %s4, 32
  %799 = vst.msk [vmem:[%s798] sm:$0xff] %vm75, %v790
  %s800 = scalar_lea.vmem %s44, 24
  %v801 = vld [vmem:[%s800] sm:$0xff]
  %v802 = vld [vmem:[#allocation4] sm:$0xff]
  %v803 = vld [vmem:[#allocation5] sm:$0xff]
  %v805 = vsel %vm75, %v802, 0
  %807 = vmatpush.msra.mxu0 0.0
  %808 = vmatpush.msra.mxu0 0.0
  %809 = vmatpush.msra.mxu0 0.0
  %810 = vmatpush.msra.mxu0 0.0
  %811 = vmatpush.msra.mxu0 0.0
  %812 = vmatpush.msra.mxu0 0.0
  %813 = vmatpush.msra.mxu0 0.0
  %814 = vmatpush.msra.mxu0 0.0
  %815 = vmatpush.msra.mxu0 0.0
  %816 = vmatpush.msra.mxu0 0.0
  %817 = vmatpush.msra.mxu0 0.0
  %818 = vmatpush.msra.mxu0 0.0
  %819 = vmatpush.msra.mxu0 %v71
  %820 = vmatpush.msra.mxu0 %v70
  %821 = vmatpush.msra.mxu0 %v69
  %822 = vmatpush.msra.mxu0 %v68
  %823 = vmatmul.f32.gmra.mxu0 %v805
  %v824 = vpop.f32.mrf.mxu0
  %v825 = vadd.f32 0.0, %v824
  %826 = vdwg.mxu0
  %v827 = vadd.f32 %v801, %v825
  %v828 = vxor.u32 %v827, 2147483648
  %v829 = vmul.f32 %v828, 1.442695
  %v830 = vpow.pop %v829
  %v831 = vadd.f32 %v830, 1.0
  %v832 = vrcp.pop %v831
  %v833 = vmul.f32 %v831, %v832
  %v834 = vsub.f32 1.0, %v833
  %v835 = vmul.f32 %v832, %v834
  %v836 = vadd.f32 %v832, %v835
  %vm837 = vweird.f32 %v831
  %vm838 = vweird.f32 %v832
  %vm839 = vmor %vm837, %vm838
  %v840 = vsel %vm839, %v832, %v836
  %v841 = vand.u32 2147483647, %v831
  %vm842 = vcmp.eq.f32.partialorder %v841, 8.507059e+37
  %v843 = vand.u32 %v831, 2147483648
  %v844 = vor.u32 1.1754944e-38, %v843
  %v845 = vsel %vm842, %v844, %v840
  %v846 = vmul.f32 1.0, %v845
  %v847 = vtanh.pop %v827
  %849 = vrot.lane.b32.xlu0 %v803, 32
  %v850 = vpop.permute.xlu0 %849
  %v852 = vmul.f32 %v846, %v850
  %854 = vrot.lane.b32.xlu0 %v847, 64
  %v855 = vpop.permute.xlu0 %854
  %v857 = vmul.f32 %v846, %v855
  %859 = vrot.lane.b32.xlu0 %v857, 32
  %v860 = vpop.permute.xlu0 %859
  %v862 = vadd.f32 %v852, %v860
  %v863 = vtanh.pop %v862
  %865 = vrot.lane.b32.xlu0 %v863, 64
  %v866 = vpop.permute.xlu0 %865
  %v868 = vmul.f32 %v846, %v866
  %870 = vrot.lane.b32.xlu0 %v868, 32
  %v871 = vpop.permute.xlu0 %870
  %873 = vst.msk [vmem:[#allocation4] sm:$0xff] %vm75, %v871
  %875 = vrot.lane.b32.xlu0 %v862, 96
  %v876 = vpop.permute.xlu0 %875
  %878 = vst.msk [vmem:[#allocation5] sm:$0xff] %vm75, %v876
  %s879 = scalar_lea.vmem %s52, 24
  %880 = vst.msk [vmem:[%s879] sm:$0xff] %vm75, %v871
  %s881 = scalar_lea.vmem %s0, 40
  %v882 = vld [vmem:[%s881] sm:$0xff]
  %v883 = vld [vmem:[#allocation2] sm:$0xff]
  %v884 = vld [vmem:[#allocation3] sm:$0xff]
  %v886 = vsel %vm75, %v883, 0
  %888 = vmatpush.msra.mxu0 0.0
  %889 = vmatpush.msra.mxu0 0.0
  %890 = vmatpush.msra.mxu0 0.0
  %891 = vmatpush.msra.mxu0 0.0
  %892 = vmatpush.msra.mxu0 0.0
  %893 = vmatpush.msra.mxu0 0.0
  %894 = vmatpush.msra.mxu0 0.0
  %895 = vmatpush.msra.mxu0 0.0
  %896 = vmatpush.msra.mxu0 0.0
  %897 = vmatpush.msra.mxu0 0.0
  %898 = vmatpush.msra.mxu0 0.0
  %899 = vmatpush.msra.mxu0 0.0
  %900 = vmatpush.msra.mxu0 %v67
  %901 = vmatpush.msra.mxu0 %v66
  %902 = vmatpush.msra.mxu0 %v65
  %903 = vmatpush.msra.mxu0 %v64
  %904 = vmatmul.f32.gmra.mxu0 %v886
  %v905 = vpop.f32.mrf.mxu0
  %v906 = vadd.f32 0.0, %v905
  %907 = vdwg.mxu0
  %v908 = vadd.f32 %v882, %v906
  %v909 = vxor.u32 %v908, 2147483648
  %v910 = vmul.f32 %v909, 1.442695
  %v911 = vpow.pop %v910
  %v912 = vadd.f32 %v911, 1.0
  %v913 = vrcp.pop %v912
  %v914 = vmul.f32 %v912, %v913
  %v915 = vsub.f32 1.0, %v914
  %v916 = vmul.f32 %v913, %v915
  %v917 = vadd.f32 %v913, %v916
  %vm918 = vweird.f32 %v912
  %vm919 = vweird.f32 %v913
  %vm920 = vmor %vm918, %vm919
  %v921 = vsel %vm920, %v913, %v917
  %v922 = vand.u32 2147483647, %v912
  %vm923 = vcmp.eq.f32.partialorder %v922, 8.507059e+37
  %v924 = vand.u32 %v912, 2147483648
  %v925 = vor.u32 1.1754944e-38, %v924
  %v926 = vsel %vm923, %v925, %v921
  %v927 = vmul.f32 1.0, %v926
  %v928 = vtanh.pop %v908
  %930 = vrot.lane.b32.xlu0 %v884, 32
  %v931 = vpop.permute.xlu0 %930
  %v933 = vmul.f32 %v927, %v931
  %935 = vrot.lane.b32.xlu0 %v928, 64
  %v936 = vpop.permute.xlu0 %935
  %v938 = vmul.f32 %v927, %v936
  %940 = vrot.lane.b32.xlu0 %v938, 32
  %v941 = vpop.permute.xlu0 %940
  %v943 = vadd.f32 %v933, %v941
  %v944 = vtanh.pop %v943
  %946 = vrot.lane.b32.xlu0 %v944, 64
  %v947 = vpop.permute.xlu0 %946
  %v949 = vmul.f32 %v927, %v947
  %951 = vrot.lane.b32.xlu0 %v949, 32
  %v952 = vpop.permute.xlu0 %951
  %954 = vst.msk [vmem:[#allocation2] sm:$0xff] %vm75, %v952
  %956 = vrot.lane.b32.xlu0 %v943, 96
  %v957 = vpop.permute.xlu0 %956
  %959 = vst.msk [vmem:[#allocation3] sm:$0xff] %vm75, %v957
  %s960 = scalar_lea.vmem %s4, 40
  %961 = vst.msk [vmem:[%s960] sm:$0xff] %vm75, %v952
  %s962 = scalar_lea.vmem %s44, 16
  %v963 = vld [vmem:[%s962] sm:$0xff]
  %v964 = vld [vmem:[#allocation4] sm:$0xff]
  %v965 = vld [vmem:[#allocation5] sm:$0xff]
  %v967 = vsel %vm75, %v964, 0
  %969 = vmatpush.msra.mxu0 0.0
  %970 = vmatpush.msra.mxu0 0.0
  %971 = vmatpush.msra.mxu0 0.0
  %972 = vmatpush.msra.mxu0 0.0
  %973 = vmatpush.msra.mxu0 0.0
  %974 = vmatpush.msra.mxu0 0.0
  %975 = vmatpush.msra.mxu0 0.0
  %976 = vmatpush.msra.mxu0 0.0
  %977 = vmatpush.msra.mxu0 0.0
  %978 = vmatpush.msra.mxu0 0.0
  %979 = vmatpush.msra.mxu0 0.0
  %980 = vmatpush.msra.mxu0 0.0
  %981 = vmatpush.msra.mxu0 %v71
  %982 = vmatpush.msra.mxu0 %v70
  %983 = vmatpush.msra.mxu0 %v69
  %984 = vmatpush.msra.mxu0 %v68
  %985 = vmatmul.f32.gmra.mxu0 %v967
  %v986 = vpop.f32.mrf.mxu0
  %v987 = vadd.f32 0.0, %v986
  %988 = vdwg.mxu0
  %v989 = vadd.f32 %v963, %v987
  %v990 = vxor.u32 %v989, 2147483648
  %v991 = vmul.f32 %v990, 1.442695
  %v992 = vpow.pop %v991
  %v993 = vadd.f32 %v992, 1.0
  %v994 = vrcp.pop %v993
  %v995 = vmul.f32 %v993, %v994
  %v996 = vsub.f32 1.0, %v995
  %v997 = vmul.f32 %v994, %v996
  %v998 = vadd.f32 %v994, %v997
  %vm999 = vweird.f32 %v993
  %vm1000 = vweird.f32 %v994
  %vm1001 = vmor %vm999, %vm1000
  %v1002 = vsel %vm1001, %v994, %v998
  %v1003 = vand.u32 2147483647, %v993
  %vm1004 = vcmp.eq.f32.partialorder %v1003, 8.507059e+37
  %v1005 = vand.u32 %v993, 2147483648
  %v1006 = vor.u32 1.1754944e-38, %v1005
  %v1007 = vsel %vm1004, %v1006, %v1002
  %v1008 = vmul.f32 1.0, %v1007
  %v1009 = vtanh.pop %v989
  %1011 = vrot.lane.b32.xlu0 %v965, 32
  %v1012 = vpop.permute.xlu0 %1011
  %v1014 = vmul.f32 %v1008, %v1012
  %1016 = vrot.lane.b32.xlu0 %v1009, 64
  %v1017 = vpop.permute.xlu0 %1016
  %v1019 = vmul.f32 %v1008, %v1017
  %1021 = vrot.lane.b32.xlu0 %v1019, 32
  %v1022 = vpop.permute.xlu0 %1021
  %v1024 = vadd.f32 %v1014, %v1022
  %v1025 = vtanh.pop %v1024
  %1027 = vrot.lane.b32.xlu0 %v1025, 64
  %v1028 = vpop.permute.xlu0 %1027
  %v1030 = vmul.f32 %v1008, %v1028
  %1032 = vrot.lane.b32.xlu0 %v1030, 32
  %v1033 = vpop.permute.xlu0 %1032
  %1035 = vst.msk [vmem:[#allocation4] sm:$0xff] %vm75, %v1033
  %1037 = vrot.lane.b32.xlu0 %v1024, 96
  %v1038 = vpop.permute.xlu0 %1037
  %1040 = vst.msk [vmem:[#allocation5] sm:$0xff] %vm75, %v1038
  %s1041 = scalar_lea.vmem %s52, 16
  %1042 = vst.msk [vmem:[%s1041] sm:$0xff] %vm75, %v1033
  %s1043 = scalar_lea.vmem %s0, 48
  %v1044 = vld [vmem:[%s1043] sm:$0xff]
  %v1045 = vld [vmem:[#allocation2] sm:$0xff]
  %v1046 = vld [vmem:[#allocation3] sm:$0xff]
  %v1048 = vsel %vm75, %v1045, 0
  %1050 = vmatpush.msra.mxu0 0.0
  %1051 = vmatpush.msra.mxu0 0.0
  %1052 = vmatpush.msra.mxu0 0.0
  %1053 = vmatpush.msra.mxu0 0.0
  %1054 = vmatpush.msra.mxu0 0.0
  %1055 = vmatpush.msra.mxu0 0.0
  %1056 = vmatpush.msra.mxu0 0.0
  %1057 = vmatpush.msra.mxu0 0.0
  %1058 = vmatpush.msra.mxu0 0.0
  %1059 = vmatpush.msra.mxu0 0.0
  %1060 = vmatpush.msra.mxu0 0.0
  %1061 = vmatpush.msra.mxu0 0.0
  %1062 = vmatpush.msra.mxu0 %v67
  %1063 = vmatpush.msra.mxu0 %v66
  %1064 = vmatpush.msra.mxu0 %v65
  %1065 = vmatpush.msra.mxu0 %v64
  %1066 = vmatmul.f32.gmra.mxu0 %v1048
  %v1067 = vpop.f32.mrf.mxu0
  %v1068 = vadd.f32 0.0, %v1067
  %1069 = vdwg.mxu0
  %v1070 = vadd.f32 %v1044, %v1068
  %v1071 = vxor.u32 %v1070, 2147483648
  %v1072 = vmul.f32 %v1071, 1.442695
  %v1073 = vpow.pop %v1072
  %v1074 = vadd.f32 %v1073, 1.0
  %v1075 = vrcp.pop %v1074
  %v1076 = vmul.f32 %v1074, %v1075
  %v1077 = vsub.f32 1.0, %v1076
  %v1078 = vmul.f32 %v1075, %v1077
  %v1079 = vadd.f32 %v1075, %v1078
  %vm1080 = vweird.f32 %v1074
  %vm1081 = vweird.f32 %v1075
  %vm1082 = vmor %vm1080, %vm1081
  %v1083 = vsel %vm1082, %v1075, %v1079
  %v1084 = vand.u32 2147483647, %v1074
  %vm1085 = vcmp.eq.f32.partialorder %v1084, 8.507059e+37
  %v1086 = vand.u32 %v1074, 2147483648
  %v1087 = vor.u32 1.1754944e-38, %v1086
  %v1088 = vsel %vm1085, %v1087, %v1083
  %v1089 = vmul.f32 1.0, %v1088
  %v1090 = vtanh.pop %v1070
  %1092 = vrot.lane.b32.xlu0 %v1046, 32
  %v1093 = vpop.permute.xlu0 %1092
  %v1095 = vmul.f32 %v1089, %v1093
  %1097 = vrot.lane.b32.xlu0 %v1090, 64
  %v1098 = vpop.permute.xlu0 %1097
  %v1100 = vmul.f32 %v1089, %v1098
  %1102 = vrot.lane.b32.xlu0 %v1100, 32
  %v1103 = vpop.permute.xlu0 %1102
  %v1105 = vadd.f32 %v1095, %v1103
  %v1106 = vtanh.pop %v1105
  %1108 = vrot.lane.b32.xlu0 %v1106, 64
  %v1109 = vpop.permute.xlu0 %1108
  %v1111 = vmul.f32 %v1089, %v1109
  %1113 = vrot.lane.b32.xlu0 %v1111, 32
  %v1114 = vpop.permute.xlu0 %1113
  %1116 = vst.msk [vmem:[#allocation2] sm:$0xff] %vm75, %v1114
  %1118 = vrot.lane.b32.xlu0 %v1105, 96
  %v1119 = vpop.permute.xlu0 %1118
  %1121 = vst.msk [vmem:[#allocation3] sm:$0xff] %vm75, %v1119
  %s1122 = scalar_lea.vmem %s4, 48
  %1123 = vst.msk [vmem:[%s1122] sm:$0xff] %vm75, %v1114
  %s1124 = scalar_lea.vmem %s44, 8
  %v1125 = vld [vmem:[%s1124] sm:$0xff]
  %v1126 = vld [vmem:[#allocation4] sm:$0xff]
  %v1127 = vld [vmem:[#allocation5] sm:$0xff]
  %v1129 = vsel %vm75, %v1126, 0
  %1131 = vmatpush.msra.mxu0 0.0
  %1132 = vmatpush.msra.mxu0 0.0
  %1133 = vmatpush.msra.mxu0 0.0
  %1134 = vmatpush.msra.mxu0 0.0
  %1135 = vmatpush.msra.mxu0 0.0
  %1136 = vmatpush.msra.mxu0 0.0
  %1137 = vmatpush.msra.mxu0 0.0
  %1138 = vmatpush.msra.mxu0 0.0
  %1139 = vmatpush.msra.mxu0 0.0
  %1140 = vmatpush.msra.mxu0 0.0
  %1141 = vmatpush.msra.mxu0 0.0
  %1142 = vmatpush.msra.mxu0 0.0
  %1143 = vmatpush.msra.mxu0 %v71
  %1144 = vmatpush.msra.mxu0 %v70
  %1145 = vmatpush.msra.mxu0 %v69
  %1146 = vmatpush.msra.mxu0 %v68
  %1147 = vmatmul.f32.gmra.mxu0 %v1129
  %v1148 = vpop.f32.mrf.mxu0
  %v1149 = vadd.f32 0.0, %v1148
  %1150 = vdwg.mxu0
  %v1151 = vadd.f32 %v1125, %v1149
  %v1152 = vxor.u32 %v1151, 2147483648
  %v1153 = vmul.f32 %v1152, 1.442695
  %v1154 = vpow.pop %v1153
  %v1155 = vadd.f32 %v1154, 1.0
  %v1156 = vrcp.pop %v1155
  %v1157 = vmul.f32 %v1155, %v1156
  %v1158 = vsub.f32 1.0, %v1157
  %v1159 = vmul.f32 %v1156, %v1158
  %v1160 = vadd.f32 %v1156, %v1159
  %vm1161 = vweird.f32 %v1155
  %vm1162 = vweird.f32 %v1156
  %vm1163 = vmor %vm1161, %vm1162
  %v1164 = vsel %vm1163, %v1156, %v1160
  %v1165 = vand.u32 2147483647, %v1155
  %vm1166 = vcmp.eq.f32.partialorder %v1165, 8.507059e+37
  %v1167 = vand.u32 %v1155, 2147483648
  %v1168 = vor.u32 1.1754944e-38, %v1167
  %v1169 = vsel %vm1166, %v1168, %v1164
  %v1170 = vmul.f32 1.0, %v1169
  %v1171 = vtanh.pop %v1151
  %1173 = vrot.lane.b32.xlu0 %v1127, 32
  %v1174 = vpop.permute.xlu0 %1173
  %v1176 = vmul.f32 %v1170, %v1174
  %1178 = vrot.lane.b32.xlu0 %v1171, 64
  %v1179 = vpop.permute.xlu0 %1178
  %v1181 = vmul.f32 %v1170, %v1179
  %1183 = vrot.lane.b32.xlu0 %v1181, 32
  %v1184 = vpop.permute.xlu0 %1183
  %v1186 = vadd.f32 %v1176, %v1184
  %v1187 = vtanh.pop %v1186
  %1189 = vrot.lane.b32.xlu0 %v1187, 64
  %v1190 = vpop.permute.xlu0 %1189
  %v1192 = vmul.f32 %v1170, %v1190
  %1194 = vrot.lane.b32.xlu0 %v1192, 32
  %v1195 = vpop.permute.xlu0 %1194
  %1197 = vst.msk [vmem:[#allocation4] sm:$0xff] %vm75, %v1195
  %1199 = vrot.lane.b32.xlu0 %v1186, 96
  %v1200 = vpop.permute.xlu0 %1199
  %1202 = vst.msk [vmem:[#allocation5] sm:$0xff] %vm75, %v1200
  %s1203 = scalar_lea.vmem %s52, 8
  %1204 = vst.msk [vmem:[%s1203] sm:$0xff] %vm75, %v1195
  %s1205 = scalar_lea.vmem %s0, 56
  %v1206 = vld [vmem:[%s1205] sm:$0xff]
  %v1207 = vld [vmem:[#allocation2] sm:$0xff]
  %v1208 = vld [vmem:[#allocation3] sm:$0xff]
  %v1210 = vsel %vm75, %v1207, 0
  %1212 = vmatpush.msra.mxu0 0.0
  %1213 = vmatpush.msra.mxu0 0.0
  %1214 = vmatpush.msra.mxu0 0.0
  %1215 = vmatpush.msra.mxu0 0.0
  %1216 = vmatpush.msra.mxu0 0.0
  %1217 = vmatpush.msra.mxu0 0.0
  %1218 = vmatpush.msra.mxu0 0.0
  %1219 = vmatpush.msra.mxu0 0.0
  %1220 = vmatpush.msra.mxu0 0.0
  %1221 = vmatpush.msra.mxu0 0.0
  %1222 = vmatpush.msra.mxu0 0.0
  %1223 = vmatpush.msra.mxu0 0.0
  %1224 = vmatpush.msra.mxu0 %v67
  %1225 = vmatpush.msra.mxu0 %v66
  %1226 = vmatpush.msra.mxu0 %v65
  %1227 = vmatpush.msra.mxu0 %v64
  %1228 = vmatmul.f32.gmra.mxu0 %v1210
  %v1229 = vpop.f32.mrf.mxu0
  %v1230 = vadd.f32 0.0, %v1229
  %1231 = vdwg.mxu0
  %v1232 = vadd.f32 %v1206, %v1230
  %v1233 = vxor.u32 %v1232, 2147483648
  %v1234 = vmul.f32 %v1233, 1.442695
  %v1235 = vpow.pop %v1234
  %v1236 = vadd.f32 %v1235, 1.0
  %v1237 = vrcp.pop %v1236
  %v1238 = vmul.f32 %v1236, %v1237
  %v1239 = vsub.f32 1.0, %v1238
  %v1240 = vmul.f32 %v1237, %v1239
  %v1241 = vadd.f32 %v1237, %v1240
  %vm1242 = vweird.f32 %v1236
  %vm1243 = vweird.f32 %v1237
  %vm1244 = vmor %vm1242, %vm1243
  %v1245 = vsel %vm1244, %v1237, %v1241
  %v1246 = vand.u32 2147483647, %v1236
  %vm1247 = vcmp.eq.f32.partialorder %v1246, 8.507059e+37
  %v1248 = vand.u32 %v1236, 2147483648
  %v1249 = vor.u32 1.1754944e-38, %v1248
  %v1250 = vsel %vm1247, %v1249, %v1245
  %v1251 = vmul.f32 1.0, %v1250
  %v1252 = vtanh.pop %v1232
  %1254 = vrot.lane.b32.xlu0 %v1208, 32
  %v1255 = vpop.permute.xlu0 %1254
  %v1257 = vmul.f32 %v1251, %v1255
  %1259 = vrot.lane.b32.xlu0 %v1252, 64
  %v1260 = vpop.permute.xlu0 %1259
  %v1262 = vmul.f32 %v1251, %v1260
  %1264 = vrot.lane.b32.xlu0 %v1262, 32
  %v1265 = vpop.permute.xlu0 %1264
  %v1267 = vadd.f32 %v1257, %v1265
  %v1268 = vtanh.pop %v1267
  %1270 = vrot.lane.b32.xlu0 %v1268, 64
  %v1271 = vpop.permute.xlu0 %1270
  %v1273 = vmul.f32 %v1251, %v1271
  %1275 = vrot.lane.b32.xlu0 %v1273, 32
  %v1276 = vpop.permute.xlu0 %1275
  %1278 = vst.msk [vmem:[#allocation2] sm:$0xff] %vm75, %v1276
  %1280 = vrot.lane.b32.xlu0 %v1267, 96
  %v1281 = vpop.permute.xlu0 %1280
  %1283 = vst.msk [vmem:[#allocation3] sm:$0xff] %vm75, %v1281
  %s1284 = scalar_lea.vmem %s4, 56
  %1285 = vst.msk [vmem:[%s1284] sm:$0xff] %vm75, %v1276
  %v1286 = vld [vmem:[%s44] sm:$0xff]
  %v1287 = vld [vmem:[#allocation4] sm:$0xff]
  %v1288 = vld [vmem:[#allocation5] sm:$0xff]
  %v1290 = vsel %vm75, %v1287, 0
  %1292 = vmatpush.msra.mxu0 0.0
  %1293 = vmatpush.msra.mxu0 0.0
  %1294 = vmatpush.msra.mxu0 0.0
  %1295 = vmatpush.msra.mxu0 0.0
  %1296 = vmatpush.msra.mxu0 0.0
  %1297 = vmatpush.msra.mxu0 0.0
  %1298 = vmatpush.msra.mxu0 0.0
  %1299 = vmatpush.msra.mxu0 0.0
  %1300 = vmatpush.msra.mxu0 0.0
  %1301 = vmatpush.msra.mxu0 0.0
  %1302 = vmatpush.msra.mxu0 0.0
  %1303 = vmatpush.msra.mxu0 0.0
  %1304 = vmatpush.msra.mxu0 %v71
  %1305 = vmatpush.msra.mxu0 %v70
  %1306 = vmatpush.msra.mxu0 %v69
  %1307 = vmatpush.msra.mxu0 %v68
  %1308 = vmatmul.f32.gmra.mxu0 %v1290
  %v1309 = vpop.f32.mrf.mxu0
  %v1310 = vadd.f32 0.0, %v1309
  %1311 = vdwg.mxu0
  %v1312 = vadd.f32 %v1286, %v1310
  %v1313 = vxor.u32 %v1312, 2147483648
  %v1314 = vmul.f32 %v1313, 1.442695
  %v1315 = vpow.pop %v1314
  %v1316 = vadd.f32 %v1315, 1.0
  %v1317 = vrcp.pop %v1316
  %v1318 = vmul.f32 %v1316, %v1317
  %v1319 = vsub.f32 1.0, %v1318
  %v1320 = vmul.f32 %v1317, %v1319
  %v1321 = vadd.f32 %v1317, %v1320
  %vm1322 = vweird.f32 %v1316
  %vm1323 = vweird.f32 %v1317
  %vm1324 = vmor %vm1322, %vm1323
  %v1325 = vsel %vm1324, %v1317, %v1321
  %v1326 = vand.u32 2147483647, %v1316
  %vm1327 = vcmp.eq.f32.partialorder %v1326, 8.507059e+37
  %v1328 = vand.u32 %v1316, 2147483648
  %v1329 = vor.u32 1.1754944e-38, %v1328
  %v1330 = vsel %vm1327, %v1329, %v1325
  %v1331 = vmul.f32 1.0, %v1330
  %v1332 = vtanh.pop %v1312
  %1334 = vrot.lane.b32.xlu0 %v1288, 32
  %v1335 = vpop.permute.xlu0 %1334
  %v1337 = vmul.f32 %v1331, %v1335
  %1339 = vrot.lane.b32.xlu0 %v1332, 64
  %v1340 = vpop.permute.xlu0 %1339
  %v1342 = vmul.f32 %v1331, %v1340
  %1344 = vrot.lane.b32.xlu0 %v1342, 32
  %v1345 = vpop.permute.xlu0 %1344
  %v1347 = vadd.f32 %v1337, %v1345
  %v1348 = vtanh.pop %v1347
  %1350 = vrot.lane.b32.xlu0 %v1348, 64
  %v1351 = vpop.permute.xlu0 %1350
  %v1353 = vmul.f32 %v1331, %v1351
  %1355 = vrot.lane.b32.xlu0 %v1353, 32
  %v1356 = vpop.permute.xlu0 %1355
  %1358 = vst.msk [vmem:[#allocation4] sm:$0xff] %vm75, %v1356
  %1360 = vrot.lane.b32.xlu0 %v1347, 96
  %v1361 = vpop.permute.xlu0 %1360
  %1363 = vst.msk [vmem:[#allocation5] sm:$0xff] %vm75, %v1361
  %1364 = vst.msk [vmem:[%s52] sm:$0xff] %vm75, %v1356
  %s1365 = ssub.s32 0, 0
  %s1366 = smul.u32 8, %s1365
  %p1367 = scmp.lt.s32.totalorder %s1366, 7
  %s1368 = scalar_select %p1367, %s1366, 7
  %s1369 = smul.addr %s1368, 8
  %s1370 = scalar_lea.vmem %s5, %s1369
  // Predicated region
  $region22: #{lstm_model_forward.8} parent=0 // pred_check
    _
  $region23: #{lstm_model_forward.8} parent=0 // pred_check_branch
    %1372 = sbr.rel (0) target = $region25
  $region24: #{lstm_model_forward.8} parent=0 // pred_region
    _
  $region25: #{lstm_model_forward.8} parent=0 // pred_fallthru
    _
  // Predicated region
  $region26: #{lstm_model_forward.8} parent=0 // pred_check
    _
  $region27: #{lstm_model_forward.8} parent=0 // pred_check_branch
    %1374 = sbr.rel (0) target = $region29
  $region28: #{lstm_model_forward.8} parent=0 // pred_region
    %s1375 = ssub.s32 0, 0
    %s1376 = smul.u32 8, %s1375
  $region29: #{lstm_model_forward.8} parent=0 // pred_fallthru
    _
  // Predicated region
  $region30: #{lstm_model_forward.8} parent=0 // pred_check
    _
  $region31: #{lstm_model_forward.8} parent=0 // pred_check_branch
    %1378 = sbr.rel (0) target = $region33
  $region32: #{lstm_model_forward.8} parent=0 // pred_region
    _
  $region33: #{lstm_model_forward.8} parent=0 // pred_fallthru
    _
  // Predicated region
  $region34: #{lstm_model_forward.8} parent=0 // pred_check
    _
  $region35: #{lstm_model_forward.8} parent=0 // pred_check_branch
    %1380 = sbr.rel (0) target = $region37
  $region36: #{lstm_model_forward.8} parent=0 // pred_region
    %s1381 = ssub.s32 0, 0
    %s1382 = smul.u32 8, %s1381
    %p1383 = scmp.lt.s32.totalorder %s1382, 7
    %s1384 = scalar_select %p1383, %s1382, 7
    %s1385 = smul.addr %s1384, 8
    %s1386 = scalar_lea.vmem %s5, %s1385
  $region37: #{lstm_model_forward.8} parent=0 // pred_fallthru
    _

</llo_original>
